<compile_context>
chip_gen: v7x
topology: tpu7x:2x2x1
jax: 0.10.0
libtpu: 0.0.40
codegen_flags: <defaults>
</compile_context>

<pallas_src>
import jax
import jax.numpy as jnp
from jax.experimental import pallas as pl
from jax.experimental.pallas import tpu as pltpu

K_IN = 8100      # true in_features
K_PAD = 8192     # padded contraction dim (multiple of 128 lanes)
H1 = 128
H2 = 64


def mlp_kernel(x_ref, w1_ref, b1_ref, w2_ref, b2_ref, w3_ref, b3_ref, o_ref):
    # Layer 1: (TB, 8192) bf16 @ (8192, 128) bf16 -> f32 accumulate, + bias, ReLU
    h1 = jnp.dot(x_ref[...], w1_ref[...], preferred_element_type=jnp.float32)
    h1 = jnp.maximum(h1 + b1_ref[...], 0.0)
    # dropout (eval mode) -> identity

    # Layer 2: (TB, 128) @ (128, 64) f32 + bias, ReLU
    h2 = jnp.dot(h1, w2_ref[...], preferred_element_type=jnp.float32)
    h2 = jnp.maximum(h2 + b2_ref[...], 0.0)
    # dropout (eval mode) -> identity

    # Layer 3: (TB, 64) . (64,) -> (TB, 1) as VPU mul + lane reduction (off the MXU)
    o_ref[...] = jnp.sum(h2 * w3_ref[...], axis=-1, keepdims=True) + b3_ref[0]


def _pick_batch_tile(batch):
    """Batch tile: ~256 rows on 64 MiB-VMEM chips, 512 on 128 MiB chips."""
    tb = 256
    try:
        vmem = pltpu.get_tpu_info().vmem_capacity_bytes
        if vmem >= (96 << 20):
            tb = 512
    except Exception:
        pass
    if batch < tb:
        tb = max(8, ((batch + 7) // 8) * 8)   # keep sublane-aligned for tiny batches
    return tb


def nueral_network_forward(x, params):
    w1, b1, w2, b2, w3, b3 = params
    B, K = x.shape
    assert K == K_IN

    TB = _pick_batch_tile(B)
    B_pad = ((B + TB - 1) // TB) * TB

    # Pad + cast the streamed operands for layer 1 (zeros do not change the dot).
    x_p = jnp.pad(x.astype(jnp.bfloat16), ((0, B_pad - B), (0, K_PAD - K)))
    w1_p = jnp.pad(w1.astype(jnp.bfloat16), ((0, K_PAD - K), (0, 0)))

    grid = (B_pad // TB,)

    # VMEM footprint: 2x double-buffered x tile + resident weights + headroom.
    x_tile_bytes = TB * K_PAD * 2
    weight_bytes = K_PAD * H1 * 2 + H1 * H2 * 4 + (H1 + 2 * H2) * 4
    vmem_limit = int(min(96 << 20, 2 * x_tile_bytes + 2 * weight_bytes + (8 << 20)))

    out = pl.pallas_call(
        mlp_kernel,
        out_shape=jax.ShapeDtypeStruct((B_pad, 1), jnp.float32),
        grid=grid,
        in_specs=[
            pl.BlockSpec((TB, K_PAD), lambda i: (i, 0)),          # x: streamed per tile
            pl.BlockSpec((K_PAD, H1), lambda i: (0, 0)),          # w1: resident
            pl.BlockSpec((1, H1), lambda i: (0, 0)),              # b1: resident
            pl.BlockSpec((H1, H2), lambda i: (0, 0)),             # w2: resident
            pl.BlockSpec((1, H2), lambda i: (0, 0)),              # b2: resident
            pl.BlockSpec((1, H2), lambda i: (0, 0)),              # w3 (row): resident
            pl.BlockSpec((1,), lambda i: (0,),
                         memory_space=pltpu.MemorySpace.SMEM),    # b3: scalar in SMEM
        ],
        out_specs=pl.BlockSpec((TB, 1), lambda i: (i, 0)),
        compiler_params=pltpu.CompilerParams(
            dimension_semantics=("parallel",),
            vmem_limit_bytes=vmem_limit,
        ),
    )(x_p, w1_p, b1, w2, b2, w3, b3)

    return out[:B]


def init_params(key):
    """Deterministic init mimicking PyTorch nn.Linear (uniform +/- 1/sqrt(fan_in)).

    Weights are stored as (in_features, out_features); w3 is stored as a (1, 64)
    row and b3 as a (1,) scalar array.
    """
    def linear(key, fan_in, fan_out):
        kw, kb = jax.random.split(key)
        bound = 1.0 / jnp.sqrt(fan_in)
        w = jax.random.uniform(kw, (fan_in, fan_out), jnp.float32, -bound, bound)
        b = jax.random.uniform(kb, (1, fan_out), jnp.float32, -bound, bound)
        return w, b

    k1, k2, k3 = jax.random.split(key, 3)
    w1, b1 = linear(k1, K_IN, H1)
    w2, b2 = linear(k2, H1, H2)
    w3_col, b3_row = linear(k3, H2, 1)
    w3 = w3_col.T                 # (1, 64) row for the in-kernel reduction
    b3 = b3_row.reshape((1,))     # scalar bias for SMEM
    return (w1, b1, w2, b2, w3, b3)


if __name__ == "__main__":
    key = jax.random.PRNGKey(0)
    k_params, k_x = jax.random.split(key)

    params = init_params(k_params)
    x = jax.random.normal(k_x, (2, K_IN), jnp.float32)  # batch=2, in_features=8100

    out = nueral_network_forward(x, params)
    out = jax.block_until_ready(out)

    # Reference in plain JAX (eval-mode dropout = identity). The kernel uses bf16
    # inputs for layer 1 (f32 accumulation), so compare with a modest tolerance.
    w1, b1, w2, b2, w3, b3 = params
    ref = jnp.maximum(x @ w1 + b1, 0.0)
    ref = jnp.maximum(ref @ w2 + b2, 0.0)
    ref = ref @ w3.T + b3                      # (B, 1)

    assert out.shape == (2, 1)
    assert jnp.allclose(out, ref, atol=2e-2, rtol=2e-2), (out, ref)

    print("KERNEL_OK")
</pallas_src>

<mosaic_0001>
module attributes {stable_mosaic.version = 11 : i64} {
  func.func @mlp_kernel(%arg0: i32, %arg1: memref<8x8192xbf16, #tpu.memory_space<vmem>>, %arg2: memref<8192x128xbf16, #tpu.memory_space<vmem>>, %arg3: memref<1x128xf32, #tpu.memory_space<vmem>>, %arg4: memref<128x64xf32, #tpu.memory_space<vmem>>, %arg5: memref<1x64xf32, #tpu.memory_space<vmem>>, %arg6: memref<1x64xf32, #tpu.memory_space<vmem>>, %arg7: memref<1xf32, #tpu.memory_space<smem>>, %arg8: memref<8x1xf32, #tpu.memory_space<vmem>>) attributes {dimension_semantics = [#tpu.dimension_semantics<parallel>], iteration_bounds = array<i64: 1>, scalar_prefetch = 0 : i64, scratch_operands = 0 : i64, tpu.core_type = #tpu.core_type<tc>, window_params = [{transform_indices = @transform_0, window_bounds = array<i64: 8, 8192>}, {pipeline_mode = #tpu.pipeline_mode<synchronous>, transform_indices = @transform_1, window_bounds = array<i64: 8192, 128>}, {pipeline_mode = #tpu.pipeline_mode<synchronous>, transform_indices = @transform_2, window_bounds = array<i64: 1, 128>}, {pipeline_mode = #tpu.pipeline_mode<synchronous>, transform_indices = @transform_3, window_bounds = array<i64: 128, 64>}, {pipeline_mode = #tpu.pipeline_mode<synchronous>, transform_indices = @transform_4, window_bounds = array<i64: 1, 64>}, {pipeline_mode = #tpu.pipeline_mode<synchronous>, transform_indices = @transform_5, window_bounds = array<i64: 1, 64>}, {transform_indices = @transform_6, window_bounds = array<i64: 1>}, {transform_indices = @transform_7, window_bounds = array<i64: 8, 1>}]} {
    %c0 = arith.constant 0 : index
    %c0_0 = arith.constant 0 : index
    %0 = vector.load %arg1[%c0, %c0_0] : memref<8x8192xbf16, #tpu.memory_space<vmem>>, vector<8x8192xbf16>
    %c0_1 = arith.constant 0 : index
    %c0_2 = arith.constant 0 : index
    %1 = vector.load %arg2[%c0_1, %c0_2] : memref<8192x128xbf16, #tpu.memory_space<vmem>>, vector<8192x128xbf16>
    %cst = arith.constant dense<0.000000e+00> : vector<8x128xf32>
    %2 = tpu.matmul %0, %1, %cst {dimension_numbers = #tpu.dot_dimension_numbers<[1], [0], [0], [1], [0, 0, 1, 1], [], []>} : vector<8x8192xbf16>, vector<8192x128xbf16>, vector<8x128xf32> -> vector<8x128xf32>
    %c0_3 = arith.constant 0 : index
    %c0_4 = arith.constant 0 : index
    %3 = vector.load %arg3[%c0_3, %c0_4] : memref<1x128xf32, #tpu.memory_space<vmem>>, vector<1x128xf32>
    %4 = vector.broadcast %3 : vector<1x128xf32> to vector<8x128xf32>
    %5 = arith.addf %2, %4 : vector<8x128xf32>
    %cst_5 = arith.constant 0.000000e+00 : f32
    %6 = vector.broadcast %cst_5 : f32 to vector<8x128xf32>
    %7 = arith.maximumf %5, %6 : vector<8x128xf32>
    %c0_6 = arith.constant 0 : index
    %c0_7 = arith.constant 0 : index
    %8 = vector.load %arg4[%c0_6, %c0_7] : memref<128x64xf32, #tpu.memory_space<vmem>>, vector<128x64xf32>
    %cst_8 = arith.constant dense<0.000000e+00> : vector<8x64xf32>
    %9 = tpu.matmul %7, %8, %cst_8 {dimension_numbers = #tpu.dot_dimension_numbers<[1], [0], [0], [1], [0, 0, 1, 1], [], []>} : vector<8x128xf32>, vector<128x64xf32>, vector<8x64xf32> -> vector<8x64xf32>
    %c0_9 = arith.constant 0 : index
    %c0_10 = arith.constant 0 : index
    %10 = vector.load %arg5[%c0_9, %c0_10] : memref<1x64xf32, #tpu.memory_space<vmem>>, vector<1x64xf32>
    %11 = vector.broadcast %10 : vector<1x64xf32> to vector<8x64xf32>
    %12 = arith.addf %9, %11 : vector<8x64xf32>
    %cst_11 = arith.constant 0.000000e+00 : f32
    %13 = vector.broadcast %cst_11 : f32 to vector<8x64xf32>
    %14 = arith.maximumf %12, %13 : vector<8x64xf32>
    %c0_12 = arith.constant 0 : index
    %c0_13 = arith.constant 0 : index
    %15 = vector.load %arg6[%c0_12, %c0_13] : memref<1x64xf32, #tpu.memory_space<vmem>>, vector<1x64xf32>
    %16 = vector.broadcast %15 : vector<1x64xf32> to vector<8x64xf32>
    %17 = arith.mulf %14, %16 : vector<8x64xf32>
    %cst_14 = arith.constant dense<0.000000e+00> : vector<8xf32>
    %18 = vector.multi_reduction <add>, %17, %cst_14 [1] : vector<8x64xf32> to vector<8xf32>
    %19 = vector.shape_cast %18 : vector<8xf32> to vector<8x1xf32>
    %c0_15 = arith.constant 0 : index
    %20 = memref.load %arg7[%c0_15] : memref<1xf32, #tpu.memory_space<smem>>
    %21 = vector.broadcast %20 : f32 to vector<8x1xf32>
    %22 = arith.addf %19, %21 : vector<8x1xf32>
    %c0_16 = arith.constant 0 : index
    %c0_17 = arith.constant 0 : index
    %23 = vector.load %arg8[%c0_16, %c0_17] : memref<8x1xf32, #tpu.memory_space<vmem>>, vector<8x1xf32>
    tpu.vector_store %arg8[%c0_16, %c0_17], %22 {strides = array<i32>} : memref<8x1xf32, #tpu.memory_space<vmem>>, vector<8x1xf32>,
    return
  }
  func.func @transform_0(%arg0: i32) -> (i32, i32) {
    %c0_i32 = arith.constant 0 : i32
    %c0_i32_0 = arith.constant 0 : i32
    return %arg0, %c0_i32 : i32, i32
  }
  func.func @transform_1(%arg0: i32) -> (i32, i32) {
    %c0_i32 = arith.constant 0 : i32
    %c0_i32_0 = arith.constant 0 : i32
    %c0_i32_1 = arith.constant 0 : i32
    return %c0_i32, %c0_i32_0 : i32, i32
  }
  func.func @transform_2(%arg0: i32) -> (i32, i32) {
    %c0_i32 = arith.constant 0 : i32
    %c0_i32_0 = arith.constant 0 : i32
    %c0_i32_1 = arith.constant 0 : i32
    return %c0_i32, %c0_i32_0 : i32, i32
  }
  func.func @transform_3(%arg0: i32) -> (i32, i32) {
    %c0_i32 = arith.constant 0 : i32
    %c0_i32_0 = arith.constant 0 : i32
    %c0_i32_1 = arith.constant 0 : i32
    return %c0_i32, %c0_i32_0 : i32, i32
  }
  func.func @transform_4(%arg0: i32) -> (i32, i32) {
    %c0_i32 = arith.constant 0 : i32
    %c0_i32_0 = arith.constant 0 : i32
    %c0_i32_1 = arith.constant 0 : i32
    return %c0_i32, %c0_i32_0 : i32, i32
  }
  func.func @transform_5(%arg0: i32) -> (i32, i32) {
    %c0_i32 = arith.constant 0 : i32
    %c0_i32_0 = arith.constant 0 : i32
    %c0_i32_1 = arith.constant 0 : i32
    return %c0_i32, %c0_i32_0 : i32, i32
  }
  func.func @transform_6(%arg0: i32) -> i32 {
    %c0_i32 = arith.constant 0 : i32
    %c0_i32_0 = arith.constant 0 : i32
    return %c0_i32 : i32
  }
  func.func @transform_7(%arg0: i32) -> (i32, i32) {
    %c0_i32 = arith.constant 0 : i32
    %c0_i32_0 = arith.constant 0 : i32
    return %arg0, %c0_i32 : i32, i32
  }
}

</mosaic_0001>

<llo_original>
// kernel: tpu_custom_call.1
$region0: #{tpu_custom_call.1}
  #allocation0 [shape = 'u32[]', space=smem, size = 0x4, offset = 0x4, fixed_abs, tag = 'smem constant byte address 0x4 - core index']
  #allocation1 [shape = 'u32[144,128]{1,0:T(1,128)}', space=vmem, size = 0x12000, scoped, tag = 'internal scratch']
  #allocation2 [shape = 'f32[1]{0:T(128)S(6)}', space=smem, size = 0x200, scoped, tag = 'scoped memory for tpu_custom_call.1']
  %s0 = inlined_call_operand.hbm [shape: bf16[8,8192], index: 0, kind: input, shape index: {}]
  %s1 = inlined_call_operand.hbm [shape: bf16[8192,128], index: 1, kind: input, shape index: {}]
  %s2 = inlined_call_operand.hbm [shape: f32[1,128], index: 2, kind: input, shape index: {}]
  %s3 = inlined_call_operand.vmem [shape: f32[128,64], index: 3, kind: input, shape index: {}]
  %s4 = inlined_call_operand.hbm [shape: f32[1,64], index: 4, kind: input, shape index: {}]
  %s5 = inlined_call_operand.hbm [shape: f32[1,64], index: 5, kind: input, shape index: {}]
  %s6 = inlined_call_operand.<no memory space> [shape: f32[1], index: 6, kind: input, shape index: {}]
  %s7 = inlined_call_operand.vmem [shape: f32[8,1], index: 7, kind: output, shape index: {}]
  %s8 = sld [smem:[#allocation0]]
  $region58: #{tpu_custom_call.1} parent=0
    _
  %s10 = ssub.s32 1, %s8
  %s11 = scalar_select 0, %s10, %s8
  %12 = sst [smem:[#allocation2]] %s6
  $region1: #{tpu_custom_call.1} parent=0
    #allocation3 [shape = 'u8[131072]{0}', space=vmem, size = 0x20000, scoped, tag = 'input window, operand 0, single buffered']
    #allocation4 [shape = 's32[1]{0}', space=sflag, size = 0x4, scoped, tag = 'scoped memory for tpu_custom_call.1']
    #allocation5 [shape = 'u8[2097152]{0}', space=vmem, size = 0x200000, scoped, tag = 'input window, operand 1, single buffered']
    #allocation6 [shape = 's32[1]{0}', space=sflag, size = 0x4, scoped, tag = 'scoped memory for tpu_custom_call.1']
    #allocation7 [shape = 'u8[512]{0}', space=vmem, size = 0x400, scoped, tag = 'input window, operand 2, single buffered']
    #allocation8 [shape = 'u8[512]{0}', space=vmem, size = 0x400, scoped, tag = 'input window, operand 4, single buffered']
    #allocation9 [shape = 's32[1]{0}', space=sflag, size = 0x4, scoped, tag = 'scoped memory for tpu_custom_call.1']
    #allocation10 [shape = 'u8[512]{0}', space=vmem, size = 0x400, scoped, tag = 'input window, operand 5, single buffered']
    %13 = vsyncpa [#allocation4], 0
    %14 = vsyncpa [#allocation6], 0
    %15 = vsyncpa [#allocation9], 0
    // Predicated region
    $region2: #{tpu_custom_call.1} parent=1 // pred_check
      _
    $region3: #{tpu_custom_call.1} parent=1 // pred_check_branch
      %17 = sbr.rel (0) target = $region5
    $region4: #{tpu_custom_call.1} parent=1 // pred_region
      %s19 = ssub.s32 4096, 4096
      %20 = vsyncadd [#allocation4], %s19
      %s22 = sshll.u32 [#allocation3], 4
      %s23 = int_to_ptr.vmem [resolvable:$true] %s22
      %25 = dma.hbm_to_vmem [thread:$0]  %s0, 4096, %s23, [#allocation4]
    $region5: #{tpu_custom_call.1} parent=1 // pred_fallthru
      _
    // Predicated region
    $region6: #{tpu_custom_call.1} parent=1 // pred_check
      _
    $region7: #{tpu_custom_call.1} parent=1 // pred_check_branch
      %27 = sbr.rel (0) target = $region9
    $region8: #{tpu_custom_call.1} parent=1 // pred_region
      %s29 = ssub.s32 65536, 65536
      %30 = vsyncadd [#allocation6], %s29
      %s31 = sshll.u32 [#allocation5], 4
      %s32 = int_to_ptr.vmem [resolvable:$true] %s31
      %37 = dma.hbm_to_vmem [thread:$0]  %s1, 65536, %s32, [#allocation6], 64, 64, 4
    $region9: #{tpu_custom_call.1} parent=1 // pred_fallthru
      _
    // Predicated region
    $region10: #{tpu_custom_call.1} parent=1 // pred_check
      _
    $region11: #{tpu_custom_call.1} parent=1 // pred_check_branch
      %39 = sbr.rel (0) target = $region13
    $region12: #{tpu_custom_call.1} parent=1 // pred_region
      %s41 = ssub.s32 16, 16
      %42 = vsyncadd [#allocation6], %s41
      %s44 = sshll.u32 [#allocation7], 4
      %s45 = int_to_ptr.vmem [resolvable:$true] %s44
      %47 = dma.hbm_to_vmem [thread:$0]  %s2, 16, %s45, [#allocation6]
    $region13: #{tpu_custom_call.1} parent=1 // pred_fallthru
      _
    // Predicated region
    $region14: #{tpu_custom_call.1} parent=1 // pred_check
      _
    $region15: #{tpu_custom_call.1} parent=1 // pred_check_branch
      %49 = sbr.rel (0) target = $region17
    $region16: #{tpu_custom_call.1} parent=1 // pred_region
      _
    $region17: #{tpu_custom_call.1} parent=1 // pred_fallthru
      _
    // Predicated region
    $region18: #{tpu_custom_call.1} parent=1 // pred_check
      _
    $region19: #{tpu_custom_call.1} parent=1 // pred_check_branch
      %51 = sbr.rel (0) target = $region21
    $region20: #{tpu_custom_call.1} parent=1 // pred_region
      %s53 = ssub.s32 16, 16
      %54 = vsyncadd [#allocation9], %s53
      %s56 = sshll.u32 [#allocation8], 4
      %s57 = int_to_ptr.vmem [resolvable:$true] %s56
      %59 = dma.hbm_to_vmem [thread:$0]  %s4, 16, %s57, [#allocation9]
    $region21: #{tpu_custom_call.1} parent=1 // pred_fallthru
      _
    // Predicated region
    $region22: #{tpu_custom_call.1} parent=1 // pred_check
      _
    $region23: #{tpu_custom_call.1} parent=1 // pred_check_branch
      %61 = sbr.rel (0) target = $region25
    $region24: #{tpu_custom_call.1} parent=1 // pred_region
      %s63 = ssub.s32 16, 16
      %64 = vsyncadd [#allocation9], %s63
      %s66 = sshll.u32 [#allocation10], 4
      %s67 = int_to_ptr.vmem [resolvable:$true] %s66
      %69 = dma.hbm_to_vmem [thread:$0]  %s5, 16, %s67, [#allocation9]
    $region25: #{tpu_custom_call.1} parent=1 // pred_fallthru
      _
    // Predicated region
    $region26: #{tpu_custom_call.1} parent=1 // pred_check
      _
    $region27: #{tpu_custom_call.1} parent=1 // pred_check_branch
      %71 = sbr.rel (0) target = $region29
    $region28: #{tpu_custom_call.1} parent=1 // pred_region
      _
    $region29: #{tpu_custom_call.1} parent=1 // pred_fallthru
      _
    // Predicated region
    $region30: #{tpu_custom_call.1} parent=1 // pred_check
      _
    $region31: #{tpu_custom_call.1} parent=1 // pred_check_branch
      %73 = sbr.rel (0) target = $region33
    $region32: #{tpu_custom_call.1} parent=1 // pred_region
      %74 = dma.done [#allocation4], 4096
    $region33: #{tpu_custom_call.1} parent=1 // pred_fallthru
      _
    // Predicated region
    $region34: #{tpu_custom_call.1} parent=1 // pred_check
      _
    $region35: #{tpu_custom_call.1} parent=1 // pred_check_branch
      %76 = sbr.rel (0) target = $region37
    $region36: #{tpu_custom_call.1} parent=1 // pred_region
      %77 = dma.done [#allocation6], 65536
    $region37: #{tpu_custom_call.1} parent=1 // pred_fallthru
      _
    // Predicated region
    $region38: #{tpu_custom_call.1} parent=1 // pred_check
      _
    $region39: #{tpu_custom_call.1} parent=1 // pred_check_branch
      %79 = sbr.rel (0) target = $region41
    $region40: #{tpu_custom_call.1} parent=1 // pred_region
      %80 = dma.done [#allocation6], 16
    $region41: #{tpu_custom_call.1} parent=1 // pred_fallthru
      _
    // Predicated region
    $region42: #{tpu_custom_call.1} parent=1 // pred_check
      _
    $region43: #{tpu_custom_call.1} parent=1 // pred_check_branch
      %82 = sbr.rel (0) target = $region45
    $region44: #{tpu_custom_call.1} parent=1 // pred_region
      %83 = dma.done [#allocation9], 16
    $region45: #{tpu_custom_call.1} parent=1 // pred_fallthru
      _
    // Predicated region
    $region46: #{tpu_custom_call.1} parent=1 // pred_check
      _
    $region47: #{tpu_custom_call.1} parent=1 // pred_check_branch
      %85 = sbr.rel (0) target = $region49
    $region48: #{tpu_custom_call.1} parent=1 // pred_region
      %86 = dma.done [#allocation9], 16
    $region49: #{tpu_custom_call.1} parent=1 // pred_fallthru
      _
    %v88 = vld [vmem:[#allocation3] sm:$0xff]
    %v89 = vld [vmem:[#allocation3 + $0x8] sm:$0xff]
    %v90 = vld [vmem:[#allocation3 + $0x10] sm:$0xff]
    %v91 = vld [vmem:[#allocation3 + $0x18] sm:$0xff]
    %v92 = vld [vmem:[#allocation3 + $0x20] sm:$0xff]
    %v93 = vld [vmem:[#allocation3 + $0x28] sm:$0xff]
    %v94 = vld [vmem:[#allocation3 + $0x30] sm:$0xff]
    %v95 = vld [vmem:[#allocation3 + $0x38] sm:$0xff]
    %v96 = vld [vmem:[#allocation3 + $0x40] sm:$0xff]
    %v97 = vld [vmem:[#allocation3 + $0x48] sm:$0xff]
    %v98 = vld [vmem:[#allocation3 + $0x50] sm:$0xff]
    %v99 = vld [vmem:[#allocation3 + $0x58] sm:$0xff]
    %v100 = vld [vmem:[#allocation3 + $0x60] sm:$0xff]
    %v101 = vld [vmem:[#allocation3 + $0x68] sm:$0xff]
    %v102 = vld [vmem:[#allocation3 + $0x70] sm:$0xff]
    %v103 = vld [vmem:[#allocation3 + $0x78] sm:$0xff]
    %v104 = vld [vmem:[#allocation3 + $0x80] sm:$0xff]
    %v105 = vld [vmem:[#allocation3 + $0x88] sm:$0xff]
    %v106 = vld [vmem:[#allocation3 + $0x90] sm:$0xff]
    %v107 = vld [vmem:[#allocation3 + $0x98] sm:$0xff]
    %v108 = vld [vmem:[#allocation3 + $0xa0] sm:$0xff]
    %v109 = vld [vmem:[#allocation3 + $0xa8] sm:$0xff]
    %v110 = vld [vmem:[#allocation3 + $0xb0] sm:$0xff]
    %v111 = vld [vmem:[#allocation3 + $0xb8] sm:$0xff]
    %v112 = vld [vmem:[#allocation3 + $0xc0] sm:$0xff]
    %v113 = vld [vmem:[#allocation3 + $0xc8] sm:$0xff]
    %v114 = vld [vmem:[#allocation3 + $0xd0] sm:$0xff]
    %v115 = vld [vmem:[#allocation3 + $0xd8] sm:$0xff]
    %v116 = vld [vmem:[#allocation3 + $0xe0] sm:$0xff]
    %v117 = vld [vmem:[#allocation3 + $0xe8] sm:$0xff]
    %v118 = vld [vmem:[#allocation3 + $0xf0] sm:$0xff]
    %v119 = vld [vmem:[#allocation3 + $0xf8] sm:$0xff]
    %v120 = vld [vmem:[#allocation5] sm:$0xf]
    %v121 = vld [vmem:[#allocation5 + $0x4] sm:$0xf]
    %v122 = vld [vmem:[#allocation5 + $0x8] sm:$0xf]
    %v123 = vld [vmem:[#allocation5 + $0xc] sm:$0xf]
    %v124 = vld [vmem:[#allocation5 + $0x10] sm:$0xf]
    %v125 = vld [vmem:[#allocation5 + $0x14] sm:$0xf]
    %v126 = vld [vmem:[#allocation5 + $0x18] sm:$0xf]
    %v127 = vld [vmem:[#allocation5 + $0x1c] sm:$0xf]
    %v128 = vld [vmem:[#allocation5 + $0x20] sm:$0xf]
    %v129 = vld [vmem:[#allocation5 + $0x24] sm:$0xf]
    %v130 = vld [vmem:[#allocation5 + $0x28] sm:$0xf]
    %v131 = vld [vmem:[#allocation5 + $0x2c] sm:$0xf]
    %v132 = vld [vmem:[#allocation5 + $0x30] sm:$0xf]
    %v133 = vld [vmem:[#allocation5 + $0x34] sm:$0xf]
    %v134 = vld [vmem:[#allocation5 + $0x38] sm:$0xf]
    %v135 = vld [vmem:[#allocation5 + $0x3c] sm:$0xf]
    %v136 = vld [vmem:[#allocation5 + $0x40] sm:$0xf]
    %v137 = vld [vmem:[#allocation5 + $0x44] sm:$0xf]
    %v138 = vld [vmem:[#allocation5 + $0x48] sm:$0xf]
    %v139 = vld [vmem:[#allocation5 + $0x4c] sm:$0xf]
    %v140 = vld [vmem:[#allocation5 + $0x50] sm:$0xf]
    %v141 = vld [vmem:[#allocation5 + $0x54] sm:$0xf]
    %v142 = vld [vmem:[#allocation5 + $0x58] sm:$0xf]
    %v143 = vld [vmem:[#allocation5 + $0x5c] sm:$0xf]
    %v144 = vld [vmem:[#allocation5 + $0x60] sm:$0xf]
    %v145 = vld [vmem:[#allocation5 + $0x64] sm:$0xf]
    %v146 = vld [vmem:[#allocation5 + $0x68] sm:$0xf]
    %v147 = vld [vmem:[#allocation5 + $0x6c] sm:$0xf]
    %v148 = vld [vmem:[#allocation5 + $0x70] sm:$0xf]
    %v149 = vld [vmem:[#allocation5 + $0x74] sm:$0xf]
    %v150 = vld [vmem:[#allocation5 + $0x78] sm:$0xf]
    %v151 = vld [vmem:[#allocation5 + $0x7c] sm:$0xf]
    %v152 = vld [vmem:[#allocation5 + $0x80] sm:$0xf]
    %v153 = vld [vmem:[#allocation5 + $0x84] sm:$0xf]
    %v154 = vld [vmem:[#allocation5 + $0x88] sm:$0xf]
    %v155 = vld [vmem:[#allocation5 + $0x8c] sm:$0xf]
    %v156 = vld [vmem:[#allocation5 + $0x90] sm:$0xf]
    %v157 = vld [vmem:[#allocation5 + $0x94] sm:$0xf]
    %v158 = vld [vmem:[#allocation5 + $0x98] sm:$0xf]
    %v159 = vld [vmem:[#allocation5 + $0x9c] sm:$0xf]
    %v160 = vld [vmem:[#allocation5 + $0xa0] sm:$0xf]
    %v161 = vld [vmem:[#allocation5 + $0xa4] sm:$0xf]
    %v162 = vld [vmem:[#allocation5 + $0xa8] sm:$0xf]
    %v163 = vld [vmem:[#allocation5 + $0xac] sm:$0xf]
    %v164 = vld [vmem:[#allocation5 + $0xb0] sm:$0xf]
    %v165 = vld [vmem:[#allocation5 + $0xb4] sm:$0xf]
    %v166 = vld [vmem:[#allocation5 + $0xb8] sm:$0xf]
    %v167 = vld [vmem:[#allocation5 + $0xbc] sm:$0xf]
    %v168 = vld [vmem:[#allocation5 + $0xc0] sm:$0xf]
    %v169 = vld [vmem:[#allocation5 + $0xc4] sm:$0xf]
    %v170 = vld [vmem:[#allocation5 + $0xc8] sm:$0xf]
    %v171 = vld [vmem:[#allocation5 + $0xcc] sm:$0xf]
    %v172 = vld [vmem:[#allocation5 + $0xd0] sm:$0xf]
    %v173 = vld [vmem:[#allocation5 + $0xd4] sm:$0xf]
    %v174 = vld [vmem:[#allocation5 + $0xd8] sm:$0xf]
    %v175 = vld [vmem:[#allocation5 + $0xdc] sm:$0xf]
    %v176 = vld [vmem:[#allocation5 + $0xe0] sm:$0xf]
    %v177 = vld [vmem:[#allocation5 + $0xe4] sm:$0xf]
    %v178 = vld [vmem:[#allocation5 + $0xe8] sm:$0xf]
    %v179 = vld [vmem:[#allocation5 + $0xec] sm:$0xf]
    %v180 = vld [vmem:[#allocation5 + $0xf0] sm:$0xf]
    %v181 = vld [vmem:[#allocation5 + $0xf4] sm:$0xf]
    %v182 = vld [vmem:[#allocation5 + $0xf8] sm:$0xf]
    %v183 = vld [vmem:[#allocation5 + $0xfc] sm:$0xf]
    %v184 = vld [vmem:[#allocation5 + $0x100] sm:$0xf]
    %v185 = vld [vmem:[#allocation5 + $0x104] sm:$0xf]
    %v186 = vld [vmem:[#allocation5 + $0x108] sm:$0xf]
    %v187 = vld [vmem:[#allocation5 + $0x10c] sm:$0xf]
    %v188 = vld [vmem:[#allocation5 + $0x110] sm:$0xf]
    %v189 = vld [vmem:[#allocation5 + $0x114] sm:$0xf]
    %v190 = vld [vmem:[#allocation5 + $0x118] sm:$0xf]
    %v191 = vld [vmem:[#allocation5 + $0x11c] sm:$0xf]
    %v192 = vld [vmem:[#allocation5 + $0x120] sm:$0xf]
    %v193 = vld [vmem:[#allocation5 + $0x124] sm:$0xf]
    %v194 = vld [vmem:[#allocation5 + $0x128] sm:$0xf]
    %v195 = vld [vmem:[#allocation5 + $0x12c] sm:$0xf]
    %v196 = vld [vmem:[#allocation5 + $0x130] sm:$0xf]
    %v197 = vld [vmem:[#allocation5 + $0x134] sm:$0xf]
    %v198 = vld [vmem:[#allocation5 + $0x138] sm:$0xf]
    %v199 = vld [vmem:[#allocation5 + $0x13c] sm:$0xf]
    %v200 = vld [vmem:[#allocation5 + $0x140] sm:$0xf]
    %v201 = vld [vmem:[#allocation5 + $0x144] sm:$0xf]
    %v202 = vld [vmem:[#allocation5 + $0x148] sm:$0xf]
    %v203 = vld [vmem:[#allocation5 + $0x14c] sm:$0xf]
    %v204 = vld [vmem:[#allocation5 + $0x150] sm:$0xf]
    %v205 = vld [vmem:[#allocation5 + $0x154] sm:$0xf]
    %v206 = vld [vmem:[#allocation5 + $0x158] sm:$0xf]
    %v207 = vld [vmem:[#allocation5 + $0x15c] sm:$0xf]
    %v208 = vld [vmem:[#allocation5 + $0x160] sm:$0xf]
    %v209 = vld [vmem:[#allocation5 + $0x164] sm:$0xf]
    %v210 = vld [vmem:[#allocation5 + $0x168] sm:$0xf]
    %v211 = vld [vmem:[#allocation5 + $0x16c] sm:$0xf]
    %v212 = vld [vmem:[#allocation5 + $0x170] sm:$0xf]
    %v213 = vld [vmem:[#allocation5 + $0x174] sm:$0xf]
    %v214 = vld [vmem:[#allocation5 + $0x178] sm:$0xf]
    %v215 = vld [vmem:[#allocation5 + $0x17c] sm:$0xf]
    %v216 = vld [vmem:[#allocation5 + $0x180] sm:$0xf]
    %v217 = vld [vmem:[#allocation5 + $0x184] sm:$0xf]
    %v218 = vld [vmem:[#allocation5 + $0x188] sm:$0xf]
    %v219 = vld [vmem:[#allocation5 + $0x18c] sm:$0xf]
    %v220 = vld [vmem:[#allocation5 + $0x190] sm:$0xf]
    %v221 = vld [vmem:[#allocation5 + $0x194] sm:$0xf]
    %v222 = vld [vmem:[#allocation5 + $0x198] sm:$0xf]
    %v223 = vld [vmem:[#allocation5 + $0x19c] sm:$0xf]
    %v224 = vld [vmem:[#allocation5 + $0x1a0] sm:$0xf]
    %v225 = vld [vmem:[#allocation5 + $0x1a4] sm:$0xf]
    %v226 = vld [vmem:[#allocation5 + $0x1a8] sm:$0xf]
    %v227 = vld [vmem:[#allocation5 + $0x1ac] sm:$0xf]
    %v228 = vld [vmem:[#allocation5 + $0x1b0] sm:$0xf]
    %v229 = vld [vmem:[#allocation5 + $0x1b4] sm:$0xf]
    %v230 = vld [vmem:[#allocation5 + $0x1b8] sm:$0xf]
    %v231 = vld [vmem:[#allocation5 + $0x1bc] sm:$0xf]
    %v232 = vld [vmem:[#allocation5 + $0x1c0] sm:$0xf]
    %v233 = vld [vmem:[#allocation5 + $0x1c4] sm:$0xf]
    %v234 = vld [vmem:[#allocation5 + $0x1c8] sm:$0xf]
    %v235 = vld [vmem:[#allocation5 + $0x1cc] sm:$0xf]
    %v236 = vld [vmem:[#allocation5 + $0x1d0] sm:$0xf]
    %v237 = vld [vmem:[#allocation5 + $0x1d4] sm:$0xf]
    %v238 = vld [vmem:[#allocation5 + $0x1d8] sm:$0xf]
    %v239 = vld [vmem:[#allocation5 + $0x1dc] sm:$0xf]
    %v240 = vld [vmem:[#allocation5 + $0x1e0] sm:$0xf]
    %v241 = vld [vmem:[#allocation5 + $0x1e4] sm:$0xf]
    %v242 = vld [vmem:[#allocation5 + $0x1e8] sm:$0xf]
    %v243 = vld [vmem:[#allocation5 + $0x1ec] sm:$0xf]
    %v244 = vld [vmem:[#allocation5 + $0x1f0] sm:$0xf]
    %v245 = vld [vmem:[#allocation5 + $0x1f4] sm:$0xf]
    %v246 = vld [vmem:[#allocation5 + $0x1f8] sm:$0xf]
    %v247 = vld [vmem:[#allocation5 + $0x1fc] sm:$0xf]
    %v248 = vld [vmem:[#allocation5 + $0x200] sm:$0xf]
    %v249 = vld [vmem:[#allocation5 + $0x204] sm:$0xf]
    %v250 = vld [vmem:[#allocation5 + $0x208] sm:$0xf]
    %v251 = vld [vmem:[#allocation5 + $0x20c] sm:$0xf]
    %v252 = vld [vmem:[#allocation5 + $0x210] sm:$0xf]
    %v253 = vld [vmem:[#allocation5 + $0x214] sm:$0xf]
    %v254 = vld [vmem:[#allocation5 + $0x218] sm:$0xf]
    %v255 = vld [vmem:[#allocation5 + $0x21c] sm:$0xf]
    %v256 = vld [vmem:[#allocation5 + $0x220] sm:$0xf]
    %v257 = vld [vmem:[#allocation5 + $0x224] sm:$0xf]
    %v258 = vld [vmem:[#allocation5 + $0x228] sm:$0xf]
    %v259 = vld [vmem:[#allocation5 + $0x22c] sm:$0xf]
    %v260 = vld [vmem:[#allocation5 + $0x230] sm:$0xf]
    %v261 = vld [vmem:[#allocation5 + $0x234] sm:$0xf]
    %v262 = vld [vmem:[#allocation5 + $0x238] sm:$0xf]
    %v263 = vld [vmem:[#allocation5 + $0x23c] sm:$0xf]
    %v264 = vld [vmem:[#allocation5 + $0x240] sm:$0xf]
    %v265 = vld [vmem:[#allocation5 + $0x244] sm:$0xf]
    %v266 = vld [vmem:[#allocation5 + $0x248] sm:$0xf]
    %v267 = vld [vmem:[#allocation5 + $0x24c] sm:$0xf]
    %v268 = vld [vmem:[#allocation5 + $0x250] sm:$0xf]
    %v269 = vld [vmem:[#allocation5 + $0x254] sm:$0xf]
    %v270 = vld [vmem:[#allocation5 + $0x258] sm:$0xf]
    %v271 = vld [vmem:[#allocation5 + $0x25c] sm:$0xf]
    %v272 = vld [vmem:[#allocation5 + $0x260] sm:$0xf]
    %v273 = vld [vmem:[#allocation5 + $0x264] sm:$0xf]
    %v274 = vld [vmem:[#allocation5 + $0x268] sm:$0xf]
    %v275 = vld [vmem:[#allocation5 + $0x26c] sm:$0xf]
    %v276 = vld [vmem:[#allocation5 + $0x270] sm:$0xf]
    %v277 = vld [vmem:[#allocation5 + $0x274] sm:$0xf]
    %v278 = vld [vmem:[#allocation5 + $0x278] sm:$0xf]
    %v279 = vld [vmem:[#allocation5 + $0x27c] sm:$0xf]
    %v280 = vld [vmem:[#allocation5 + $0x280] sm:$0xf]
    %v281 = vld [vmem:[#allocation5 + $0x284] sm:$0xf]
    %v282 = vld [vmem:[#allocation5 + $0x288] sm:$0xf]
    %v283 = vld [vmem:[#allocation5 + $0x28c] sm:$0xf]
    %v284 = vld [vmem:[#allocation5 + $0x290] sm:$0xf]
    %v285 = vld [vmem:[#allocation5 + $0x294] sm:$0xf]
    %v286 = vld [vmem:[#allocation5 + $0x298] sm:$0xf]
    %v287 = vld [vmem:[#allocation5 + $0x29c] sm:$0xf]
    %v288 = vld [vmem:[#allocation5 + $0x2a0] sm:$0xf]
    %v289 = vld [vmem:[#allocation5 + $0x2a4] sm:$0xf]
    %v290 = vld [vmem:[#allocation5 + $0x2a8] sm:$0xf]
    %v291 = vld [vmem:[#allocation5 + $0x2ac] sm:$0xf]
    %v292 = vld [vmem:[#allocation5 + $0x2b0] sm:$0xf]
    %v293 = vld [vmem:[#allocation5 + $0x2b4] sm:$0xf]
    %v294 = vld [vmem:[#allocation5 + $0x2b8] sm:$0xf]
    %v295 = vld [vmem:[#allocation5 + $0x2bc] sm:$0xf]
    %v296 = vld [vmem:[#allocation5 + $0x2c0] sm:$0xf]
    %v297 = vld [vmem:[#allocation5 + $0x2c4] sm:$0xf]
    %v298 = vld [vmem:[#allocation5 + $0x2c8] sm:$0xf]
    %v299 = vld [vmem:[#allocation5 + $0x2cc] sm:$0xf]
    %v300 = vld [vmem:[#allocation5 + $0x2d0] sm:$0xf]
    %v301 = vld [vmem:[#allocation5 + $0x2d4] sm:$0xf]
    %v302 = vld [vmem:[#allocation5 + $0x2d8] sm:$0xf]
    %v303 = vld [vmem:[#allocation5 + $0x2dc] sm:$0xf]
    %v304 = vld [vmem:[#allocation5 + $0x2e0] sm:$0xf]
    %v305 = vld [vmem:[#allocation5 + $0x2e4] sm:$0xf]
    %v306 = vld [vmem:[#allocation5 + $0x2e8] sm:$0xf]
    %v307 = vld [vmem:[#allocation5 + $0x2ec] sm:$0xf]
    %v308 = vld [vmem:[#allocation5 + $0x2f0] sm:$0xf]
    %v309 = vld [vmem:[#allocation5 + $0x2f4] sm:$0xf]
    %v310 = vld [vmem:[#allocation5 + $0x2f8] sm:$0xf]
    %v311 = vld [vmem:[#allocation5 + $0x2fc] sm:$0xf]
    %v312 = vld [vmem:[#allocation5 + $0x300] sm:$0xf]
    %v313 = vld [vmem:[#allocation5 + $0x304] sm:$0xf]
    %v314 = vld [vmem:[#allocation5 + $0x308] sm:$0xf]
    %v315 = vld [vmem:[#allocation5 + $0x30c] sm:$0xf]
    %v316 = vld [vmem:[#allocation5 + $0x310] sm:$0xf]
    %v317 = vld [vmem:[#allocation5 + $0x314] sm:$0xf]
    %v318 = vld [vmem:[#allocation5 + $0x318] sm:$0xf]
    %v319 = vld [vmem:[#allocation5 + $0x31c] sm:$0xf]
    %v320 = vld [vmem:[#allocation5 + $0x320] sm:$0xf]
    %v321 = vld [vmem:[#allocation5 + $0x324] sm:$0xf]
    %v322 = vld [vmem:[#allocation5 + $0x328] sm:$0xf]
    %v323 = vld [vmem:[#allocation5 + $0x32c] sm:$0xf]
    %v324 = vld [vmem:[#allocation5 + $0x330] sm:$0xf]
    %v325 = vld [vmem:[#allocation5 + $0x334] sm:$0xf]
    %v326 = vld [vmem:[#allocation5 + $0x338] sm:$0xf]
    %v327 = vld [vmem:[#allocation5 + $0x33c] sm:$0xf]
    %v328 = vld [vmem:[#allocation5 + $0x340] sm:$0xf]
    %v329 = vld [vmem:[#allocation5 + $0x344] sm:$0xf]
    %v330 = vld [vmem:[#allocation5 + $0x348] sm:$0xf]
    %v331 = vld [vmem:[#allocation5 + $0x34c] sm:$0xf]
    %v332 = vld [vmem:[#allocation5 + $0x350] sm:$0xf]
    %v333 = vld [vmem:[#allocation5 + $0x354] sm:$0xf]
    %v334 = vld [vmem:[#allocation5 + $0x358] sm:$0xf]
    %v335 = vld [vmem:[#allocation5 + $0x35c] sm:$0xf]
    %v336 = vld [vmem:[#allocation5 + $0x360] sm:$0xf]
    %v337 = vld [vmem:[#allocation5 + $0x364] sm:$0xf]
    %v338 = vld [vmem:[#allocation5 + $0x368] sm:$0xf]
    %v339 = vld [vmem:[#allocation5 + $0x36c] sm:$0xf]
    %v340 = vld [vmem:[#allocation5 + $0x370] sm:$0xf]
    %v341 = vld [vmem:[#allocation5 + $0x374] sm:$0xf]
    %v342 = vld [vmem:[#allocation5 + $0x378] sm:$0xf]
    %v343 = vld [vmem:[#allocation5 + $0x37c] sm:$0xf]
    %v344 = vld [vmem:[#allocation5 + $0x380] sm:$0xf]
    %v345 = vld [vmem:[#allocation5 + $0x384] sm:$0xf]
    %v346 = vld [vmem:[#allocation5 + $0x388] sm:$0xf]
    %v347 = vld [vmem:[#allocation5 + $0x38c] sm:$0xf]
    %v348 = vld [vmem:[#allocation5 + $0x390] sm:$0xf]
    %v349 = vld [vmem:[#allocation5 + $0x394] sm:$0xf]
    %v350 = vld [vmem:[#allocation5 + $0x398] sm:$0xf]
    %v351 = vld [vmem:[#allocation5 + $0x39c] sm:$0xf]
    %v352 = vld [vmem:[#allocation5 + $0x3a0] sm:$0xf]
    %v353 = vld [vmem:[#allocation5 + $0x3a4] sm:$0xf]
    %v354 = vld [vmem:[#allocation5 + $0x3a8] sm:$0xf]
    %v355 = vld [vmem:[#allocation5 + $0x3ac] sm:$0xf]
    %v356 = vld [vmem:[#allocation5 + $0x3b0] sm:$0xf]
    %v357 = vld [vmem:[#allocation5 + $0x3b4] sm:$0xf]
    %v358 = vld [vmem:[#allocation5 + $0x3b8] sm:$0xf]
    %v359 = vld [vmem:[#allocation5 + $0x3bc] sm:$0xf]
    %v360 = vld [vmem:[#allocation5 + $0x3c0] sm:$0xf]
    %v361 = vld [vmem:[#allocation5 + $0x3c4] sm:$0xf]
    %v362 = vld [vmem:[#allocation5 + $0x3c8] sm:$0xf]
    %v363 = vld [vmem:[#allocation5 + $0x3cc] sm:$0xf]
    %v364 = vld [vmem:[#allocation5 + $0x3d0] sm:$0xf]
    %v365 = vld [vmem:[#allocation5 + $0x3d4] sm:$0xf]
    %v366 = vld [vmem:[#allocation5 + $0x3d8] sm:$0xf]
    %v367 = vld [vmem:[#allocation5 + $0x3dc] sm:$0xf]
    %v368 = vld [vmem:[#allocation5 + $0x3e0] sm:$0xf]
    %v369 = vld [vmem:[#allocation5 + $0x3e4] sm:$0xf]
    %v370 = vld [vmem:[#allocation5 + $0x3e8] sm:$0xf]
    %v371 = vld [vmem:[#allocation5 + $0x3ec] sm:$0xf]
    %v372 = vld [vmem:[#allocation5 + $0x3f0] sm:$0xf]
    %v373 = vld [vmem:[#allocation5 + $0x3f4] sm:$0xf]
    %v374 = vld [vmem:[#allocation5 + $0x3f8] sm:$0xf]
    %v375 = vld [vmem:[#allocation5 + $0x3fc] sm:$0xf]
    %v376 = vld [vmem:[#allocation5 + $0x400] sm:$0xf]
    %v377 = vld [vmem:[#allocation5 + $0x404] sm:$0xf]
    %v378 = vld [vmem:[#allocation5 + $0x408] sm:$0xf]
    %v379 = vld [vmem:[#allocation5 + $0x40c] sm:$0xf]
    %v380 = vld [vmem:[#allocation5 + $0x410] sm:$0xf]
    %v381 = vld [vmem:[#allocation5 + $0x414] sm:$0xf]
    %v382 = vld [vmem:[#allocation5 + $0x418] sm:$0xf]
    %v383 = vld [vmem:[#allocation5 + $0x41c] sm:$0xf]
    %v384 = vld [vmem:[#allocation5 + $0x420] sm:$0xf]
    %v385 = vld [vmem:[#allocation5 + $0x424] sm:$0xf]
    %v386 = vld [vmem:[#allocation5 + $0x428] sm:$0xf]
    %v387 = vld [vmem:[#allocation5 + $0x42c] sm:$0xf]
    %v388 = vld [vmem:[#allocation5 + $0x430] sm:$0xf]
    %v389 = vld [vmem:[#allocation5 + $0x434] sm:$0xf]
    %v390 = vld [vmem:[#allocation5 + $0x438] sm:$0xf]
    %v391 = vld [vmem:[#allocation5 + $0x43c] sm:$0xf]
    %v392 = vld [vmem:[#allocation5 + $0x440] sm:$0xf]
    %v393 = vld [vmem:[#allocation5 + $0x444] sm:$0xf]
    %v394 = vld [vmem:[#allocation5 + $0x448] sm:$0xf]
    %v395 = vld [vmem:[#allocation5 + $0x44c] sm:$0xf]
    %v396 = vld [vmem:[#allocation5 + $0x450] sm:$0xf]
    %v397 = vld [vmem:[#allocation5 + $0x454] sm:$0xf]
    %v398 = vld [vmem:[#allocation5 + $0x458] sm:$0xf]
    %v399 = vld [vmem:[#allocation5 + $0x45c] sm:$0xf]
    %v400 = vld [vmem:[#allocation5 + $0x460] sm:$0xf]
    %v401 = vld [vmem:[#allocation5 + $0x464] sm:$0xf]
    %v402 = vld [vmem:[#allocation5 + $0x468] sm:$0xf]
    %v403 = vld [vmem:[#allocation5 + $0x46c] sm:$0xf]
    %v404 = vld [vmem:[#allocation5 + $0x470] sm:$0xf]
    %v405 = vld [vmem:[#allocation5 + $0x474] sm:$0xf]
    %v406 = vld [vmem:[#allocation5 + $0x478] sm:$0xf]
    %v407 = vld [vmem:[#allocation5 + $0x47c] sm:$0xf]
    %v408 = vld [vmem:[#allocation5 + $0x480] sm:$0xf]
    %v409 = vld [vmem:[#allocation5 + $0x484] sm:$0xf]
    %v410 = vld [vmem:[#allocation5 + $0x488] sm:$0xf]
    %v411 = vld [vmem:[#allocation5 + $0x48c] sm:$0xf]
    %v412 = vld [vmem:[#allocation5 + $0x490] sm:$0xf]
    %v413 = vld [vmem:[#allocation5 + $0x494] sm:$0xf]
    %v414 = vld [vmem:[#allocation5 + $0x498] sm:$0xf]
    %v415 = vld [vmem:[#allocation5 + $0x49c] sm:$0xf]
    %v416 = vld [vmem:[#allocation5 + $0x4a0] sm:$0xf]
    %v417 = vld [vmem:[#allocation5 + $0x4a4] sm:$0xf]
    %v418 = vld [vmem:[#allocation5 + $0x4a8] sm:$0xf]
    %v419 = vld [vmem:[#allocation5 + $0x4ac] sm:$0xf]
    %v420 = vld [vmem:[#allocation5 + $0x4b0] sm:$0xf]
    %v421 = vld [vmem:[#allocation5 + $0x4b4] sm:$0xf]
    %v422 = vld [vmem:[#allocation5 + $0x4b8] sm:$0xf]
    %v423 = vld [vmem:[#allocation5 + $0x4bc] sm:$0xf]
    %v424 = vld [vmem:[#allocation5 + $0x4c0] sm:$0xf]
    %v425 = vld [vmem:[#allocation5 + $0x4c4] sm:$0xf]
    %v426 = vld [vmem:[#allocation5 + $0x4c8] sm:$0xf]
    %v427 = vld [vmem:[#allocation5 + $0x4cc] sm:$0xf]
    %v428 = vld [vmem:[#allocation5 + $0x4d0] sm:$0xf]
    %v429 = vld [vmem:[#allocation5 + $0x4d4] sm:$0xf]
    %v430 = vld [vmem:[#allocation5 + $0x4d8] sm:$0xf]
    %v431 = vld [vmem:[#allocation5 + $0x4dc] sm:$0xf]
    %v432 = vld [vmem:[#allocation5 + $0x4e0] sm:$0xf]
    %v433 = vld [vmem:[#allocation5 + $0x4e4] sm:$0xf]
    %v434 = vld [vmem:[#allocation5 + $0x4e8] sm:$0xf]
    %v435 = vld [vmem:[#allocation5 + $0x4ec] sm:$0xf]
    %v436 = vld [vmem:[#allocation5 + $0x4f0] sm:$0xf]
    %v437 = vld [vmem:[#allocation5 + $0x4f4] sm:$0xf]
    %v438 = vld [vmem:[#allocation5 + $0x4f8] sm:$0xf]
    %v439 = vld [vmem:[#allocation5 + $0x4fc] sm:$0xf]
    %v440 = vld [vmem:[#allocation5 + $0x500] sm:$0xf]
    %v441 = vld [vmem:[#allocation5 + $0x504] sm:$0xf]
    %v442 = vld [vmem:[#allocation5 + $0x508] sm:$0xf]
    %v443 = vld [vmem:[#allocation5 + $0x50c] sm:$0xf]
    %v444 = vld [vmem:[#allocation5 + $0x510] sm:$0xf]
    %v445 = vld [vmem:[#allocation5 + $0x514] sm:$0xf]
    %v446 = vld [vmem:[#allocation5 + $0x518] sm:$0xf]
    %v447 = vld [vmem:[#allocation5 + $0x51c] sm:$0xf]
    %v448 = vld [vmem:[#allocation5 + $0x520] sm:$0xf]
    %v449 = vld [vmem:[#allocation5 + $0x524] sm:$0xf]
    %v450 = vld [vmem:[#allocation5 + $0x528] sm:$0xf]
    %v451 = vld [vmem:[#allocation5 + $0x52c] sm:$0xf]
    %v452 = vld [vmem:[#allocation5 + $0x530] sm:$0xf]
    %v453 = vld [vmem:[#allocation5 + $0x534] sm:$0xf]
    %v454 = vld [vmem:[#allocation5 + $0x538] sm:$0xf]
    %v455 = vld [vmem:[#allocation5 + $0x53c] sm:$0xf]
    %v456 = vld [vmem:[#allocation5 + $0x540] sm:$0xf]
    %v457 = vld [vmem:[#allocation5 + $0x544] sm:$0xf]
    %v458 = vld [vmem:[#allocation5 + $0x548] sm:$0xf]
    %v459 = vld [vmem:[#allocation5 + $0x54c] sm:$0xf]
    %v460 = vld [vmem:[#allocation5 + $0x550] sm:$0xf]
    %v461 = vld [vmem:[#allocation5 + $0x554] sm:$0xf]
    %v462 = vld [vmem:[#allocation5 + $0x558] sm:$0xf]
    %v463 = vld [vmem:[#allocation5 + $0x55c] sm:$0xf]
    %v464 = vld [vmem:[#allocation5 + $0x560] sm:$0xf]
    %v465 = vld [vmem:[#allocation5 + $0x564] sm:$0xf]
    %v466 = vld [vmem:[#allocation5 + $0x568] sm:$0xf]
    %v467 = vld [vmem:[#allocation5 + $0x56c] sm:$0xf]
    %v468 = vld [vmem:[#allocation5 + $0x570] sm:$0xf]
    %v469 = vld [vmem:[#allocation5 + $0x574] sm:$0xf]
    %v470 = vld [vmem:[#allocation5 + $0x578] sm:$0xf]
    %v471 = vld [vmem:[#allocation5 + $0x57c] sm:$0xf]
    %v472 = vld [vmem:[#allocation5 + $0x580] sm:$0xf]
    %v473 = vld [vmem:[#allocation5 + $0x584] sm:$0xf]
    %v474 = vld [vmem:[#allocation5 + $0x588] sm:$0xf]
    %v475 = vld [vmem:[#allocation5 + $0x58c] sm:$0xf]
    %v476 = vld [vmem:[#allocation5 + $0x590] sm:$0xf]
    %v477 = vld [vmem:[#allocation5 + $0x594] sm:$0xf]
    %v478 = vld [vmem:[#allocation5 + $0x598] sm:$0xf]
    %v479 = vld [vmem:[#allocation5 + $0x59c] sm:$0xf]
    %v480 = vld [vmem:[#allocation5 + $0x5a0] sm:$0xf]
    %v481 = vld [vmem:[#allocation5 + $0x5a4] sm:$0xf]
    %v482 = vld [vmem:[#allocation5 + $0x5a8] sm:$0xf]
    %v483 = vld [vmem:[#allocation5 + $0x5ac] sm:$0xf]
    %v484 = vld [vmem:[#allocation5 + $0x5b0] sm:$0xf]
    %v485 = vld [vmem:[#allocation5 + $0x5b4] sm:$0xf]
    %v486 = vld [vmem:[#allocation5 + $0x5b8] sm:$0xf]
    %v487 = vld [vmem:[#allocation5 + $0x5bc] sm:$0xf]
    %v488 = vld [vmem:[#allocation5 + $0x5c0] sm:$0xf]
    %v489 = vld [vmem:[#allocation5 + $0x5c4] sm:$0xf]
    %v490 = vld [vmem:[#allocation5 + $0x5c8] sm:$0xf]
    %v491 = vld [vmem:[#allocation5 + $0x5cc] sm:$0xf]
    %v492 = vld [vmem:[#allocation5 + $0x5d0] sm:$0xf]
    %v493 = vld [vmem:[#allocation5 + $0x5d4] sm:$0xf]
    %v494 = vld [vmem:[#allocation5 + $0x5d8] sm:$0xf]
    %v495 = vld [vmem:[#allocation5 + $0x5dc] sm:$0xf]
    %v496 = vld [vmem:[#allocation5 + $0x5e0] sm:$0xf]
    %v497 = vld [vmem:[#allocation5 + $0x5e4] sm:$0xf]
    %v498 = vld [vmem:[#allocation5 + $0x5e8] sm:$0xf]
    %v499 = vld [vmem:[#allocation5 + $0x5ec] sm:$0xf]
    %v500 = vld [vmem:[#allocation5 + $0x5f0] sm:$0xf]
    %v501 = vld [vmem:[#allocation5 + $0x5f4] sm:$0xf]
    %v502 = vld [vmem:[#allocation5 + $0x5f8] sm:$0xf]
    %v503 = vld [vmem:[#allocation5 + $0x5fc] sm:$0xf]
    %v504 = vld [vmem:[#allocation5 + $0x600] sm:$0xf]
    %v505 = vld [vmem:[#allocation5 + $0x604] sm:$0xf]
    %v506 = vld [vmem:[#allocation5 + $0x608] sm:$0xf]
    %v507 = vld [vmem:[#allocation5 + $0x60c] sm:$0xf]
    %v508 = vld [vmem:[#allocation5 + $0x610] sm:$0xf]
    %v509 = vld [vmem:[#allocation5 + $0x614] sm:$0xf]
    %v510 = vld [vmem:[#allocation5 + $0x618] sm:$0xf]
    %v511 = vld [vmem:[#allocation5 + $0x61c] sm:$0xf]
    %v512 = vld [vmem:[#allocation5 + $0x620] sm:$0xf]
    %v513 = vld [vmem:[#allocation5 + $0x624] sm:$0xf]
    %v514 = vld [vmem:[#allocation5 + $0x628] sm:$0xf]
    %v515 = vld [vmem:[#allocation5 + $0x62c] sm:$0xf]
    %v516 = vld [vmem:[#allocation5 + $0x630] sm:$0xf]
    %v517 = vld [vmem:[#allocation5 + $0x634] sm:$0xf]
    %v518 = vld [vmem:[#allocation5 + $0x638] sm:$0xf]
    %v519 = vld [vmem:[#allocation5 + $0x63c] sm:$0xf]
    %v520 = vld [vmem:[#allocation5 + $0x640] sm:$0xf]
    %v521 = vld [vmem:[#allocation5 + $0x644] sm:$0xf]
    %v522 = vld [vmem:[#allocation5 + $0x648] sm:$0xf]
    %v523 = vld [vmem:[#allocation5 + $0x64c] sm:$0xf]
    %v524 = vld [vmem:[#allocation5 + $0x650] sm:$0xf]
    %v525 = vld [vmem:[#allocation5 + $0x654] sm:$0xf]
    %v526 = vld [vmem:[#allocation5 + $0x658] sm:$0xf]
    %v527 = vld [vmem:[#allocation5 + $0x65c] sm:$0xf]
    %v528 = vld [vmem:[#allocation5 + $0x660] sm:$0xf]
    %v529 = vld [vmem:[#allocation5 + $0x664] sm:$0xf]
    %v530 = vld [vmem:[#allocation5 + $0x668] sm:$0xf]
    %v531 = vld [vmem:[#allocation5 + $0x66c] sm:$0xf]
    %v532 = vld [vmem:[#allocation5 + $0x670] sm:$0xf]
    %v533 = vld [vmem:[#allocation5 + $0x674] sm:$0xf]
    %v534 = vld [vmem:[#allocation5 + $0x678] sm:$0xf]
    %v535 = vld [vmem:[#allocation5 + $0x67c] sm:$0xf]
    %v536 = vld [vmem:[#allocation5 + $0x680] sm:$0xf]
    %v537 = vld [vmem:[#allocation5 + $0x684] sm:$0xf]
    %v538 = vld [vmem:[#allocation5 + $0x688] sm:$0xf]
    %v539 = vld [vmem:[#allocation5 + $0x68c] sm:$0xf]
    %v540 = vld [vmem:[#allocation5 + $0x690] sm:$0xf]
    %v541 = vld [vmem:[#allocation5 + $0x694] sm:$0xf]
    %v542 = vld [vmem:[#allocation5 + $0x698] sm:$0xf]
    %v543 = vld [vmem:[#allocation5 + $0x69c] sm:$0xf]
    %v544 = vld [vmem:[#allocation5 + $0x6a0] sm:$0xf]
    %v545 = vld [vmem:[#allocation5 + $0x6a4] sm:$0xf]
    %v546 = vld [vmem:[#allocation5 + $0x6a8] sm:$0xf]
    %v547 = vld [vmem:[#allocation5 + $0x6ac] sm:$0xf]
    %v548 = vld [vmem:[#allocation5 + $0x6b0] sm:$0xf]
    %v549 = vld [vmem:[#allocation5 + $0x6b4] sm:$0xf]
    %v550 = vld [vmem:[#allocation5 + $0x6b8] sm:$0xf]
    %v551 = vld [vmem:[#allocation5 + $0x6bc] sm:$0xf]
    %v552 = vld [vmem:[#allocation5 + $0x6c0] sm:$0xf]
    %v553 = vld [vmem:[#allocation5 + $0x6c4] sm:$0xf]
    %v554 = vld [vmem:[#allocation5 + $0x6c8] sm:$0xf]
    %v555 = vld [vmem:[#allocation5 + $0x6cc] sm:$0xf]
    %v556 = vld [vmem:[#allocation5 + $0x6d0] sm:$0xf]
    %v557 = vld [vmem:[#allocation5 + $0x6d4] sm:$0xf]
    %v558 = vld [vmem:[#allocation5 + $0x6d8] sm:$0xf]
    %v559 = vld [vmem:[#allocation5 + $0x6dc] sm:$0xf]
    %v560 = vld [vmem:[#allocation5 + $0x6e0] sm:$0xf]
    %v561 = vld [vmem:[#allocation5 + $0x6e4] sm:$0xf]
    %v562 = vld [vmem:[#allocation5 + $0x6e8] sm:$0xf]
    %v563 = vld [vmem:[#allocation5 + $0x6ec] sm:$0xf]
    %v564 = vld [vmem:[#allocation5 + $0x6f0] sm:$0xf]
    %v565 = vld [vmem:[#allocation5 + $0x6f4] sm:$0xf]
    %v566 = vld [vmem:[#allocation5 + $0x6f8] sm:$0xf]
    %v567 = vld [vmem:[#allocation5 + $0x6fc] sm:$0xf]
    %v568 = vld [vmem:[#allocation5 + $0x700] sm:$0xf]
    %v569 = vld [vmem:[#allocation5 + $0x704] sm:$0xf]
    %v570 = vld [vmem:[#allocation5 + $0x708] sm:$0xf]
    %v571 = vld [vmem:[#allocation5 + $0x70c] sm:$0xf]
    %v572 = vld [vmem:[#allocation5 + $0x710] sm:$0xf]
    %v573 = vld [vmem:[#allocation5 + $0x714] sm:$0xf]
    %v574 = vld [vmem:[#allocation5 + $0x718] sm:$0xf]
    %v575 = vld [vmem:[#allocation5 + $0x71c] sm:$0xf]
    %v576 = vld [vmem:[#allocation5 + $0x720] sm:$0xf]
    %v577 = vld [vmem:[#allocation5 + $0x724] sm:$0xf]
    %v578 = vld [vmem:[#allocation5 + $0x728] sm:$0xf]
    %v579 = vld [vmem:[#allocation5 + $0x72c] sm:$0xf]
    %v580 = vld [vmem:[#allocation5 + $0x730] sm:$0xf]
    %v581 = vld [vmem:[#allocation5 + $0x734] sm:$0xf]
    %v582 = vld [vmem:[#allocation5 + $0x738] sm:$0xf]
    %v583 = vld [vmem:[#allocation5 + $0x73c] sm:$0xf]
    %v584 = vld [vmem:[#allocation5 + $0x740] sm:$0xf]
    %v585 = vld [vmem:[#allocation5 + $0x744] sm:$0xf]
    %v586 = vld [vmem:[#allocation5 + $0x748] sm:$0xf]
    %v587 = vld [vmem:[#allocation5 + $0x74c] sm:$0xf]
    %v588 = vld [vmem:[#allocation5 + $0x750] sm:$0xf]
    %v589 = vld [vmem:[#allocation5 + $0x754] sm:$0xf]
    %v590 = vld [vmem:[#allocation5 + $0x758] sm:$0xf]
    %v591 = vld [vmem:[#allocation5 + $0x75c] sm:$0xf]
    %v592 = vld [vmem:[#allocation5 + $0x760] sm:$0xf]
    %v593 = vld [vmem:[#allocation5 + $0x764] sm:$0xf]
    %v594 = vld [vmem:[#allocation5 + $0x768] sm:$0xf]
    %v595 = vld [vmem:[#allocation5 + $0x76c] sm:$0xf]
    %v596 = vld [vmem:[#allocation5 + $0x770] sm:$0xf]
    %v597 = vld [vmem:[#allocation5 + $0x774] sm:$0xf]
    %v598 = vld [vmem:[#allocation5 + $0x778] sm:$0xf]
    %v599 = vld [vmem:[#allocation5 + $0x77c] sm:$0xf]
    %v600 = vld [vmem:[#allocation5 + $0x780] sm:$0xf]
    %v601 = vld [vmem:[#allocation5 + $0x784] sm:$0xf]
    %v602 = vld [vmem:[#allocation5 + $0x788] sm:$0xf]
    %v603 = vld [vmem:[#allocation5 + $0x78c] sm:$0xf]
    %v604 = vld [vmem:[#allocation5 + $0x790] sm:$0xf]
    %v605 = vld [vmem:[#allocation5 + $0x794] sm:$0xf]
    %v606 = vld [vmem:[#allocation5 + $0x798] sm:$0xf]
    %v607 = vld [vmem:[#allocation5 + $0x79c] sm:$0xf]
    %v608 = vld [vmem:[#allocation5 + $0x7a0] sm:$0xf]
    %v609 = vld [vmem:[#allocation5 + $0x7a4] sm:$0xf]
    %v610 = vld [vmem:[#allocation5 + $0x7a8] sm:$0xf]
    %v611 = vld [vmem:[#allocation5 + $0x7ac] sm:$0xf]
    %v612 = vld [vmem:[#allocation5 + $0x7b0] sm:$0xf]
    %v613 = vld [vmem:[#allocation5 + $0x7b4] sm:$0xf]
    %v614 = vld [vmem:[#allocation5 + $0x7b8] sm:$0xf]
    %v615 = vld [vmem:[#allocation5 + $0x7bc] sm:$0xf]
    %v616 = vld [vmem:[#allocation5 + $0x7c0] sm:$0xf]
    %v617 = vld [vmem:[#allocation5 + $0x7c4] sm:$0xf]
    %v618 = vld [vmem:[#allocation5 + $0x7c8] sm:$0xf]
    %v619 = vld [vmem:[#allocation5 + $0x7cc] sm:$0xf]
    %v620 = vld [vmem:[#allocation5 + $0x7d0] sm:$0xf]
    %v621 = vld [vmem:[#allocation5 + $0x7d4] sm:$0xf]
    %v622 = vld [vmem:[#allocation5 + $0x7d8] sm:$0xf]
    %v623 = vld [vmem:[#allocation5 + $0x7dc] sm:$0xf]
    %v624 = vld [vmem:[#allocation5 + $0x7e0] sm:$0xf]
    %v625 = vld [vmem:[#allocation5 + $0x7e4] sm:$0xf]
    %v626 = vld [vmem:[#allocation5 + $0x7e8] sm:$0xf]
    %v627 = vld [vmem:[#allocation5 + $0x7ec] sm:$0xf]
    %v628 = vld [vmem:[#allocation5 + $0x7f0] sm:$0xf]
    %v629 = vld [vmem:[#allocation5 + $0x7f4] sm:$0xf]
    %v630 = vld [vmem:[#allocation5 + $0x7f8] sm:$0xf]
    %v631 = vld [vmem:[#allocation5 + $0x7fc] sm:$0xf]
    %v632 = vld [vmem:[#allocation5 + $0x800] sm:$0xf]
    %v633 = vld [vmem:[#allocation5 + $0x804] sm:$0xf]
    %v634 = vld [vmem:[#allocation5 + $0x808] sm:$0xf]
    %v635 = vld [vmem:[#allocation5 + $0x80c] sm:$0xf]
    %v636 = vld [vmem:[#allocation5 + $0x810] sm:$0xf]
    %v637 = vld [vmem:[#allocation5 + $0x814] sm:$0xf]
    %v638 = vld [vmem:[#allocation5 + $0x818] sm:$0xf]
    %v639 = vld [vmem:[#allocation5 + $0x81c] sm:$0xf]
    %v640 = vld [vmem:[#allocation5 + $0x820] sm:$0xf]
    %v641 = vld [vmem:[#allocation5 + $0x824] sm:$0xf]
    %v642 = vld [vmem:[#allocation5 + $0x828] sm:$0xf]
    %v643 = vld [vmem:[#allocation5 + $0x82c] sm:$0xf]
    %v644 = vld [vmem:[#allocation5 + $0x830] sm:$0xf]
    %v645 = vld [vmem:[#allocation5 + $0x834] sm:$0xf]
    %v646 = vld [vmem:[#allocation5 + $0x838] sm:$0xf]
    %v647 = vld [vmem:[#allocation5 + $0x83c] sm:$0xf]
    %v648 = vld [vmem:[#allocation5 + $0x840] sm:$0xf]
    %v649 = vld [vmem:[#allocation5 + $0x844] sm:$0xf]
    %v650 = vld [vmem:[#allocation5 + $0x848] sm:$0xf]
    %v651 = vld [vmem:[#allocation5 + $0x84c] sm:$0xf]
    %v652 = vld [vmem:[#allocation5 + $0x850] sm:$0xf]
    %v653 = vld [vmem:[#allocation5 + $0x854] sm:$0xf]
    %v654 = vld [vmem:[#allocation5 + $0x858] sm:$0xf]
    %v655 = vld [vmem:[#allocation5 + $0x85c] sm:$0xf]
    %v656 = vld [vmem:[#allocation5 + $0x860] sm:$0xf]
    %v657 = vld [vmem:[#allocation5 + $0x864] sm:$0xf]
    %v658 = vld [vmem:[#allocation5 + $0x868] sm:$0xf]
    %v659 = vld [vmem:[#allocation5 + $0x86c] sm:$0xf]
    %v660 = vld [vmem:[#allocation5 + $0x870] sm:$0xf]
    %v661 = vld [vmem:[#allocation5 + $0x874] sm:$0xf]
    %v662 = vld [vmem:[#allocation5 + $0x878] sm:$0xf]
    %v663 = vld [vmem:[#allocation5 + $0x87c] sm:$0xf]
    %v664 = vld [vmem:[#allocation5 + $0x880] sm:$0xf]
    %v665 = vld [vmem:[#allocation5 + $0x884] sm:$0xf]
    %v666 = vld [vmem:[#allocation5 + $0x888] sm:$0xf]
    %v667 = vld [vmem:[#allocation5 + $0x88c] sm:$0xf]
    %v668 = vld [vmem:[#allocation5 + $0x890] sm:$0xf]
    %v669 = vld [vmem:[#allocation5 + $0x894] sm:$0xf]
    %v670 = vld [vmem:[#allocation5 + $0x898] sm:$0xf]
    %v671 = vld [vmem:[#allocation5 + $0x89c] sm:$0xf]
    %v672 = vld [vmem:[#allocation5 + $0x8a0] sm:$0xf]
    %v673 = vld [vmem:[#allocation5 + $0x8a4] sm:$0xf]
    %v674 = vld [vmem:[#allocation5 + $0x8a8] sm:$0xf]
    %v675 = vld [vmem:[#allocation5 + $0x8ac] sm:$0xf]
    %v676 = vld [vmem:[#allocation5 + $0x8b0] sm:$0xf]
    %v677 = vld [vmem:[#allocation5 + $0x8b4] sm:$0xf]
    %v678 = vld [vmem:[#allocation5 + $0x8b8] sm:$0xf]
    %v679 = vld [vmem:[#allocation5 + $0x8bc] sm:$0xf]
    %v680 = vld [vmem:[#allocation5 + $0x8c0] sm:$0xf]
    %v681 = vld [vmem:[#allocation5 + $0x8c4] sm:$0xf]
    %v682 = vld [vmem:[#allocation5 + $0x8c8] sm:$0xf]
    %v683 = vld [vmem:[#allocation5 + $0x8cc] sm:$0xf]
    %v684 = vld [vmem:[#allocation5 + $0x8d0] sm:$0xf]
    %v685 = vld [vmem:[#allocation5 + $0x8d4] sm:$0xf]
    %v686 = vld [vmem:[#allocation5 + $0x8d8] sm:$0xf]
    %v687 = vld [vmem:[#allocation5 + $0x8dc] sm:$0xf]
    %v688 = vld [vmem:[#allocation5 + $0x8e0] sm:$0xf]
    %v689 = vld [vmem:[#allocation5 + $0x8e4] sm:$0xf]
    %v690 = vld [vmem:[#allocation5 + $0x8e8] sm:$0xf]
    %v691 = vld [vmem:[#allocation5 + $0x8ec] sm:$0xf]
    %v692 = vld [vmem:[#allocation5 + $0x8f0] sm:$0xf]
    %v693 = vld [vmem:[#allocation5 + $0x8f4] sm:$0xf]
    %v694 = vld [vmem:[#allocation5 + $0x8f8] sm:$0xf]
    %v695 = vld [vmem:[#allocation5 + $0x8fc] sm:$0xf]
    %v696 = vld [vmem:[#allocation5 + $0x900] sm:$0xf]
    %v697 = vld [vmem:[#allocation5 + $0x904] sm:$0xf]
    %v698 = vld [vmem:[#allocation5 + $0x908] sm:$0xf]
    %v699 = vld [vmem:[#allocation5 + $0x90c] sm:$0xf]
    %v700 = vld [vmem:[#allocation5 + $0x910] sm:$0xf]
    %v701 = vld [vmem:[#allocation5 + $0x914] sm:$0xf]
    %v702 = vld [vmem:[#allocation5 + $0x918] sm:$0xf]
    %v703 = vld [vmem:[#allocation5 + $0x91c] sm:$0xf]
    %v704 = vld [vmem:[#allocation5 + $0x920] sm:$0xf]
    %v705 = vld [vmem:[#allocation5 + $0x924] sm:$0xf]
    %v706 = vld [vmem:[#allocation5 + $0x928] sm:$0xf]
    %v707 = vld [vmem:[#allocation5 + $0x92c] sm:$0xf]
    %v708 = vld [vmem:[#allocation5 + $0x930] sm:$0xf]
    %v709 = vld [vmem:[#allocation5 + $0x934] sm:$0xf]
    %v710 = vld [vmem:[#allocation5 + $0x938] sm:$0xf]
    %v711 = vld [vmem:[#allocation5 + $0x93c] sm:$0xf]
    %v712 = vld [vmem:[#allocation5 + $0x940] sm:$0xf]
    %v713 = vld [vmem:[#allocation5 + $0x944] sm:$0xf]
    %v714 = vld [vmem:[#allocation5 + $0x948] sm:$0xf]
    %v715 = vld [vmem:[#allocation5 + $0x94c] sm:$0xf]
    %v716 = vld [vmem:[#allocation5 + $0x950] sm:$0xf]
    %v717 = vld [vmem:[#allocation5 + $0x954] sm:$0xf]
    %v718 = vld [vmem:[#allocation5 + $0x958] sm:$0xf]
    %v719 = vld [vmem:[#allocation5 + $0x95c] sm:$0xf]
    %v720 = vld [vmem:[#allocation5 + $0x960] sm:$0xf]
    %v721 = vld [vmem:[#allocation5 + $0x964] sm:$0xf]
    %v722 = vld [vmem:[#allocation5 + $0x968] sm:$0xf]
    %v723 = vld [vmem:[#allocation5 + $0x96c] sm:$0xf]
    %v724 = vld [vmem:[#allocation5 + $0x970] sm:$0xf]
    %v725 = vld [vmem:[#allocation5 + $0x974] sm:$0xf]
    %v726 = vld [vmem:[#allocation5 + $0x978] sm:$0xf]
    %v727 = vld [vmem:[#allocation5 + $0x97c] sm:$0xf]
    %v728 = vld [vmem:[#allocation5 + $0x980] sm:$0xf]
    %v729 = vld [vmem:[#allocation5 + $0x984] sm:$0xf]
    %v730 = vld [vmem:[#allocation5 + $0x988] sm:$0xf]
    %v731 = vld [vmem:[#allocation5 + $0x98c] sm:$0xf]
    %v732 = vld [vmem:[#allocation5 + $0x990] sm:$0xf]
    %v733 = vld [vmem:[#allocation5 + $0x994] sm:$0xf]
    %v734 = vld [vmem:[#allocation5 + $0x998] sm:$0xf]
    %v735 = vld [vmem:[#allocation5 + $0x99c] sm:$0xf]
    %v736 = vld [vmem:[#allocation5 + $0x9a0] sm:$0xf]
    %v737 = vld [vmem:[#allocation5 + $0x9a4] sm:$0xf]
    %v738 = vld [vmem:[#allocation5 + $0x9a8] sm:$0xf]
    %v739 = vld [vmem:[#allocation5 + $0x9ac] sm:$0xf]
    %v740 = vld [vmem:[#allocation5 + $0x9b0] sm:$0xf]
    %v741 = vld [vmem:[#allocation5 + $0x9b4] sm:$0xf]
    %v742 = vld [vmem:[#allocation5 + $0x9b8] sm:$0xf]
    %v743 = vld [vmem:[#allocation5 + $0x9bc] sm:$0xf]
    %v744 = vld [vmem:[#allocation5 + $0x9c0] sm:$0xf]
    %v745 = vld [vmem:[#allocation5 + $0x9c4] sm:$0xf]
    %v746 = vld [vmem:[#allocation5 + $0x9c8] sm:$0xf]
    %v747 = vld [vmem:[#allocation5 + $0x9cc] sm:$0xf]
    %v748 = vld [vmem:[#allocation5 + $0x9d0] sm:$0xf]
    %v749 = vld [vmem:[#allocation5 + $0x9d4] sm:$0xf]
    %v750 = vld [vmem:[#allocation5 + $0x9d8] sm:$0xf]
    %v751 = vld [vmem:[#allocation5 + $0x9dc] sm:$0xf]
    %v752 = vld [vmem:[#allocation5 + $0x9e0] sm:$0xf]
    %v753 = vld [vmem:[#allocation5 + $0x9e4] sm:$0xf]
    %v754 = vld [vmem:[#allocation5 + $0x9e8] sm:$0xf]
    %v755 = vld [vmem:[#allocation5 + $0x9ec] sm:$0xf]
    %v756 = vld [vmem:[#allocation5 + $0x9f0] sm:$0xf]
    %v757 = vld [vmem:[#allocation5 + $0x9f4] sm:$0xf]
    %v758 = vld [vmem:[#allocation5 + $0x9f8] sm:$0xf]
    %v759 = vld [vmem:[#allocation5 + $0x9fc] sm:$0xf]
    %v760 = vld [vmem:[#allocation5 + $0xa00] sm:$0xf]
    %v761 = vld [vmem:[#allocation5 + $0xa04] sm:$0xf]
    %v762 = vld [vmem:[#allocation5 + $0xa08] sm:$0xf]
    %v763 = vld [vmem:[#allocation5 + $0xa0c] sm:$0xf]
    %v764 = vld [vmem:[#allocation5 + $0xa10] sm:$0xf]
    %v765 = vld [vmem:[#allocation5 + $0xa14] sm:$0xf]
    %v766 = vld [vmem:[#allocation5 + $0xa18] sm:$0xf]
    %v767 = vld [vmem:[#allocation5 + $0xa1c] sm:$0xf]
    %v768 = vld [vmem:[#allocation5 + $0xa20] sm:$0xf]
    %v769 = vld [vmem:[#allocation5 + $0xa24] sm:$0xf]
    %v770 = vld [vmem:[#allocation5 + $0xa28] sm:$0xf]
    %v771 = vld [vmem:[#allocation5 + $0xa2c] sm:$0xf]
    %v772 = vld [vmem:[#allocation5 + $0xa30] sm:$0xf]
    %v773 = vld [vmem:[#allocation5 + $0xa34] sm:$0xf]
    %v774 = vld [vmem:[#allocation5 + $0xa38] sm:$0xf]
    %v775 = vld [vmem:[#allocation5 + $0xa3c] sm:$0xf]
    %v776 = vld [vmem:[#allocation5 + $0xa40] sm:$0xf]
    %v777 = vld [vmem:[#allocation5 + $0xa44] sm:$0xf]
    %v778 = vld [vmem:[#allocation5 + $0xa48] sm:$0xf]
    %v779 = vld [vmem:[#allocation5 + $0xa4c] sm:$0xf]
    %v780 = vld [vmem:[#allocation5 + $0xa50] sm:$0xf]
    %v781 = vld [vmem:[#allocation5 + $0xa54] sm:$0xf]
    %v782 = vld [vmem:[#allocation5 + $0xa58] sm:$0xf]
    %v783 = vld [vmem:[#allocation5 + $0xa5c] sm:$0xf]
    %v784 = vld [vmem:[#allocation5 + $0xa60] sm:$0xf]
    %v785 = vld [vmem:[#allocation5 + $0xa64] sm:$0xf]
    %v786 = vld [vmem:[#allocation5 + $0xa68] sm:$0xf]
    %v787 = vld [vmem:[#allocation5 + $0xa6c] sm:$0xf]
    %v788 = vld [vmem:[#allocation5 + $0xa70] sm:$0xf]
    %v789 = vld [vmem:[#allocation5 + $0xa74] sm:$0xf]
    %v790 = vld [vmem:[#allocation5 + $0xa78] sm:$0xf]
    %v791 = vld [vmem:[#allocation5 + $0xa7c] sm:$0xf]
    %v792 = vld [vmem:[#allocation5 + $0xa80] sm:$0xf]
    %v793 = vld [vmem:[#allocation5 + $0xa84] sm:$0xf]
    %v794 = vld [vmem:[#allocation5 + $0xa88] sm:$0xf]
    %v795 = vld [vmem:[#allocation5 + $0xa8c] sm:$0xf]
    %v796 = vld [vmem:[#allocation5 + $0xa90] sm:$0xf]
    %v797 = vld [vmem:[#allocation5 + $0xa94] sm:$0xf]
    %v798 = vld [vmem:[#allocation5 + $0xa98] sm:$0xf]
    %v799 = vld [vmem:[#allocation5 + $0xa9c] sm:$0xf]
    %v800 = vld [vmem:[#allocation5 + $0xaa0] sm:$0xf]
    %v801 = vld [vmem:[#allocation5 + $0xaa4] sm:$0xf]
    %v802 = vld [vmem:[#allocation5 + $0xaa8] sm:$0xf]
    %v803 = vld [vmem:[#allocation5 + $0xaac] sm:$0xf]
    %v804 = vld [vmem:[#allocation5 + $0xab0] sm:$0xf]
    %v805 = vld [vmem:[#allocation5 + $0xab4] sm:$0xf]
    %v806 = vld [vmem:[#allocation5 + $0xab8] sm:$0xf]
    %v807 = vld [vmem:[#allocation5 + $0xabc] sm:$0xf]
    %v808 = vld [vmem:[#allocation5 + $0xac0] sm:$0xf]
    %v809 = vld [vmem:[#allocation5 + $0xac4] sm:$0xf]
    %v810 = vld [vmem:[#allocation5 + $0xac8] sm:$0xf]
    %v811 = vld [vmem:[#allocation5 + $0xacc] sm:$0xf]
    %v812 = vld [vmem:[#allocation5 + $0xad0] sm:$0xf]
    %v813 = vld [vmem:[#allocation5 + $0xad4] sm:$0xf]
    %v814 = vld [vmem:[#allocation5 + $0xad8] sm:$0xf]
    %v815 = vld [vmem:[#allocation5 + $0xadc] sm:$0xf]
    %v816 = vld [vmem:[#allocation5 + $0xae0] sm:$0xf]
    %v817 = vld [vmem:[#allocation5 + $0xae4] sm:$0xf]
    %v818 = vld [vmem:[#allocation5 + $0xae8] sm:$0xf]
    %v819 = vld [vmem:[#allocation5 + $0xaec] sm:$0xf]
    %v820 = vld [vmem:[#allocation5 + $0xaf0] sm:$0xf]
    %v821 = vld [vmem:[#allocation5 + $0xaf4] sm:$0xf]
    %v822 = vld [vmem:[#allocation5 + $0xaf8] sm:$0xf]
    %v823 = vld [vmem:[#allocation5 + $0xafc] sm:$0xf]
    %v824 = vld [vmem:[#allocation5 + $0xb00] sm:$0xf]
    %v825 = vld [vmem:[#allocation5 + $0xb04] sm:$0xf]
    %v826 = vld [vmem:[#allocation5 + $0xb08] sm:$0xf]
    %v827 = vld [vmem:[#allocation5 + $0xb0c] sm:$0xf]
    %v828 = vld [vmem:[#allocation5 + $0xb10] sm:$0xf]
    %v829 = vld [vmem:[#allocation5 + $0xb14] sm:$0xf]
    %v830 = vld [vmem:[#allocation5 + $0xb18] sm:$0xf]
    %v831 = vld [vmem:[#allocation5 + $0xb1c] sm:$0xf]
    %v832 = vld [vmem:[#allocation5 + $0xb20] sm:$0xf]
    %v833 = vld [vmem:[#allocation5 + $0xb24] sm:$0xf]
    %v834 = vld [vmem:[#allocation5 + $0xb28] sm:$0xf]
    %v835 = vld [vmem:[#allocation5 + $0xb2c] sm:$0xf]
    %v836 = vld [vmem:[#allocation5 + $0xb30] sm:$0xf]
    %v837 = vld [vmem:[#allocation5 + $0xb34] sm:$0xf]
    %v838 = vld [vmem:[#allocation5 + $0xb38] sm:$0xf]
    %v839 = vld [vmem:[#allocation5 + $0xb3c] sm:$0xf]
    %v840 = vld [vmem:[#allocation5 + $0xb40] sm:$0xf]
    %v841 = vld [vmem:[#allocation5 + $0xb44] sm:$0xf]
    %v842 = vld [vmem:[#allocation5 + $0xb48] sm:$0xf]
    %v843 = vld [vmem:[#allocation5 + $0xb4c] sm:$0xf]
    %v844 = vld [vmem:[#allocation5 + $0xb50] sm:$0xf]
    %v845 = vld [vmem:[#allocation5 + $0xb54] sm:$0xf]
    %v846 = vld [vmem:[#allocation5 + $0xb58] sm:$0xf]
    %v847 = vld [vmem:[#allocation5 + $0xb5c] sm:$0xf]
    %v848 = vld [vmem:[#allocation5 + $0xb60] sm:$0xf]
    %v849 = vld [vmem:[#allocation5 + $0xb64] sm:$0xf]
    %v850 = vld [vmem:[#allocation5 + $0xb68] sm:$0xf]
    %v851 = vld [vmem:[#allocation5 + $0xb6c] sm:$0xf]
    %v852 = vld [vmem:[#allocation5 + $0xb70] sm:$0xf]
    %v853 = vld [vmem:[#allocation5 + $0xb74] sm:$0xf]
    %v854 = vld [vmem:[#allocation5 + $0xb78] sm:$0xf]
    %v855 = vld [vmem:[#allocation5 + $0xb7c] sm:$0xf]
    %v856 = vld [vmem:[#allocation5 + $0xb80] sm:$0xf]
    %v857 = vld [vmem:[#allocation5 + $0xb84] sm:$0xf]
    %v858 = vld [vmem:[#allocation5 + $0xb88] sm:$0xf]
    %v859 = vld [vmem:[#allocation5 + $0xb8c] sm:$0xf]
    %v860 = vld [vmem:[#allocation5 + $0xb90] sm:$0xf]
    %v861 = vld [vmem:[#allocation5 + $0xb94] sm:$0xf]
    %v862 = vld [vmem:[#allocation5 + $0xb98] sm:$0xf]
    %v863 = vld [vmem:[#allocation5 + $0xb9c] sm:$0xf]
    %v864 = vld [vmem:[#allocation5 + $0xba0] sm:$0xf]
    %v865 = vld [vmem:[#allocation5 + $0xba4] sm:$0xf]
    %v866 = vld [vmem:[#allocation5 + $0xba8] sm:$0xf]
    %v867 = vld [vmem:[#allocation5 + $0xbac] sm:$0xf]
    %v868 = vld [vmem:[#allocation5 + $0xbb0] sm:$0xf]
    %v869 = vld [vmem:[#allocation5 + $0xbb4] sm:$0xf]
    %v870 = vld [vmem:[#allocation5 + $0xbb8] sm:$0xf]
    %v871 = vld [vmem:[#allocation5 + $0xbbc] sm:$0xf]
    %v872 = vld [vmem:[#allocation5 + $0xbc0] sm:$0xf]
    %v873 = vld [vmem:[#allocation5 + $0xbc4] sm:$0xf]
    %v874 = vld [vmem:[#allocation5 + $0xbc8] sm:$0xf]
    %v875 = vld [vmem:[#allocation5 + $0xbcc] sm:$0xf]
    %v876 = vld [vmem:[#allocation5 + $0xbd0] sm:$0xf]
    %v877 = vld [vmem:[#allocation5 + $0xbd4] sm:$0xf]
    %v878 = vld [vmem:[#allocation5 + $0xbd8] sm:$0xf]
    %v879 = vld [vmem:[#allocation5 + $0xbdc] sm:$0xf]
    %v880 = vld [vmem:[#allocation5 + $0xbe0] sm:$0xf]
    %v881 = vld [vmem:[#allocation5 + $0xbe4] sm:$0xf]
    %v882 = vld [vmem:[#allocation5 + $0xbe8] sm:$0xf]
    %v883 = vld [vmem:[#allocation5 + $0xbec] sm:$0xf]
    %v884 = vld [vmem:[#allocation5 + $0xbf0] sm:$0xf]
    %v885 = vld [vmem:[#allocation5 + $0xbf4] sm:$0xf]
    %v886 = vld [vmem:[#allocation5 + $0xbf8] sm:$0xf]
    %v887 = vld [vmem:[#allocation5 + $0xbfc] sm:$0xf]
    %v888 = vld [vmem:[#allocation5 + $0xc00] sm:$0xf]
    %v889 = vld [vmem:[#allocation5 + $0xc04] sm:$0xf]
    %v890 = vld [vmem:[#allocation5 + $0xc08] sm:$0xf]
    %v891 = vld [vmem:[#allocation5 + $0xc0c] sm:$0xf]
    %v892 = vld [vmem:[#allocation5 + $0xc10] sm:$0xf]
    %v893 = vld [vmem:[#allocation5 + $0xc14] sm:$0xf]
    %v894 = vld [vmem:[#allocation5 + $0xc18] sm:$0xf]
    %v895 = vld [vmem:[#allocation5 + $0xc1c] sm:$0xf]
    %v896 = vld [vmem:[#allocation5 + $0xc20] sm:$0xf]
    %v897 = vld [vmem:[#allocation5 + $0xc24] sm:$0xf]
    %v898 = vld [vmem:[#allocation5 + $0xc28] sm:$0xf]
    %v899 = vld [vmem:[#allocation5 + $0xc2c] sm:$0xf]
    %v900 = vld [vmem:[#allocation5 + $0xc30] sm:$0xf]
    %v901 = vld [vmem:[#allocation5 + $0xc34] sm:$0xf]
    %v902 = vld [vmem:[#allocation5 + $0xc38] sm:$0xf]
    %v903 = vld [vmem:[#allocation5 + $0xc3c] sm:$0xf]
    %v904 = vld [vmem:[#allocation5 + $0xc40] sm:$0xf]
    %v905 = vld [vmem:[#allocation5 + $0xc44] sm:$0xf]
    %v906 = vld [vmem:[#allocation5 + $0xc48] sm:$0xf]
    %v907 = vld [vmem:[#allocation5 + $0xc4c] sm:$0xf]
    %v908 = vld [vmem:[#allocation5 + $0xc50] sm:$0xf]
    %v909 = vld [vmem:[#allocation5 + $0xc54] sm:$0xf]
    %v910 = vld [vmem:[#allocation5 + $0xc58] sm:$0xf]
    %v911 = vld [vmem:[#allocation5 + $0xc5c] sm:$0xf]
    %v912 = vld [vmem:[#allocation5 + $0xc60] sm:$0xf]
    %v913 = vld [vmem:[#allocation5 + $0xc64] sm:$0xf]
    %v914 = vld [vmem:[#allocation5 + $0xc68] sm:$0xf]
    %v915 = vld [vmem:[#allocation5 + $0xc6c] sm:$0xf]
    %v916 = vld [vmem:[#allocation5 + $0xc70] sm:$0xf]
    %v917 = vld [vmem:[#allocation5 + $0xc74] sm:$0xf]
    %v918 = vld [vmem:[#allocation5 + $0xc78] sm:$0xf]
    %v919 = vld [vmem:[#allocation5 + $0xc7c] sm:$0xf]
    %v920 = vld [vmem:[#allocation5 + $0xc80] sm:$0xf]
    %v921 = vld [vmem:[#allocation5 + $0xc84] sm:$0xf]
    %v922 = vld [vmem:[#allocation5 + $0xc88] sm:$0xf]
    %v923 = vld [vmem:[#allocation5 + $0xc8c] sm:$0xf]
    %v924 = vld [vmem:[#allocation5 + $0xc90] sm:$0xf]
    %v925 = vld [vmem:[#allocation5 + $0xc94] sm:$0xf]
    %v926 = vld [vmem:[#allocation5 + $0xc98] sm:$0xf]
    %v927 = vld [vmem:[#allocation5 + $0xc9c] sm:$0xf]
    %v928 = vld [vmem:[#allocation5 + $0xca0] sm:$0xf]
    %v929 = vld [vmem:[#allocation5 + $0xca4] sm:$0xf]
    %v930 = vld [vmem:[#allocation5 + $0xca8] sm:$0xf]
    %v931 = vld [vmem:[#allocation5 + $0xcac] sm:$0xf]
    %v932 = vld [vmem:[#allocation5 + $0xcb0] sm:$0xf]
    %v933 = vld [vmem:[#allocation5 + $0xcb4] sm:$0xf]
    %v934 = vld [vmem:[#allocation5 + $0xcb8] sm:$0xf]
    %v935 = vld [vmem:[#allocation5 + $0xcbc] sm:$0xf]
    %v936 = vld [vmem:[#allocation5 + $0xcc0] sm:$0xf]
    %v937 = vld [vmem:[#allocation5 + $0xcc4] sm:$0xf]
    %v938 = vld [vmem:[#allocation5 + $0xcc8] sm:$0xf]
    %v939 = vld [vmem:[#allocation5 + $0xccc] sm:$0xf]
    %v940 = vld [vmem:[#allocation5 + $0xcd0] sm:$0xf]
    %v941 = vld [vmem:[#allocation5 + $0xcd4] sm:$0xf]
    %v942 = vld [vmem:[#allocation5 + $0xcd8] sm:$0xf]
    %v943 = vld [vmem:[#allocation5 + $0xcdc] sm:$0xf]
    %v944 = vld [vmem:[#allocation5 + $0xce0] sm:$0xf]
    %v945 = vld [vmem:[#allocation5 + $0xce4] sm:$0xf]
    %v946 = vld [vmem:[#allocation5 + $0xce8] sm:$0xf]
    %v947 = vld [vmem:[#allocation5 + $0xcec] sm:$0xf]
    %v948 = vld [vmem:[#allocation5 + $0xcf0] sm:$0xf]
    %v949 = vld [vmem:[#allocation5 + $0xcf4] sm:$0xf]
    %v950 = vld [vmem:[#allocation5 + $0xcf8] sm:$0xf]
    %v951 = vld [vmem:[#allocation5 + $0xcfc] sm:$0xf]
    %v952 = vld [vmem:[#allocation5 + $0xd00] sm:$0xf]
    %v953 = vld [vmem:[#allocation5 + $0xd04] sm:$0xf]
    %v954 = vld [vmem:[#allocation5 + $0xd08] sm:$0xf]
    %v955 = vld [vmem:[#allocation5 + $0xd0c] sm:$0xf]
    %v956 = vld [vmem:[#allocation5 + $0xd10] sm:$0xf]
    %v957 = vld [vmem:[#allocation5 + $0xd14] sm:$0xf]
    %v958 = vld [vmem:[#allocation5 + $0xd18] sm:$0xf]
    %v959 = vld [vmem:[#allocation5 + $0xd1c] sm:$0xf]
    %v960 = vld [vmem:[#allocation5 + $0xd20] sm:$0xf]
    %v961 = vld [vmem:[#allocation5 + $0xd24] sm:$0xf]
    %v962 = vld [vmem:[#allocation5 + $0xd28] sm:$0xf]
    %v963 = vld [vmem:[#allocation5 + $0xd2c] sm:$0xf]
    %v964 = vld [vmem:[#allocation5 + $0xd30] sm:$0xf]
    %v965 = vld [vmem:[#allocation5 + $0xd34] sm:$0xf]
    %v966 = vld [vmem:[#allocation5 + $0xd38] sm:$0xf]
    %v967 = vld [vmem:[#allocation5 + $0xd3c] sm:$0xf]
    %v968 = vld [vmem:[#allocation5 + $0xd40] sm:$0xf]
    %v969 = vld [vmem:[#allocation5 + $0xd44] sm:$0xf]
    %v970 = vld [vmem:[#allocation5 + $0xd48] sm:$0xf]
    %v971 = vld [vmem:[#allocation5 + $0xd4c] sm:$0xf]
    %v972 = vld [vmem:[#allocation5 + $0xd50] sm:$0xf]
    %v973 = vld [vmem:[#allocation5 + $0xd54] sm:$0xf]
    %v974 = vld [vmem:[#allocation5 + $0xd58] sm:$0xf]
    %v975 = vld [vmem:[#allocation5 + $0xd5c] sm:$0xf]
    %v976 = vld [vmem:[#allocation5 + $0xd60] sm:$0xf]
    %v977 = vld [vmem:[#allocation5 + $0xd64] sm:$0xf]
    %v978 = vld [vmem:[#allocation5 + $0xd68] sm:$0xf]
    %v979 = vld [vmem:[#allocation5 + $0xd6c] sm:$0xf]
    %v980 = vld [vmem:[#allocation5 + $0xd70] sm:$0xf]
    %v981 = vld [vmem:[#allocation5 + $0xd74] sm:$0xf]
    %v982 = vld [vmem:[#allocation5 + $0xd78] sm:$0xf]
    %v983 = vld [vmem:[#allocation5 + $0xd7c] sm:$0xf]
    %v984 = vld [vmem:[#allocation5 + $0xd80] sm:$0xf]
    %v985 = vld [vmem:[#allocation5 + $0xd84] sm:$0xf]
    %v986 = vld [vmem:[#allocation5 + $0xd88] sm:$0xf]
    %v987 = vld [vmem:[#allocation5 + $0xd8c] sm:$0xf]
    %v988 = vld [vmem:[#allocation5 + $0xd90] sm:$0xf]
    %v989 = vld [vmem:[#allocation5 + $0xd94] sm:$0xf]
    %v990 = vld [vmem:[#allocation5 + $0xd98] sm:$0xf]
    %v991 = vld [vmem:[#allocation5 + $0xd9c] sm:$0xf]
    %v992 = vld [vmem:[#allocation5 + $0xda0] sm:$0xf]
    %v993 = vld [vmem:[#allocation5 + $0xda4] sm:$0xf]
    %v994 = vld [vmem:[#allocation5 + $0xda8] sm:$0xf]
    %v995 = vld [vmem:[#allocation5 + $0xdac] sm:$0xf]
    %v996 = vld [vmem:[#allocation5 + $0xdb0] sm:$0xf]
    %v997 = vld [vmem:[#allocation5 + $0xdb4] sm:$0xf]
    %v998 = vld [vmem:[#allocation5 + $0xdb8] sm:$0xf]
    %v999 = vld [vmem:[#allocation5 + $0xdbc] sm:$0xf]
    %v1000 = vld [vmem:[#allocation5 + $0xdc0] sm:$0xf]
    %v1001 = vld [vmem:[#allocation5 + $0xdc4] sm:$0xf]
    %v1002 = vld [vmem:[#allocation5 + $0xdc8] sm:$0xf]
    %v1003 = vld [vmem:[#allocation5 + $0xdcc] sm:$0xf]
    %v1004 = vld [vmem:[#allocation5 + $0xdd0] sm:$0xf]
    %v1005 = vld [vmem:[#allocation5 + $0xdd4] sm:$0xf]
    %v1006 = vld [vmem:[#allocation5 + $0xdd8] sm:$0xf]
    %v1007 = vld [vmem:[#allocation5 + $0xddc] sm:$0xf]
    %v1008 = vld [vmem:[#allocation5 + $0xde0] sm:$0xf]
    %v1009 = vld [vmem:[#allocation5 + $0xde4] sm:$0xf]
    %v1010 = vld [vmem:[#allocation5 + $0xde8] sm:$0xf]
    %v1011 = vld [vmem:[#allocation5 + $0xdec] sm:$0xf]
    %v1012 = vld [vmem:[#allocation5 + $0xdf0] sm:$0xf]
    %v1013 = vld [vmem:[#allocation5 + $0xdf4] sm:$0xf]
    %v1014 = vld [vmem:[#allocation5 + $0xdf8] sm:$0xf]
    %v1015 = vld [vmem:[#allocation5 + $0xdfc] sm:$0xf]
    %v1016 = vld [vmem:[#allocation5 + $0xe00] sm:$0xf]
    %v1017 = vld [vmem:[#allocation5 + $0xe04] sm:$0xf]
    %v1018 = vld [vmem:[#allocation5 + $0xe08] sm:$0xf]
    %v1019 = vld [vmem:[#allocation5 + $0xe0c] sm:$0xf]
    %v1020 = vld [vmem:[#allocation5 + $0xe10] sm:$0xf]
    %v1021 = vld [vmem:[#allocation5 + $0xe14] sm:$0xf]
    %v1022 = vld [vmem:[#allocation5 + $0xe18] sm:$0xf]
    %v1023 = vld [vmem:[#allocation5 + $0xe1c] sm:$0xf]
    %v1024 = vld [vmem:[#allocation5 + $0xe20] sm:$0xf]
    %v1025 = vld [vmem:[#allocation5 + $0xe24] sm:$0xf]
    %v1026 = vld [vmem:[#allocation5 + $0xe28] sm:$0xf]
    %v1027 = vld [vmem:[#allocation5 + $0xe2c] sm:$0xf]
    %v1028 = vld [vmem:[#allocation5 + $0xe30] sm:$0xf]
    %v1029 = vld [vmem:[#allocation5 + $0xe34] sm:$0xf]
    %v1030 = vld [vmem:[#allocation5 + $0xe38] sm:$0xf]
    %v1031 = vld [vmem:[#allocation5 + $0xe3c] sm:$0xf]
    %v1032 = vld [vmem:[#allocation5 + $0xe40] sm:$0xf]
    %v1033 = vld [vmem:[#allocation5 + $0xe44] sm:$0xf]
    %v1034 = vld [vmem:[#allocation5 + $0xe48] sm:$0xf]
    %v1035 = vld [vmem:[#allocation5 + $0xe4c] sm:$0xf]
    %v1036 = vld [vmem:[#allocation5 + $0xe50] sm:$0xf]
    %v1037 = vld [vmem:[#allocation5 + $0xe54] sm:$0xf]
    %v1038 = vld [vmem:[#allocation5 + $0xe58] sm:$0xf]
    %v1039 = vld [vmem:[#allocation5 + $0xe5c] sm:$0xf]
    %v1040 = vld [vmem:[#allocation5 + $0xe60] sm:$0xf]
    %v1041 = vld [vmem:[#allocation5 + $0xe64] sm:$0xf]
    %v1042 = vld [vmem:[#allocation5 + $0xe68] sm:$0xf]
    %v1043 = vld [vmem:[#allocation5 + $0xe6c] sm:$0xf]
    %v1044 = vld [vmem:[#allocation5 + $0xe70] sm:$0xf]
    %v1045 = vld [vmem:[#allocation5 + $0xe74] sm:$0xf]
    %v1046 = vld [vmem:[#allocation5 + $0xe78] sm:$0xf]
    %v1047 = vld [vmem:[#allocation5 + $0xe7c] sm:$0xf]
    %v1048 = vld [vmem:[#allocation5 + $0xe80] sm:$0xf]
    %v1049 = vld [vmem:[#allocation5 + $0xe84] sm:$0xf]
    %v1050 = vld [vmem:[#allocation5 + $0xe88] sm:$0xf]
    %v1051 = vld [vmem:[#allocation5 + $0xe8c] sm:$0xf]
    %v1052 = vld [vmem:[#allocation5 + $0xe90] sm:$0xf]
    %v1053 = vld [vmem:[#allocation5 + $0xe94] sm:$0xf]
    %v1054 = vld [vmem:[#allocation5 + $0xe98] sm:$0xf]
    %v1055 = vld [vmem:[#allocation5 + $0xe9c] sm:$0xf]
    %v1056 = vld [vmem:[#allocation5 + $0xea0] sm:$0xf]
    %v1057 = vld [vmem:[#allocation5 + $0xea4] sm:$0xf]
    %v1058 = vld [vmem:[#allocation5 + $0xea8] sm:$0xf]
    %v1059 = vld [vmem:[#allocation5 + $0xeac] sm:$0xf]
    %v1060 = vld [vmem:[#allocation5 + $0xeb0] sm:$0xf]
    %v1061 = vld [vmem:[#allocation5 + $0xeb4] sm:$0xf]
    %v1062 = vld [vmem:[#allocation5 + $0xeb8] sm:$0xf]
    %v1063 = vld [vmem:[#allocation5 + $0xebc] sm:$0xf]
    %v1064 = vld [vmem:[#allocation5 + $0xec0] sm:$0xf]
    %v1065 = vld [vmem:[#allocation5 + $0xec4] sm:$0xf]
    %v1066 = vld [vmem:[#allocation5 + $0xec8] sm:$0xf]
    %v1067 = vld [vmem:[#allocation5 + $0xecc] sm:$0xf]
    %v1068 = vld [vmem:[#allocation5 + $0xed0] sm:$0xf]
    %v1069 = vld [vmem:[#allocation5 + $0xed4] sm:$0xf]
    %v1070 = vld [vmem:[#allocation5 + $0xed8] sm:$0xf]
    %v1071 = vld [vmem:[#allocation5 + $0xedc] sm:$0xf]
    %v1072 = vld [vmem:[#allocation5 + $0xee0] sm:$0xf]
    %v1073 = vld [vmem:[#allocation5 + $0xee4] sm:$0xf]
    %v1074 = vld [vmem:[#allocation5 + $0xee8] sm:$0xf]
    %v1075 = vld [vmem:[#allocation5 + $0xeec] sm:$0xf]
    %v1076 = vld [vmem:[#allocation5 + $0xef0] sm:$0xf]
    %v1077 = vld [vmem:[#allocation5 + $0xef4] sm:$0xf]
    %v1078 = vld [vmem:[#allocation5 + $0xef8] sm:$0xf]
    %v1079 = vld [vmem:[#allocation5 + $0xefc] sm:$0xf]
    %v1080 = vld [vmem:[#allocation5 + $0xf00] sm:$0xf]
    %v1081 = vld [vmem:[#allocation5 + $0xf04] sm:$0xf]
    %v1082 = vld [vmem:[#allocation5 + $0xf08] sm:$0xf]
    %v1083 = vld [vmem:[#allocation5 + $0xf0c] sm:$0xf]
    %v1084 = vld [vmem:[#allocation5 + $0xf10] sm:$0xf]
    %v1085 = vld [vmem:[#allocation5 + $0xf14] sm:$0xf]
    %v1086 = vld [vmem:[#allocation5 + $0xf18] sm:$0xf]
    %v1087 = vld [vmem:[#allocation5 + $0xf1c] sm:$0xf]
    %v1088 = vld [vmem:[#allocation5 + $0xf20] sm:$0xf]
    %v1089 = vld [vmem:[#allocation5 + $0xf24] sm:$0xf]
    %v1090 = vld [vmem:[#allocation5 + $0xf28] sm:$0xf]
    %v1091 = vld [vmem:[#allocation5 + $0xf2c] sm:$0xf]
    %v1092 = vld [vmem:[#allocation5 + $0xf30] sm:$0xf]
    %v1093 = vld [vmem:[#allocation5 + $0xf34] sm:$0xf]
    %v1094 = vld [vmem:[#allocation5 + $0xf38] sm:$0xf]
    %v1095 = vld [vmem:[#allocation5 + $0xf3c] sm:$0xf]
    %v1096 = vld [vmem:[#allocation5 + $0xf40] sm:$0xf]
    %v1097 = vld [vmem:[#allocation5 + $0xf44] sm:$0xf]
    %v1098 = vld [vmem:[#allocation5 + $0xf48] sm:$0xf]
    %v1099 = vld [vmem:[#allocation5 + $0xf4c] sm:$0xf]
    %v1100 = vld [vmem:[#allocation5 + $0xf50] sm:$0xf]
    %v1101 = vld [vmem:[#allocation5 + $0xf54] sm:$0xf]
    %v1102 = vld [vmem:[#allocation5 + $0xf58] sm:$0xf]
    %v1103 = vld [vmem:[#allocation5 + $0xf5c] sm:$0xf]
    %v1104 = vld [vmem:[#allocation5 + $0xf60] sm:$0xf]
    %v1105 = vld [vmem:[#allocation5 + $0xf64] sm:$0xf]
    %v1106 = vld [vmem:[#allocation5 + $0xf68] sm:$0xf]
    %v1107 = vld [vmem:[#allocation5 + $0xf6c] sm:$0xf]
    %v1108 = vld [vmem:[#allocation5 + $0xf70] sm:$0xf]
    %v1109 = vld [vmem:[#allocation5 + $0xf74] sm:$0xf]
    %v1110 = vld [vmem:[#allocation5 + $0xf78] sm:$0xf]
    %v1111 = vld [vmem:[#allocation5 + $0xf7c] sm:$0xf]
    %v1112 = vld [vmem:[#allocation5 + $0xf80] sm:$0xf]
    %v1113 = vld [vmem:[#allocation5 + $0xf84] sm:$0xf]
    %v1114 = vld [vmem:[#allocation5 + $0xf88] sm:$0xf]
    %v1115 = vld [vmem:[#allocation5 + $0xf8c] sm:$0xf]
    %v1116 = vld [vmem:[#allocation5 + $0xf90] sm:$0xf]
    %v1117 = vld [vmem:[#allocation5 + $0xf94] sm:$0xf]
    %v1118 = vld [vmem:[#allocation5 + $0xf98] sm:$0xf]
    %v1119 = vld [vmem:[#allocation5 + $0xf9c] sm:$0xf]
    %v1120 = vld [vmem:[#allocation5 + $0xfa0] sm:$0xf]
    %v1121 = vld [vmem:[#allocation5 + $0xfa4] sm:$0xf]
    %v1122 = vld [vmem:[#allocation5 + $0xfa8] sm:$0xf]
    %v1123 = vld [vmem:[#allocation5 + $0xfac] sm:$0xf]
    %v1124 = vld [vmem:[#allocation5 + $0xfb0] sm:$0xf]
    %v1125 = vld [vmem:[#allocation5 + $0xfb4] sm:$0xf]
    %v1126 = vld [vmem:[#allocation5 + $0xfb8] sm:$0xf]
    %v1127 = vld [vmem:[#allocation5 + $0xfbc] sm:$0xf]
    %v1128 = vld [vmem:[#allocation5 + $0xfc0] sm:$0xf]
    %v1129 = vld [vmem:[#allocation5 + $0xfc4] sm:$0xf]
    %v1130 = vld [vmem:[#allocation5 + $0xfc8] sm:$0xf]
    %v1131 = vld [vmem:[#allocation5 + $0xfcc] sm:$0xf]
    %v1132 = vld [vmem:[#allocation5 + $0xfd0] sm:$0xf]
    %v1133 = vld [vmem:[#allocation5 + $0xfd4] sm:$0xf]
    %v1134 = vld [vmem:[#allocation5 + $0xfd8] sm:$0xf]
    %v1135 = vld [vmem:[#allocation5 + $0xfdc] sm:$0xf]
    %v1136 = vld [vmem:[#allocation5 + $0xfe0] sm:$0xf]
    %v1137 = vld [vmem:[#allocation5 + $0xfe4] sm:$0xf]
    %v1138 = vld [vmem:[#allocation5 + $0xfe8] sm:$0xf]
    %v1139 = vld [vmem:[#allocation5 + $0xfec] sm:$0xf]
    %v1140 = vld [vmem:[#allocation5 + $0xff0] sm:$0xf]
    %v1141 = vld [vmem:[#allocation5 + $0xff4] sm:$0xf]
    %v1142 = vld [vmem:[#allocation5 + $0xff8] sm:$0xf]
    %v1143 = vld [vmem:[#allocation5 + $0xffc] sm:$0xf]
    %v1144 = vld [vmem:[#allocation7] sm:$0x1]
    %v1146 = vlaneseq
    %v1147 = vshrl.u32 %v1146, 7
    %v1148 = vsub.s32 0, %v1147
    %v1149 = vrot.slane %v1144, %v1148
    %v1183 = vunpack.c.l.b16 %v88
    %v1184 = vunpack.c.h.b16 %v88
    %v1185 = vunpack.c.l.b16 %v89
    %v1186 = vunpack.c.h.b16 %v89
    %v1187 = vunpack.c.l.b16 %v90
    %v1188 = vunpack.c.h.b16 %v90
    %v1189 = vunpack.c.l.b16 %v91
    %v1190 = vunpack.c.h.b16 %v91
    %v1191 = vunpack.c.l.b16 %v92
    %v1192 = vunpack.c.h.b16 %v92
    %v1193 = vunpack.c.l.b16 %v93
    %v1194 = vunpack.c.h.b16 %v93
    %v1195 = vunpack.c.l.b16 %v94
    %v1196 = vunpack.c.h.b16 %v94
    %v1197 = vunpack.c.l.b16 %v95
    %v1198 = vunpack.c.h.b16 %v95
    %v1199 = vunpack.c.l.b16 %v96
    %v1200 = vunpack.c.h.b16 %v96
    %v1201 = vunpack.c.l.b16 %v97
    %v1202 = vunpack.c.h.b16 %v97
    %v1203 = vunpack.c.l.b16 %v98
    %v1204 = vunpack.c.h.b16 %v98
    %v1205 = vunpack.c.l.b16 %v99
    %v1206 = vunpack.c.h.b16 %v99
    %v1207 = vunpack.c.l.b16 %v100
    %v1208 = vunpack.c.h.b16 %v100
    %v1209 = vunpack.c.l.b16 %v101
    %v1210 = vunpack.c.h.b16 %v101
    %v1211 = vunpack.c.l.b16 %v102
    %v1212 = vunpack.c.h.b16 %v102
    %v1213 = vunpack.c.l.b16 %v103
    %v1214 = vunpack.c.h.b16 %v103
    %v1215 = vunpack.c.l.b16 %v104
    %v1216 = vunpack.c.h.b16 %v104
    %v1217 = vunpack.c.l.b16 %v105
    %v1218 = vunpack.c.h.b16 %v105
    %v1219 = vunpack.c.l.b16 %v106
    %v1220 = vunpack.c.h.b16 %v106
    %v1221 = vunpack.c.l.b16 %v107
    %v1222 = vunpack.c.h.b16 %v107
    %v1223 = vunpack.c.l.b16 %v108
    %v1224 = vunpack.c.h.b16 %v108
    %v1225 = vunpack.c.l.b16 %v109
    %v1226 = vunpack.c.h.b16 %v109
    %v1227 = vunpack.c.l.b16 %v110
    %v1228 = vunpack.c.h.b16 %v110
    %v1229 = vunpack.c.l.b16 %v111
    %v1230 = vunpack.c.h.b16 %v111
    %v1231 = vunpack.c.l.b16 %v112
    %v1232 = vunpack.c.h.b16 %v112
    %v1233 = vunpack.c.l.b16 %v113
    %v1234 = vunpack.c.h.b16 %v113
    %v1235 = vunpack.c.l.b16 %v114
    %v1236 = vunpack.c.h.b16 %v114
    %v1237 = vunpack.c.l.b16 %v115
    %v1238 = vunpack.c.h.b16 %v115
    %v1239 = vunpack.c.l.b16 %v116
    %v1240 = vunpack.c.h.b16 %v116
    %v1241 = vunpack.c.l.b16 %v117
    %v1242 = vunpack.c.h.b16 %v117
    %v1243 = vunpack.c.l.b16 %v118
    %v1244 = vunpack.c.h.b16 %v118
    %v1245 = vunpack.c.l.b16 %v119
    %v1246 = vunpack.c.h.b16 %v119
    %v1247 = vpack.c.b16 %v1183, %v1183
    %v1248 = vpack.c.b16 %v1184, %v1184
    %v1249 = vpack.c.b16 %v1185, %v1185
    %v1250 = vpack.c.b16 %v1186, %v1186
    %v1251 = vpack.c.b16 %v1187, %v1187
    %v1252 = vpack.c.b16 %v1188, %v1188
    %v1253 = vpack.c.b16 %v1189, %v1189
    %v1254 = vpack.c.b16 %v1190, %v1190
    %v1255 = vpack.c.b16 %v1191, %v1191
    %v1256 = vpack.c.b16 %v1192, %v1192
    %v1257 = vpack.c.b16 %v1193, %v1193
    %v1258 = vpack.c.b16 %v1194, %v1194
    %v1259 = vpack.c.b16 %v1195, %v1195
    %v1260 = vpack.c.b16 %v1196, %v1196
    %v1261 = vpack.c.b16 %v1197, %v1197
    %v1262 = vpack.c.b16 %v1198, %v1198
    %v1263 = vpack.c.b16 %v1199, %v1199
    %v1264 = vpack.c.b16 %v1200, %v1200
    %v1265 = vpack.c.b16 %v1201, %v1201
    %v1266 = vpack.c.b16 %v1202, %v1202
    %v1267 = vpack.c.b16 %v1203, %v1203
    %v1268 = vpack.c.b16 %v1204, %v1204
    %v1269 = vpack.c.b16 %v1205, %v1205
    %v1270 = vpack.c.b16 %v1206, %v1206
    %v1271 = vpack.c.b16 %v1207, %v1207
    %v1272 = vpack.c.b16 %v1208, %v1208
    %v1273 = vpack.c.b16 %v1209, %v1209
    %v1274 = vpack.c.b16 %v1210, %v1210
    %v1275 = vpack.c.b16 %v1211, %v1211
    %v1276 = vpack.c.b16 %v1212, %v1212
    %v1277 = vpack.c.b16 %v1213, %v1213
    %v1278 = vpack.c.b16 %v1214, %v1214
    %v1279 = vpack.c.b16 %v1215, %v1215
    %v1280 = vpack.c.b16 %v1216, %v1216
    %v1281 = vpack.c.b16 %v1217, %v1217
    %v1282 = vpack.c.b16 %v1218, %v1218
    %v1283 = vpack.c.b16 %v1219, %v1219
    %v1284 = vpack.c.b16 %v1220, %v1220
    %v1285 = vpack.c.b16 %v1221, %v1221
    %v1286 = vpack.c.b16 %v1222, %v1222
    %v1287 = vpack.c.b16 %v1223, %v1223
    %v1288 = vpack.c.b16 %v1224, %v1224
    %v1289 = vpack.c.b16 %v1225, %v1225
    %v1290 = vpack.c.b16 %v1226, %v1226
    %v1291 = vpack.c.b16 %v1227, %v1227
    %v1292 = vpack.c.b16 %v1228, %v1228
    %v1293 = vpack.c.b16 %v1229, %v1229
    %v1294 = vpack.c.b16 %v1230, %v1230
    %v1295 = vpack.c.b16 %v1231, %v1231
    %v1296 = vpack.c.b16 %v1232, %v1232
    %v1297 = vpack.c.b16 %v1233, %v1233
    %v1298 = vpack.c.b16 %v1234, %v1234
    %v1299 = vpack.c.b16 %v1235, %v1235
    %v1300 = vpack.c.b16 %v1236, %v1236
    %v1301 = vpack.c.b16 %v1237, %v1237
    %v1302 = vpack.c.b16 %v1238, %v1238
    %v1303 = vpack.c.b16 %v1239, %v1239
    %v1304 = vpack.c.b16 %v1240, %v1240
    %v1305 = vpack.c.b16 %v1241, %v1241
    %v1306 = vpack.c.b16 %v1242, %v1242
    %v1307 = vpack.c.b16 %v1243, %v1243
    %v1308 = vpack.c.b16 %v1244, %v1244
    %v1309 = vpack.c.b16 %v1245, %v1245
    %v1310 = vpack.c.b16 %v1246, %v1246
    %v2399 = vunpack.c.l.b16 %v120
    %v2400 = vunpack.c.l.b16 %v121
    %v2401 = vunpack.c.l.b16 %v122
    %v2402 = vunpack.c.l.b16 %v123
    %v2403 = vunpack.c.l.b16 %v124
    %v2404 = vunpack.c.l.b16 %v125
    %v2405 = vunpack.c.l.b16 %v126
    %v2406 = vunpack.c.l.b16 %v127
    %v2407 = vunpack.c.l.b16 %v128
    %v2408 = vunpack.c.l.b16 %v129
    %v2409 = vunpack.c.l.b16 %v130
    %v2410 = vunpack.c.l.b16 %v131
    %v2411 = vunpack.c.l.b16 %v132
    %v2412 = vunpack.c.l.b16 %v133
    %v2413 = vunpack.c.l.b16 %v134
    %v2414 = vunpack.c.l.b16 %v135
    %v2415 = vunpack.c.l.b16 %v136
    %v2416 = vunpack.c.l.b16 %v137
    %v2417 = vunpack.c.l.b16 %v138
    %v2418 = vunpack.c.l.b16 %v139
    %v2419 = vunpack.c.l.b16 %v140
    %v2420 = vunpack.c.l.b16 %v141
    %v2421 = vunpack.c.l.b16 %v142
    %v2422 = vunpack.c.l.b16 %v143
    %v2423 = vunpack.c.l.b16 %v144
    %v2424 = vunpack.c.l.b16 %v145
    %v2425 = vunpack.c.l.b16 %v146
    %v2426 = vunpack.c.l.b16 %v147
    %v2427 = vunpack.c.l.b16 %v148
    %v2428 = vunpack.c.l.b16 %v149
    %v2429 = vunpack.c.l.b16 %v150
    %v2430 = vunpack.c.l.b16 %v151
    %v2431 = vunpack.c.l.b16 %v152
    %v2432 = vunpack.c.l.b16 %v153
    %v2433 = vunpack.c.l.b16 %v154
    %v2434 = vunpack.c.l.b16 %v155
    %v2435 = vunpack.c.l.b16 %v156
    %v2436 = vunpack.c.l.b16 %v157
    %v2437 = vunpack.c.l.b16 %v158
    %v2438 = vunpack.c.l.b16 %v159
    %v2439 = vunpack.c.l.b16 %v160
    %v2440 = vunpack.c.l.b16 %v161
    %v2441 = vunpack.c.l.b16 %v162
    %v2442 = vunpack.c.l.b16 %v163
    %v2443 = vunpack.c.l.b16 %v164
    %v2444 = vunpack.c.l.b16 %v165
    %v2445 = vunpack.c.l.b16 %v166
    %v2446 = vunpack.c.l.b16 %v167
    %v2447 = vunpack.c.l.b16 %v168
    %v2448 = vunpack.c.l.b16 %v169
    %v2449 = vunpack.c.l.b16 %v170
    %v2450 = vunpack.c.l.b16 %v171
    %v2451 = vunpack.c.l.b16 %v172
    %v2452 = vunpack.c.l.b16 %v173
    %v2453 = vunpack.c.l.b16 %v174
    %v2454 = vunpack.c.l.b16 %v175
    %v2455 = vunpack.c.l.b16 %v176
    %v2456 = vunpack.c.l.b16 %v177
    %v2457 = vunpack.c.l.b16 %v178
    %v2458 = vunpack.c.l.b16 %v179
    %v2459 = vunpack.c.l.b16 %v180
    %v2460 = vunpack.c.l.b16 %v181
    %v2461 = vunpack.c.l.b16 %v182
    %v2462 = vunpack.c.l.b16 %v183
    %v2463 = vunpack.c.l.b16 %v184
    %v2464 = vunpack.c.l.b16 %v185
    %v2465 = vunpack.c.l.b16 %v186
    %v2466 = vunpack.c.l.b16 %v187
    %v2467 = vunpack.c.l.b16 %v188
    %v2468 = vunpack.c.l.b16 %v189
    %v2469 = vunpack.c.l.b16 %v190
    %v2470 = vunpack.c.l.b16 %v191
    %v2471 = vunpack.c.l.b16 %v192
    %v2472 = vunpack.c.l.b16 %v193
    %v2473 = vunpack.c.l.b16 %v194
    %v2474 = vunpack.c.l.b16 %v195
    %v2475 = vunpack.c.l.b16 %v196
    %v2476 = vunpack.c.l.b16 %v197
    %v2477 = vunpack.c.l.b16 %v198
    %v2478 = vunpack.c.l.b16 %v199
    %v2479 = vunpack.c.l.b16 %v200
    %v2480 = vunpack.c.l.b16 %v201
    %v2481 = vunpack.c.l.b16 %v202
    %v2482 = vunpack.c.l.b16 %v203
    %v2483 = vunpack.c.l.b16 %v204
    %v2484 = vunpack.c.l.b16 %v205
    %v2485 = vunpack.c.l.b16 %v206
    %v2486 = vunpack.c.l.b16 %v207
    %v2487 = vunpack.c.l.b16 %v208
    %v2488 = vunpack.c.l.b16 %v209
    %v2489 = vunpack.c.l.b16 %v210
    %v2490 = vunpack.c.l.b16 %v211
    %v2491 = vunpack.c.l.b16 %v212
    %v2492 = vunpack.c.l.b16 %v213
    %v2493 = vunpack.c.l.b16 %v214
    %v2494 = vunpack.c.l.b16 %v215
    %v2495 = vunpack.c.l.b16 %v216
    %v2496 = vunpack.c.l.b16 %v217
    %v2497 = vunpack.c.l.b16 %v218
    %v2498 = vunpack.c.l.b16 %v219
    %v2499 = vunpack.c.l.b16 %v220
    %v2500 = vunpack.c.l.b16 %v221
    %v2501 = vunpack.c.l.b16 %v222
    %v2502 = vunpack.c.l.b16 %v223
    %v2503 = vunpack.c.l.b16 %v224
    %v2504 = vunpack.c.l.b16 %v225
    %v2505 = vunpack.c.l.b16 %v226
    %v2506 = vunpack.c.l.b16 %v227
    %v2507 = vunpack.c.l.b16 %v228
    %v2508 = vunpack.c.l.b16 %v229
    %v2509 = vunpack.c.l.b16 %v230
    %v2510 = vunpack.c.l.b16 %v231
    %v2511 = vunpack.c.l.b16 %v232
    %v2512 = vunpack.c.l.b16 %v233
    %v2513 = vunpack.c.l.b16 %v234
    %v2514 = vunpack.c.l.b16 %v235
    %v2515 = vunpack.c.l.b16 %v236
    %v2516 = vunpack.c.l.b16 %v237
    %v2517 = vunpack.c.l.b16 %v238
    %v2518 = vunpack.c.l.b16 %v239
    %v2519 = vunpack.c.l.b16 %v240
    %v2520 = vunpack.c.l.b16 %v241
    %v2521 = vunpack.c.l.b16 %v242
    %v2522 = vunpack.c.l.b16 %v243
    %v2523 = vunpack.c.l.b16 %v244
    %v2524 = vunpack.c.l.b16 %v245
    %v2525 = vunpack.c.l.b16 %v246
    %v2526 = vunpack.c.l.b16 %v247
    %v2527 = vunpack.c.l.b16 %v248
    %v2528 = vunpack.c.l.b16 %v249
    %v2529 = vunpack.c.l.b16 %v250
    %v2530 = vunpack.c.l.b16 %v251
    %v2531 = vunpack.c.l.b16 %v252
    %v2532 = vunpack.c.l.b16 %v253
    %v2533 = vunpack.c.l.b16 %v254
    %v2534 = vunpack.c.l.b16 %v255
    %v2535 = vunpack.c.l.b16 %v256
    %v2536 = vunpack.c.l.b16 %v257
    %v2537 = vunpack.c.l.b16 %v258
    %v2538 = vunpack.c.l.b16 %v259
    %v2539 = vunpack.c.l.b16 %v260
    %v2540 = vunpack.c.l.b16 %v261
    %v2541 = vunpack.c.l.b16 %v262
    %v2542 = vunpack.c.l.b16 %v263
    %v2543 = vunpack.c.l.b16 %v264
    %v2544 = vunpack.c.l.b16 %v265
    %v2545 = vunpack.c.l.b16 %v266
    %v2546 = vunpack.c.l.b16 %v267
    %v2547 = vunpack.c.l.b16 %v268
    %v2548 = vunpack.c.l.b16 %v269
    %v2549 = vunpack.c.l.b16 %v270
    %v2550 = vunpack.c.l.b16 %v271
    %v2551 = vunpack.c.l.b16 %v272
    %v2552 = vunpack.c.l.b16 %v273
    %v2553 = vunpack.c.l.b16 %v274
    %v2554 = vunpack.c.l.b16 %v275
    %v2555 = vunpack.c.l.b16 %v276
    %v2556 = vunpack.c.l.b16 %v277
    %v2557 = vunpack.c.l.b16 %v278
    %v2558 = vunpack.c.l.b16 %v279
    %v2559 = vunpack.c.l.b16 %v280
    %v2560 = vunpack.c.l.b16 %v281
    %v2561 = vunpack.c.l.b16 %v282
    %v2562 = vunpack.c.l.b16 %v283
    %v2563 = vunpack.c.l.b16 %v284
    %v2564 = vunpack.c.l.b16 %v285
    %v2565 = vunpack.c.l.b16 %v286
    %v2566 = vunpack.c.l.b16 %v287
    %v2567 = vunpack.c.l.b16 %v288
    %v2568 = vunpack.c.l.b16 %v289
    %v2569 = vunpack.c.l.b16 %v290
    %v2570 = vunpack.c.l.b16 %v291
    %v2571 = vunpack.c.l.b16 %v292
    %v2572 = vunpack.c.l.b16 %v293
    %v2573 = vunpack.c.l.b16 %v294
    %v2574 = vunpack.c.l.b16 %v295
    %v2575 = vunpack.c.l.b16 %v296
    %v2576 = vunpack.c.l.b16 %v297
    %v2577 = vunpack.c.l.b16 %v298
    %v2578 = vunpack.c.l.b16 %v299
    %v2579 = vunpack.c.l.b16 %v300
    %v2580 = vunpack.c.l.b16 %v301
    %v2581 = vunpack.c.l.b16 %v302
    %v2582 = vunpack.c.l.b16 %v303
    %v2583 = vunpack.c.l.b16 %v304
    %v2584 = vunpack.c.l.b16 %v305
    %v2585 = vunpack.c.l.b16 %v306
    %v2586 = vunpack.c.l.b16 %v307
    %v2587 = vunpack.c.l.b16 %v308
    %v2588 = vunpack.c.l.b16 %v309
    %v2589 = vunpack.c.l.b16 %v310
    %v2590 = vunpack.c.l.b16 %v311
    %v2591 = vunpack.c.l.b16 %v312
    %v2592 = vunpack.c.l.b16 %v313
    %v2593 = vunpack.c.l.b16 %v314
    %v2594 = vunpack.c.l.b16 %v315
    %v2595 = vunpack.c.l.b16 %v316
    %v2596 = vunpack.c.l.b16 %v317
    %v2597 = vunpack.c.l.b16 %v318
    %v2598 = vunpack.c.l.b16 %v319
    %v2599 = vunpack.c.l.b16 %v320
    %v2600 = vunpack.c.l.b16 %v321
    %v2601 = vunpack.c.l.b16 %v322
    %v2602 = vunpack.c.l.b16 %v323
    %v2603 = vunpack.c.l.b16 %v324
    %v2604 = vunpack.c.l.b16 %v325
    %v2605 = vunpack.c.l.b16 %v326
    %v2606 = vunpack.c.l.b16 %v327
    %v2607 = vunpack.c.l.b16 %v328
    %v2608 = vunpack.c.l.b16 %v329
    %v2609 = vunpack.c.l.b16 %v330
    %v2610 = vunpack.c.l.b16 %v331
    %v2611 = vunpack.c.l.b16 %v332
    %v2612 = vunpack.c.l.b16 %v333
    %v2613 = vunpack.c.l.b16 %v334
    %v2614 = vunpack.c.l.b16 %v335
    %v2615 = vunpack.c.l.b16 %v336
    %v2616 = vunpack.c.l.b16 %v337
    %v2617 = vunpack.c.l.b16 %v338
    %v2618 = vunpack.c.l.b16 %v339
    %v2619 = vunpack.c.l.b16 %v340
    %v2620 = vunpack.c.l.b16 %v341
    %v2621 = vunpack.c.l.b16 %v342
    %v2622 = vunpack.c.l.b16 %v343
    %v2623 = vunpack.c.l.b16 %v344
    %v2624 = vunpack.c.l.b16 %v345
    %v2625 = vunpack.c.l.b16 %v346
    %v2626 = vunpack.c.l.b16 %v347
    %v2627 = vunpack.c.l.b16 %v348
    %v2628 = vunpack.c.l.b16 %v349
    %v2629 = vunpack.c.l.b16 %v350
    %v2630 = vunpack.c.l.b16 %v351
    %v2631 = vunpack.c.l.b16 %v352
    %v2632 = vunpack.c.l.b16 %v353
    %v2633 = vunpack.c.l.b16 %v354
    %v2634 = vunpack.c.l.b16 %v355
    %v2635 = vunpack.c.l.b16 %v356
    %v2636 = vunpack.c.l.b16 %v357
    %v2637 = vunpack.c.l.b16 %v358
    %v2638 = vunpack.c.l.b16 %v359
    %v2639 = vunpack.c.l.b16 %v360
    %v2640 = vunpack.c.l.b16 %v361
    %v2641 = vunpack.c.l.b16 %v362
    %v2642 = vunpack.c.l.b16 %v363
    %v2643 = vunpack.c.l.b16 %v364
    %v2644 = vunpack.c.l.b16 %v365
    %v2645 = vunpack.c.l.b16 %v366
    %v2646 = vunpack.c.l.b16 %v367
    %v2647 = vunpack.c.l.b16 %v368
    %v2648 = vunpack.c.l.b16 %v369
    %v2649 = vunpack.c.l.b16 %v370
    %v2650 = vunpack.c.l.b16 %v371
    %v2651 = vunpack.c.l.b16 %v372
    %v2652 = vunpack.c.l.b16 %v373
    %v2653 = vunpack.c.l.b16 %v374
    %v2654 = vunpack.c.l.b16 %v375
    %v2655 = vunpack.c.l.b16 %v376
    %v2656 = vunpack.c.l.b16 %v377
    %v2657 = vunpack.c.l.b16 %v378
    %v2658 = vunpack.c.l.b16 %v379
    %v2659 = vunpack.c.l.b16 %v380
    %v2660 = vunpack.c.l.b16 %v381
    %v2661 = vunpack.c.l.b16 %v382
    %v2662 = vunpack.c.l.b16 %v383
    %v2663 = vunpack.c.l.b16 %v384
    %v2664 = vunpack.c.l.b16 %v385
    %v2665 = vunpack.c.l.b16 %v386
    %v2666 = vunpack.c.l.b16 %v387
    %v2667 = vunpack.c.l.b16 %v388
    %v2668 = vunpack.c.l.b16 %v389
    %v2669 = vunpack.c.l.b16 %v390
    %v2670 = vunpack.c.l.b16 %v391
    %v2671 = vunpack.c.l.b16 %v392
    %v2672 = vunpack.c.l.b16 %v393
    %v2673 = vunpack.c.l.b16 %v394
    %v2674 = vunpack.c.l.b16 %v395
    %v2675 = vunpack.c.l.b16 %v396
    %v2676 = vunpack.c.l.b16 %v397
    %v2677 = vunpack.c.l.b16 %v398
    %v2678 = vunpack.c.l.b16 %v399
    %v2679 = vunpack.c.l.b16 %v400
    %v2680 = vunpack.c.l.b16 %v401
    %v2681 = vunpack.c.l.b16 %v402
    %v2682 = vunpack.c.l.b16 %v403
    %v2683 = vunpack.c.l.b16 %v404
    %v2684 = vunpack.c.l.b16 %v405
    %v2685 = vunpack.c.l.b16 %v406
    %v2686 = vunpack.c.l.b16 %v407
    %v2687 = vunpack.c.l.b16 %v408
    %v2688 = vunpack.c.l.b16 %v409
    %v2689 = vunpack.c.l.b16 %v410
    %v2690 = vunpack.c.l.b16 %v411
    %v2691 = vunpack.c.l.b16 %v412
    %v2692 = vunpack.c.l.b16 %v413
    %v2693 = vunpack.c.l.b16 %v414
    %v2694 = vunpack.c.l.b16 %v415
    %v2695 = vunpack.c.l.b16 %v416
    %v2696 = vunpack.c.l.b16 %v417
    %v2697 = vunpack.c.l.b16 %v418
    %v2698 = vunpack.c.l.b16 %v419
    %v2699 = vunpack.c.l.b16 %v420
    %v2700 = vunpack.c.l.b16 %v421
    %v2701 = vunpack.c.l.b16 %v422
    %v2702 = vunpack.c.l.b16 %v423
    %v2703 = vunpack.c.l.b16 %v424
    %v2704 = vunpack.c.l.b16 %v425
    %v2705 = vunpack.c.l.b16 %v426
    %v2706 = vunpack.c.l.b16 %v427
    %v2707 = vunpack.c.l.b16 %v428
    %v2708 = vunpack.c.l.b16 %v429
    %v2709 = vunpack.c.l.b16 %v430
    %v2710 = vunpack.c.l.b16 %v431
    %v2711 = vunpack.c.l.b16 %v432
    %v2712 = vunpack.c.l.b16 %v433
    %v2713 = vunpack.c.l.b16 %v434
    %v2714 = vunpack.c.l.b16 %v435
    %v2715 = vunpack.c.l.b16 %v436
    %v2716 = vunpack.c.l.b16 %v437
    %v2717 = vunpack.c.l.b16 %v438
    %v2718 = vunpack.c.l.b16 %v439
    %v2719 = vunpack.c.l.b16 %v440
    %v2720 = vunpack.c.l.b16 %v441
    %v2721 = vunpack.c.l.b16 %v442
    %v2722 = vunpack.c.l.b16 %v443
    %v2723 = vunpack.c.l.b16 %v444
    %v2724 = vunpack.c.l.b16 %v445
    %v2725 = vunpack.c.l.b16 %v446
    %v2726 = vunpack.c.l.b16 %v447
    %v2727 = vunpack.c.l.b16 %v448
    %v2728 = vunpack.c.l.b16 %v449
    %v2729 = vunpack.c.l.b16 %v450
    %v2730 = vunpack.c.l.b16 %v451
    %v2731 = vunpack.c.l.b16 %v452
    %v2732 = vunpack.c.l.b16 %v453
    %v2733 = vunpack.c.l.b16 %v454
    %v2734 = vunpack.c.l.b16 %v455
    %v2735 = vunpack.c.l.b16 %v456
    %v2736 = vunpack.c.l.b16 %v457
    %v2737 = vunpack.c.l.b16 %v458
    %v2738 = vunpack.c.l.b16 %v459
    %v2739 = vunpack.c.l.b16 %v460
    %v2740 = vunpack.c.l.b16 %v461
    %v2741 = vunpack.c.l.b16 %v462
    %v2742 = vunpack.c.l.b16 %v463
    %v2743 = vunpack.c.l.b16 %v464
    %v2744 = vunpack.c.l.b16 %v465
    %v2745 = vunpack.c.l.b16 %v466
    %v2746 = vunpack.c.l.b16 %v467
    %v2747 = vunpack.c.l.b16 %v468
    %v2748 = vunpack.c.l.b16 %v469
    %v2749 = vunpack.c.l.b16 %v470
    %v2750 = vunpack.c.l.b16 %v471
    %v2751 = vunpack.c.l.b16 %v472
    %v2752 = vunpack.c.l.b16 %v473
    %v2753 = vunpack.c.l.b16 %v474
    %v2754 = vunpack.c.l.b16 %v475
    %v2755 = vunpack.c.l.b16 %v476
    %v2756 = vunpack.c.l.b16 %v477
    %v2757 = vunpack.c.l.b16 %v478
    %v2758 = vunpack.c.l.b16 %v479
    %v2759 = vunpack.c.l.b16 %v480
    %v2760 = vunpack.c.l.b16 %v481
    %v2761 = vunpack.c.l.b16 %v482
    %v2762 = vunpack.c.l.b16 %v483
    %v2763 = vunpack.c.l.b16 %v484
    %v2764 = vunpack.c.l.b16 %v485
    %v2765 = vunpack.c.l.b16 %v486
    %v2766 = vunpack.c.l.b16 %v487
    %v2767 = vunpack.c.l.b16 %v488
    %v2768 = vunpack.c.l.b16 %v489
    %v2769 = vunpack.c.l.b16 %v490
    %v2770 = vunpack.c.l.b16 %v491
    %v2771 = vunpack.c.l.b16 %v492
    %v2772 = vunpack.c.l.b16 %v493
    %v2773 = vunpack.c.l.b16 %v494
    %v2774 = vunpack.c.l.b16 %v495
    %v2775 = vunpack.c.l.b16 %v496
    %v2776 = vunpack.c.l.b16 %v497
    %v2777 = vunpack.c.l.b16 %v498
    %v2778 = vunpack.c.l.b16 %v499
    %v2779 = vunpack.c.l.b16 %v500
    %v2780 = vunpack.c.l.b16 %v501
    %v2781 = vunpack.c.l.b16 %v502
    %v2782 = vunpack.c.l.b16 %v503
    %v2783 = vunpack.c.l.b16 %v504
    %v2784 = vunpack.c.l.b16 %v505
    %v2785 = vunpack.c.l.b16 %v506
    %v2786 = vunpack.c.l.b16 %v507
    %v2787 = vunpack.c.l.b16 %v508
    %v2788 = vunpack.c.l.b16 %v509
    %v2789 = vunpack.c.l.b16 %v510
    %v2790 = vunpack.c.l.b16 %v511
    %v2791 = vunpack.c.l.b16 %v512
    %v2792 = vunpack.c.l.b16 %v513
    %v2793 = vunpack.c.l.b16 %v514
    %v2794 = vunpack.c.l.b16 %v515
    %v2795 = vunpack.c.l.b16 %v516
    %v2796 = vunpack.c.l.b16 %v517
    %v2797 = vunpack.c.l.b16 %v518
    %v2798 = vunpack.c.l.b16 %v519
    %v2799 = vunpack.c.l.b16 %v520
    %v2800 = vunpack.c.l.b16 %v521
    %v2801 = vunpack.c.l.b16 %v522
    %v2802 = vunpack.c.l.b16 %v523
    %v2803 = vunpack.c.l.b16 %v524
    %v2804 = vunpack.c.l.b16 %v525
    %v2805 = vunpack.c.l.b16 %v526
    %v2806 = vunpack.c.l.b16 %v527
    %v2807 = vunpack.c.l.b16 %v528
    %v2808 = vunpack.c.l.b16 %v529
    %v2809 = vunpack.c.l.b16 %v530
    %v2810 = vunpack.c.l.b16 %v531
    %v2811 = vunpack.c.l.b16 %v532
    %v2812 = vunpack.c.l.b16 %v533
    %v2813 = vunpack.c.l.b16 %v534
    %v2814 = vunpack.c.l.b16 %v535
    %v2815 = vunpack.c.l.b16 %v536
    %v2816 = vunpack.c.l.b16 %v537
    %v2817 = vunpack.c.l.b16 %v538
    %v2818 = vunpack.c.l.b16 %v539
    %v2819 = vunpack.c.l.b16 %v540
    %v2820 = vunpack.c.l.b16 %v541
    %v2821 = vunpack.c.l.b16 %v542
    %v2822 = vunpack.c.l.b16 %v543
    %v2823 = vunpack.c.l.b16 %v544
    %v2824 = vunpack.c.l.b16 %v545
    %v2825 = vunpack.c.l.b16 %v546
    %v2826 = vunpack.c.l.b16 %v547
    %v2827 = vunpack.c.l.b16 %v548
    %v2828 = vunpack.c.l.b16 %v549
    %v2829 = vunpack.c.l.b16 %v550
    %v2830 = vunpack.c.l.b16 %v551
    %v2831 = vunpack.c.l.b16 %v552
    %v2832 = vunpack.c.l.b16 %v553
    %v2833 = vunpack.c.l.b16 %v554
    %v2834 = vunpack.c.l.b16 %v555
    %v2835 = vunpack.c.l.b16 %v556
    %v2836 = vunpack.c.l.b16 %v557
    %v2837 = vunpack.c.l.b16 %v558
    %v2838 = vunpack.c.l.b16 %v559
    %v2839 = vunpack.c.l.b16 %v560
    %v2840 = vunpack.c.l.b16 %v561
    %v2841 = vunpack.c.l.b16 %v562
    %v2842 = vunpack.c.l.b16 %v563
    %v2843 = vunpack.c.l.b16 %v564
    %v2844 = vunpack.c.l.b16 %v565
    %v2845 = vunpack.c.l.b16 %v566
    %v2846 = vunpack.c.l.b16 %v567
    %v2847 = vunpack.c.l.b16 %v568
    %v2848 = vunpack.c.l.b16 %v569
    %v2849 = vunpack.c.l.b16 %v570
    %v2850 = vunpack.c.l.b16 %v571
    %v2851 = vunpack.c.l.b16 %v572
    %v2852 = vunpack.c.l.b16 %v573
    %v2853 = vunpack.c.l.b16 %v574
    %v2854 = vunpack.c.l.b16 %v575
    %v2855 = vunpack.c.l.b16 %v576
    %v2856 = vunpack.c.l.b16 %v577
    %v2857 = vunpack.c.l.b16 %v578
    %v2858 = vunpack.c.l.b16 %v579
    %v2859 = vunpack.c.l.b16 %v580
    %v2860 = vunpack.c.l.b16 %v581
    %v2861 = vunpack.c.l.b16 %v582
    %v2862 = vunpack.c.l.b16 %v583
    %v2863 = vunpack.c.l.b16 %v584
    %v2864 = vunpack.c.l.b16 %v585
    %v2865 = vunpack.c.l.b16 %v586
    %v2866 = vunpack.c.l.b16 %v587
    %v2867 = vunpack.c.l.b16 %v588
    %v2868 = vunpack.c.l.b16 %v589
    %v2869 = vunpack.c.l.b16 %v590
    %v2870 = vunpack.c.l.b16 %v591
    %v2871 = vunpack.c.l.b16 %v592
    %v2872 = vunpack.c.l.b16 %v593
    %v2873 = vunpack.c.l.b16 %v594
    %v2874 = vunpack.c.l.b16 %v595
    %v2875 = vunpack.c.l.b16 %v596
    %v2876 = vunpack.c.l.b16 %v597
    %v2877 = vunpack.c.l.b16 %v598
    %v2878 = vunpack.c.l.b16 %v599
    %v2879 = vunpack.c.l.b16 %v600
    %v2880 = vunpack.c.l.b16 %v601
    %v2881 = vunpack.c.l.b16 %v602
    %v2882 = vunpack.c.l.b16 %v603
    %v2883 = vunpack.c.l.b16 %v604
    %v2884 = vunpack.c.l.b16 %v605
    %v2885 = vunpack.c.l.b16 %v606
    %v2886 = vunpack.c.l.b16 %v607
    %v2887 = vunpack.c.l.b16 %v608
    %v2888 = vunpack.c.l.b16 %v609
    %v2889 = vunpack.c.l.b16 %v610
    %v2890 = vunpack.c.l.b16 %v611
    %v2891 = vunpack.c.l.b16 %v612
    %v2892 = vunpack.c.l.b16 %v613
    %v2893 = vunpack.c.l.b16 %v614
    %v2894 = vunpack.c.l.b16 %v615
    %v2895 = vunpack.c.l.b16 %v616
    %v2896 = vunpack.c.l.b16 %v617
    %v2897 = vunpack.c.l.b16 %v618
    %v2898 = vunpack.c.l.b16 %v619
    %v2899 = vunpack.c.l.b16 %v620
    %v2900 = vunpack.c.l.b16 %v621
    %v2901 = vunpack.c.l.b16 %v622
    %v2902 = vunpack.c.l.b16 %v623
    %v2903 = vunpack.c.l.b16 %v624
    %v2904 = vunpack.c.l.b16 %v625
    %v2905 = vunpack.c.l.b16 %v626
    %v2906 = vunpack.c.l.b16 %v627
    %v2907 = vunpack.c.l.b16 %v628
    %v2908 = vunpack.c.l.b16 %v629
    %v2909 = vunpack.c.l.b16 %v630
    %v2910 = vunpack.c.l.b16 %v631
    %v2911 = vunpack.c.l.b16 %v632
    %v2912 = vunpack.c.l.b16 %v633
    %v2913 = vunpack.c.l.b16 %v634
    %v2914 = vunpack.c.l.b16 %v635
    %v2915 = vunpack.c.l.b16 %v636
    %v2916 = vunpack.c.l.b16 %v637
    %v2917 = vunpack.c.l.b16 %v638
    %v2918 = vunpack.c.l.b16 %v639
    %v2919 = vunpack.c.l.b16 %v640
    %v2920 = vunpack.c.l.b16 %v641
    %v2921 = vunpack.c.l.b16 %v642
    %v2922 = vunpack.c.l.b16 %v643
    %v2923 = vunpack.c.l.b16 %v644
    %v2924 = vunpack.c.l.b16 %v645
    %v2925 = vunpack.c.l.b16 %v646
    %v2926 = vunpack.c.l.b16 %v647
    %v2927 = vunpack.c.l.b16 %v648
    %v2928 = vunpack.c.l.b16 %v649
    %v2929 = vunpack.c.l.b16 %v650
    %v2930 = vunpack.c.l.b16 %v651
    %v2931 = vunpack.c.l.b16 %v652
    %v2932 = vunpack.c.l.b16 %v653
    %v2933 = vunpack.c.l.b16 %v654
    %v2934 = vunpack.c.l.b16 %v655
    %v2935 = vunpack.c.l.b16 %v656
    %v2936 = vunpack.c.l.b16 %v657
    %v2937 = vunpack.c.l.b16 %v658
    %v2938 = vunpack.c.l.b16 %v659
    %v2939 = vunpack.c.l.b16 %v660
    %v2940 = vunpack.c.l.b16 %v661
    %v2941 = vunpack.c.l.b16 %v662
    %v2942 = vunpack.c.l.b16 %v663
    %v2943 = vunpack.c.l.b16 %v664
    %v2944 = vunpack.c.l.b16 %v665
    %v2945 = vunpack.c.l.b16 %v666
    %v2946 = vunpack.c.l.b16 %v667
    %v2947 = vunpack.c.l.b16 %v668
    %v2948 = vunpack.c.l.b16 %v669
    %v2949 = vunpack.c.l.b16 %v670
    %v2950 = vunpack.c.l.b16 %v671
    %v2951 = vunpack.c.l.b16 %v672
    %v2952 = vunpack.c.l.b16 %v673
    %v2953 = vunpack.c.l.b16 %v674
    %v2954 = vunpack.c.l.b16 %v675
    %v2955 = vunpack.c.l.b16 %v676
    %v2956 = vunpack.c.l.b16 %v677
    %v2957 = vunpack.c.l.b16 %v678
    %v2958 = vunpack.c.l.b16 %v679
    %v2959 = vunpack.c.l.b16 %v680
    %v2960 = vunpack.c.l.b16 %v681
    %v2961 = vunpack.c.l.b16 %v682
    %v2962 = vunpack.c.l.b16 %v683
    %v2963 = vunpack.c.l.b16 %v684
    %v2964 = vunpack.c.l.b16 %v685
    %v2965 = vunpack.c.l.b16 %v686
    %v2966 = vunpack.c.l.b16 %v687
    %v2967 = vunpack.c.l.b16 %v688
    %v2968 = vunpack.c.l.b16 %v689
    %v2969 = vunpack.c.l.b16 %v690
    %v2970 = vunpack.c.l.b16 %v691
    %v2971 = vunpack.c.l.b16 %v692
    %v2972 = vunpack.c.l.b16 %v693
    %v2973 = vunpack.c.l.b16 %v694
    %v2974 = vunpack.c.l.b16 %v695
    %v2975 = vunpack.c.l.b16 %v696
    %v2976 = vunpack.c.l.b16 %v697
    %v2977 = vunpack.c.l.b16 %v698
    %v2978 = vunpack.c.l.b16 %v699
    %v2979 = vunpack.c.l.b16 %v700
    %v2980 = vunpack.c.l.b16 %v701
    %v2981 = vunpack.c.l.b16 %v702
    %v2982 = vunpack.c.l.b16 %v703
    %v2983 = vunpack.c.l.b16 %v704
    %v2984 = vunpack.c.l.b16 %v705
    %v2985 = vunpack.c.l.b16 %v706
    %v2986 = vunpack.c.l.b16 %v707
    %v2987 = vunpack.c.l.b16 %v708
    %v2988 = vunpack.c.l.b16 %v709
    %v2989 = vunpack.c.l.b16 %v710
    %v2990 = vunpack.c.l.b16 %v711
    %v2991 = vunpack.c.l.b16 %v712
    %v2992 = vunpack.c.l.b16 %v713
    %v2993 = vunpack.c.l.b16 %v714
    %v2994 = vunpack.c.l.b16 %v715
    %v2995 = vunpack.c.l.b16 %v716
    %v2996 = vunpack.c.l.b16 %v717
    %v2997 = vunpack.c.l.b16 %v718
    %v2998 = vunpack.c.l.b16 %v719
    %v2999 = vunpack.c.l.b16 %v720
    %v3000 = vunpack.c.l.b16 %v721
    %v3001 = vunpack.c.l.b16 %v722
    %v3002 = vunpack.c.l.b16 %v723
    %v3003 = vunpack.c.l.b16 %v724
    %v3004 = vunpack.c.l.b16 %v725
    %v3005 = vunpack.c.l.b16 %v726
    %v3006 = vunpack.c.l.b16 %v727
    %v3007 = vunpack.c.l.b16 %v728
    %v3008 = vunpack.c.l.b16 %v729
    %v3009 = vunpack.c.l.b16 %v730
    %v3010 = vunpack.c.l.b16 %v731
    %v3011 = vunpack.c.l.b16 %v732
    %v3012 = vunpack.c.l.b16 %v733
    %v3013 = vunpack.c.l.b16 %v734
    %v3014 = vunpack.c.l.b16 %v735
    %v3015 = vunpack.c.l.b16 %v736
    %v3016 = vunpack.c.l.b16 %v737
    %v3017 = vunpack.c.l.b16 %v738
    %v3018 = vunpack.c.l.b16 %v739
    %v3019 = vunpack.c.l.b16 %v740
    %v3020 = vunpack.c.l.b16 %v741
    %v3021 = vunpack.c.l.b16 %v742
    %v3022 = vunpack.c.l.b16 %v743
    %v3023 = vunpack.c.l.b16 %v744
    %v3024 = vunpack.c.l.b16 %v745
    %v3025 = vunpack.c.l.b16 %v746
    %v3026 = vunpack.c.l.b16 %v747
    %v3027 = vunpack.c.l.b16 %v748
    %v3028 = vunpack.c.l.b16 %v749
    %v3029 = vunpack.c.l.b16 %v750
    %v3030 = vunpack.c.l.b16 %v751
    %v3031 = vunpack.c.l.b16 %v752
    %v3032 = vunpack.c.l.b16 %v753
    %v3033 = vunpack.c.l.b16 %v754
    %v3034 = vunpack.c.l.b16 %v755
    %v3035 = vunpack.c.l.b16 %v756
    %v3036 = vunpack.c.l.b16 %v757
    %v3037 = vunpack.c.l.b16 %v758
    %v3038 = vunpack.c.l.b16 %v759
    %v3039 = vunpack.c.l.b16 %v760
    %v3040 = vunpack.c.l.b16 %v761
    %v3041 = vunpack.c.l.b16 %v762
    %v3042 = vunpack.c.l.b16 %v763
    %v3043 = vunpack.c.l.b16 %v764
    %v3044 = vunpack.c.l.b16 %v765
    %v3045 = vunpack.c.l.b16 %v766
    %v3046 = vunpack.c.l.b16 %v767
    %v3047 = vunpack.c.l.b16 %v768
    %v3048 = vunpack.c.l.b16 %v769
    %v3049 = vunpack.c.l.b16 %v770
    %v3050 = vunpack.c.l.b16 %v771
    %v3051 = vunpack.c.l.b16 %v772
    %v3052 = vunpack.c.l.b16 %v773
    %v3053 = vunpack.c.l.b16 %v774
    %v3054 = vunpack.c.l.b16 %v775
    %v3055 = vunpack.c.l.b16 %v776
    %v3056 = vunpack.c.l.b16 %v777
    %v3057 = vunpack.c.l.b16 %v778
    %v3058 = vunpack.c.l.b16 %v779
    %v3059 = vunpack.c.l.b16 %v780
    %v3060 = vunpack.c.l.b16 %v781
    %v3061 = vunpack.c.l.b16 %v782
    %v3062 = vunpack.c.l.b16 %v783
    %v3063 = vunpack.c.l.b16 %v784
    %v3064 = vunpack.c.l.b16 %v785
    %v3065 = vunpack.c.l.b16 %v786
    %v3066 = vunpack.c.l.b16 %v787
    %v3067 = vunpack.c.l.b16 %v788
    %v3068 = vunpack.c.l.b16 %v789
    %v3069 = vunpack.c.l.b16 %v790
    %v3070 = vunpack.c.l.b16 %v791
    %v3071 = vunpack.c.l.b16 %v792
    %v3072 = vunpack.c.l.b16 %v793
    %v3073 = vunpack.c.l.b16 %v794
    %v3074 = vunpack.c.l.b16 %v795
    %v3075 = vunpack.c.l.b16 %v796
    %v3076 = vunpack.c.l.b16 %v797
    %v3077 = vunpack.c.l.b16 %v798
    %v3078 = vunpack.c.l.b16 %v799
    %v3079 = vunpack.c.l.b16 %v800
    %v3080 = vunpack.c.l.b16 %v801
    %v3081 = vunpack.c.l.b16 %v802
    %v3082 = vunpack.c.l.b16 %v803
    %v3083 = vunpack.c.l.b16 %v804
    %v3084 = vunpack.c.l.b16 %v805
    %v3085 = vunpack.c.l.b16 %v806
    %v3086 = vunpack.c.l.b16 %v807
    %v3087 = vunpack.c.l.b16 %v808
    %v3088 = vunpack.c.l.b16 %v809
    %v3089 = vunpack.c.l.b16 %v810
    %v3090 = vunpack.c.l.b16 %v811
    %v3091 = vunpack.c.l.b16 %v812
    %v3092 = vunpack.c.l.b16 %v813
    %v3093 = vunpack.c.l.b16 %v814
    %v3094 = vunpack.c.l.b16 %v815
    %v3095 = vunpack.c.l.b16 %v816
    %v3096 = vunpack.c.l.b16 %v817
    %v3097 = vunpack.c.l.b16 %v818
    %v3098 = vunpack.c.l.b16 %v819
    %v3099 = vunpack.c.l.b16 %v820
    %v3100 = vunpack.c.l.b16 %v821
    %v3101 = vunpack.c.l.b16 %v822
    %v3102 = vunpack.c.l.b16 %v823
    %v3103 = vunpack.c.l.b16 %v824
    %v3104 = vunpack.c.l.b16 %v825
    %v3105 = vunpack.c.l.b16 %v826
    %v3106 = vunpack.c.l.b16 %v827
    %v3107 = vunpack.c.l.b16 %v828
    %v3108 = vunpack.c.l.b16 %v829
    %v3109 = vunpack.c.l.b16 %v830
    %v3110 = vunpack.c.l.b16 %v831
    %v3111 = vunpack.c.l.b16 %v832
    %v3112 = vunpack.c.l.b16 %v833
    %v3113 = vunpack.c.l.b16 %v834
    %v3114 = vunpack.c.l.b16 %v835
    %v3115 = vunpack.c.l.b16 %v836
    %v3116 = vunpack.c.l.b16 %v837
    %v3117 = vunpack.c.l.b16 %v838
    %v3118 = vunpack.c.l.b16 %v839
    %v3119 = vunpack.c.l.b16 %v840
    %v3120 = vunpack.c.l.b16 %v841
    %v3121 = vunpack.c.l.b16 %v842
    %v3122 = vunpack.c.l.b16 %v843
    %v3123 = vunpack.c.l.b16 %v844
    %v3124 = vunpack.c.l.b16 %v845
    %v3125 = vunpack.c.l.b16 %v846
    %v3126 = vunpack.c.l.b16 %v847
    %v3127 = vunpack.c.l.b16 %v848
    %v3128 = vunpack.c.l.b16 %v849
    %v3129 = vunpack.c.l.b16 %v850
    %v3130 = vunpack.c.l.b16 %v851
    %v3131 = vunpack.c.l.b16 %v852
    %v3132 = vunpack.c.l.b16 %v853
    %v3133 = vunpack.c.l.b16 %v854
    %v3134 = vunpack.c.l.b16 %v855
    %v3135 = vunpack.c.l.b16 %v856
    %v3136 = vunpack.c.l.b16 %v857
    %v3137 = vunpack.c.l.b16 %v858
    %v3138 = vunpack.c.l.b16 %v859
    %v3139 = vunpack.c.l.b16 %v860
    %v3140 = vunpack.c.l.b16 %v861
    %v3141 = vunpack.c.l.b16 %v862
    %v3142 = vunpack.c.l.b16 %v863
    %v3143 = vunpack.c.l.b16 %v864
    %v3144 = vunpack.c.l.b16 %v865
    %v3145 = vunpack.c.l.b16 %v866
    %v3146 = vunpack.c.l.b16 %v867
    %v3147 = vunpack.c.l.b16 %v868
    %v3148 = vunpack.c.l.b16 %v869
    %v3149 = vunpack.c.l.b16 %v870
    %v3150 = vunpack.c.l.b16 %v871
    %v3151 = vunpack.c.l.b16 %v872
    %v3152 = vunpack.c.l.b16 %v873
    %v3153 = vunpack.c.l.b16 %v874
    %v3154 = vunpack.c.l.b16 %v875
    %v3155 = vunpack.c.l.b16 %v876
    %v3156 = vunpack.c.l.b16 %v877
    %v3157 = vunpack.c.l.b16 %v878
    %v3158 = vunpack.c.l.b16 %v879
    %v3159 = vunpack.c.l.b16 %v880
    %v3160 = vunpack.c.l.b16 %v881
    %v3161 = vunpack.c.l.b16 %v882
    %v3162 = vunpack.c.l.b16 %v883
    %v3163 = vunpack.c.l.b16 %v884
    %v3164 = vunpack.c.l.b16 %v885
    %v3165 = vunpack.c.l.b16 %v886
    %v3166 = vunpack.c.l.b16 %v887
    %v3167 = vunpack.c.l.b16 %v888
    %v3168 = vunpack.c.l.b16 %v889
    %v3169 = vunpack.c.l.b16 %v890
    %v3170 = vunpack.c.l.b16 %v891
    %v3171 = vunpack.c.l.b16 %v892
    %v3172 = vunpack.c.l.b16 %v893
    %v3173 = vunpack.c.l.b16 %v894
    %v3174 = vunpack.c.l.b16 %v895
    %v3175 = vunpack.c.l.b16 %v896
    %v3176 = vunpack.c.l.b16 %v897
    %v3177 = vunpack.c.l.b16 %v898
    %v3178 = vunpack.c.l.b16 %v899
    %v3179 = vunpack.c.l.b16 %v900
    %v3180 = vunpack.c.l.b16 %v901
    %v3181 = vunpack.c.l.b16 %v902
    %v3182 = vunpack.c.l.b16 %v903
    %v3183 = vunpack.c.l.b16 %v904
    %v3184 = vunpack.c.l.b16 %v905
    %v3185 = vunpack.c.l.b16 %v906
    %v3186 = vunpack.c.l.b16 %v907
    %v3187 = vunpack.c.l.b16 %v908
    %v3188 = vunpack.c.l.b16 %v909
    %v3189 = vunpack.c.l.b16 %v910
    %v3190 = vunpack.c.l.b16 %v911
    %v3191 = vunpack.c.l.b16 %v912
    %v3192 = vunpack.c.l.b16 %v913
    %v3193 = vunpack.c.l.b16 %v914
    %v3194 = vunpack.c.l.b16 %v915
    %v3195 = vunpack.c.l.b16 %v916
    %v3196 = vunpack.c.l.b16 %v917
    %v3197 = vunpack.c.l.b16 %v918
    %v3198 = vunpack.c.l.b16 %v919
    %v3199 = vunpack.c.l.b16 %v920
    %v3200 = vunpack.c.l.b16 %v921
    %v3201 = vunpack.c.l.b16 %v922
    %v3202 = vunpack.c.l.b16 %v923
    %v3203 = vunpack.c.l.b16 %v924
    %v3204 = vunpack.c.l.b16 %v925
    %v3205 = vunpack.c.l.b16 %v926
    %v3206 = vunpack.c.l.b16 %v927
    %v3207 = vunpack.c.l.b16 %v928
    %v3208 = vunpack.c.l.b16 %v929
    %v3209 = vunpack.c.l.b16 %v930
    %v3210 = vunpack.c.l.b16 %v931
    %v3211 = vunpack.c.l.b16 %v932
    %v3212 = vunpack.c.l.b16 %v933
    %v3213 = vunpack.c.l.b16 %v934
    %v3214 = vunpack.c.l.b16 %v935
    %v3215 = vunpack.c.l.b16 %v936
    %v3216 = vunpack.c.l.b16 %v937
    %v3217 = vunpack.c.l.b16 %v938
    %v3218 = vunpack.c.l.b16 %v939
    %v3219 = vunpack.c.l.b16 %v940
    %v3220 = vunpack.c.l.b16 %v941
    %v3221 = vunpack.c.l.b16 %v942
    %v3222 = vunpack.c.l.b16 %v943
    %v3223 = vunpack.c.l.b16 %v944
    %v3224 = vunpack.c.l.b16 %v945
    %v3225 = vunpack.c.l.b16 %v946
    %v3226 = vunpack.c.l.b16 %v947
    %v3227 = vunpack.c.l.b16 %v948
    %v3228 = vunpack.c.l.b16 %v949
    %v3229 = vunpack.c.l.b16 %v950
    %v3230 = vunpack.c.l.b16 %v951
    %v3231 = vunpack.c.l.b16 %v952
    %v3232 = vunpack.c.l.b16 %v953
    %v3233 = vunpack.c.l.b16 %v954
    %v3234 = vunpack.c.l.b16 %v955
    %v3235 = vunpack.c.l.b16 %v956
    %v3236 = vunpack.c.l.b16 %v957
    %v3237 = vunpack.c.l.b16 %v958
    %v3238 = vunpack.c.l.b16 %v959
    %v3239 = vunpack.c.l.b16 %v960
    %v3240 = vunpack.c.l.b16 %v961
    %v3241 = vunpack.c.l.b16 %v962
    %v3242 = vunpack.c.l.b16 %v963
    %v3243 = vunpack.c.l.b16 %v964
    %v3244 = vunpack.c.l.b16 %v965
    %v3245 = vunpack.c.l.b16 %v966
    %v3246 = vunpack.c.l.b16 %v967
    %v3247 = vunpack.c.l.b16 %v968
    %v3248 = vunpack.c.l.b16 %v969
    %v3249 = vunpack.c.l.b16 %v970
    %v3250 = vunpack.c.l.b16 %v971
    %v3251 = vunpack.c.l.b16 %v972
    %v3252 = vunpack.c.l.b16 %v973
    %v3253 = vunpack.c.l.b16 %v974
    %v3254 = vunpack.c.l.b16 %v975
    %v3255 = vunpack.c.l.b16 %v976
    %v3256 = vunpack.c.l.b16 %v977
    %v3257 = vunpack.c.l.b16 %v978
    %v3258 = vunpack.c.l.b16 %v979
    %v3259 = vunpack.c.l.b16 %v980
    %v3260 = vunpack.c.l.b16 %v981
    %v3261 = vunpack.c.l.b16 %v982
    %v3262 = vunpack.c.l.b16 %v983
    %v3263 = vunpack.c.l.b16 %v984
    %v3264 = vunpack.c.l.b16 %v985
    %v3265 = vunpack.c.l.b16 %v986
    %v3266 = vunpack.c.l.b16 %v987
    %v3267 = vunpack.c.l.b16 %v988
    %v3268 = vunpack.c.l.b16 %v989
    %v3269 = vunpack.c.l.b16 %v990
    %v3270 = vunpack.c.l.b16 %v991
    %v3271 = vunpack.c.l.b16 %v992
    %v3272 = vunpack.c.l.b16 %v993
    %v3273 = vunpack.c.l.b16 %v994
    %v3274 = vunpack.c.l.b16 %v995
    %v3275 = vunpack.c.l.b16 %v996
    %v3276 = vunpack.c.l.b16 %v997
    %v3277 = vunpack.c.l.b16 %v998
    %v3278 = vunpack.c.l.b16 %v999
    %v3279 = vunpack.c.l.b16 %v1000
    %v3280 = vunpack.c.l.b16 %v1001
    %v3281 = vunpack.c.l.b16 %v1002
    %v3282 = vunpack.c.l.b16 %v1003
    %v3283 = vunpack.c.l.b16 %v1004
    %v3284 = vunpack.c.l.b16 %v1005
    %v3285 = vunpack.c.l.b16 %v1006
    %v3286 = vunpack.c.l.b16 %v1007
    %v3287 = vunpack.c.l.b16 %v1008
    %v3288 = vunpack.c.l.b16 %v1009
    %v3289 = vunpack.c.l.b16 %v1010
    %v3290 = vunpack.c.l.b16 %v1011
    %v3291 = vunpack.c.l.b16 %v1012
    %v3292 = vunpack.c.l.b16 %v1013
    %v3293 = vunpack.c.l.b16 %v1014
    %v3294 = vunpack.c.l.b16 %v1015
    %v3295 = vunpack.c.l.b16 %v1016
    %v3296 = vunpack.c.l.b16 %v1017
    %v3297 = vunpack.c.l.b16 %v1018
    %v3298 = vunpack.c.l.b16 %v1019
    %v3299 = vunpack.c.l.b16 %v1020
    %v3300 = vunpack.c.l.b16 %v1021
    %v3301 = vunpack.c.l.b16 %v1022
    %v3302 = vunpack.c.l.b16 %v1023
    %v3303 = vunpack.c.l.b16 %v1024
    %v3304 = vunpack.c.l.b16 %v1025
    %v3305 = vunpack.c.l.b16 %v1026
    %v3306 = vunpack.c.l.b16 %v1027
    %v3307 = vunpack.c.l.b16 %v1028
    %v3308 = vunpack.c.l.b16 %v1029
    %v3309 = vunpack.c.l.b16 %v1030
    %v3310 = vunpack.c.l.b16 %v1031
    %v3311 = vunpack.c.l.b16 %v1032
    %v3312 = vunpack.c.l.b16 %v1033
    %v3313 = vunpack.c.l.b16 %v1034
    %v3314 = vunpack.c.l.b16 %v1035
    %v3315 = vunpack.c.l.b16 %v1036
    %v3316 = vunpack.c.l.b16 %v1037
    %v3317 = vunpack.c.l.b16 %v1038
    %v3318 = vunpack.c.l.b16 %v1039
    %v3319 = vunpack.c.l.b16 %v1040
    %v3320 = vunpack.c.l.b16 %v1041
    %v3321 = vunpack.c.l.b16 %v1042
    %v3322 = vunpack.c.l.b16 %v1043
    %v3323 = vunpack.c.l.b16 %v1044
    %v3324 = vunpack.c.l.b16 %v1045
    %v3325 = vunpack.c.l.b16 %v1046
    %v3326 = vunpack.c.l.b16 %v1047
    %v3327 = vunpack.c.l.b16 %v1048
    %v3328 = vunpack.c.l.b16 %v1049
    %v3329 = vunpack.c.l.b16 %v1050
    %v3330 = vunpack.c.l.b16 %v1051
    %v3331 = vunpack.c.l.b16 %v1052
    %v3332 = vunpack.c.l.b16 %v1053
    %v3333 = vunpack.c.l.b16 %v1054
    %v3334 = vunpack.c.l.b16 %v1055
    %v3335 = vunpack.c.l.b16 %v1056
    %v3336 = vunpack.c.l.b16 %v1057
    %v3337 = vunpack.c.l.b16 %v1058
    %v3338 = vunpack.c.l.b16 %v1059
    %v3339 = vunpack.c.l.b16 %v1060
    %v3340 = vunpack.c.l.b16 %v1061
    %v3341 = vunpack.c.l.b16 %v1062
    %v3342 = vunpack.c.l.b16 %v1063
    %v3343 = vunpack.c.l.b16 %v1064
    %v3344 = vunpack.c.l.b16 %v1065
    %v3345 = vunpack.c.l.b16 %v1066
    %v3346 = vunpack.c.l.b16 %v1067
    %v3347 = vunpack.c.l.b16 %v1068
    %v3348 = vunpack.c.l.b16 %v1069
    %v3349 = vunpack.c.l.b16 %v1070
    %v3350 = vunpack.c.l.b16 %v1071
    %v3351 = vunpack.c.l.b16 %v1072
    %v3352 = vunpack.c.l.b16 %v1073
    %v3353 = vunpack.c.l.b16 %v1074
    %v3354 = vunpack.c.l.b16 %v1075
    %v3355 = vunpack.c.l.b16 %v1076
    %v3356 = vunpack.c.l.b16 %v1077
    %v3357 = vunpack.c.l.b16 %v1078
    %v3358 = vunpack.c.l.b16 %v1079
    %v3359 = vunpack.c.l.b16 %v1080
    %v3360 = vunpack.c.l.b16 %v1081
    %v3361 = vunpack.c.l.b16 %v1082
    %v3362 = vunpack.c.l.b16 %v1083
    %v3363 = vunpack.c.l.b16 %v1084
    %v3364 = vunpack.c.l.b16 %v1085
    %v3365 = vunpack.c.l.b16 %v1086
    %v3366 = vunpack.c.l.b16 %v1087
    %v3367 = vunpack.c.l.b16 %v1088
    %v3368 = vunpack.c.l.b16 %v1089
    %v3369 = vunpack.c.l.b16 %v1090
    %v3370 = vunpack.c.l.b16 %v1091
    %v3371 = vunpack.c.l.b16 %v1092
    %v3372 = vunpack.c.l.b16 %v1093
    %v3373 = vunpack.c.l.b16 %v1094
    %v3374 = vunpack.c.l.b16 %v1095
    %v3375 = vunpack.c.l.b16 %v1096
    %v3376 = vunpack.c.l.b16 %v1097
    %v3377 = vunpack.c.l.b16 %v1098
    %v3378 = vunpack.c.l.b16 %v1099
    %v3379 = vunpack.c.l.b16 %v1100
    %v3380 = vunpack.c.l.b16 %v1101
    %v3381 = vunpack.c.l.b16 %v1102
    %v3382 = vunpack.c.l.b16 %v1103
    %v3383 = vunpack.c.l.b16 %v1104
    %v3384 = vunpack.c.l.b16 %v1105
    %v3385 = vunpack.c.l.b16 %v1106
    %v3386 = vunpack.c.l.b16 %v1107
    %v3387 = vunpack.c.l.b16 %v1108
    %v3388 = vunpack.c.l.b16 %v1109
    %v3389 = vunpack.c.l.b16 %v1110
    %v3390 = vunpack.c.l.b16 %v1111
    %v3391 = vunpack.c.l.b16 %v1112
    %v3392 = vunpack.c.l.b16 %v1113
    %v3393 = vunpack.c.l.b16 %v1114
    %v3394 = vunpack.c.l.b16 %v1115
    %v3395 = vunpack.c.l.b16 %v1116
    %v3396 = vunpack.c.l.b16 %v1117
    %v3397 = vunpack.c.l.b16 %v1118
    %v3398 = vunpack.c.l.b16 %v1119
    %v3399 = vunpack.c.l.b16 %v1120
    %v3400 = vunpack.c.l.b16 %v1121
    %v3401 = vunpack.c.l.b16 %v1122
    %v3402 = vunpack.c.l.b16 %v1123
    %v3403 = vunpack.c.l.b16 %v1124
    %v3404 = vunpack.c.l.b16 %v1125
    %v3405 = vunpack.c.l.b16 %v1126
    %v3406 = vunpack.c.l.b16 %v1127
    %v3407 = vunpack.c.l.b16 %v1128
    %v3408 = vunpack.c.l.b16 %v1129
    %v3409 = vunpack.c.l.b16 %v1130
    %v3410 = vunpack.c.l.b16 %v1131
    %v3411 = vunpack.c.l.b16 %v1132
    %v3412 = vunpack.c.l.b16 %v1133
    %v3413 = vunpack.c.l.b16 %v1134
    %v3414 = vunpack.c.l.b16 %v1135
    %v3415 = vunpack.c.l.b16 %v1136
    %v3416 = vunpack.c.l.b16 %v1137
    %v3417 = vunpack.c.l.b16 %v1138
    %v3418 = vunpack.c.l.b16 %v1139
    %v3419 = vunpack.c.l.b16 %v1140
    %v3420 = vunpack.c.l.b16 %v1141
    %v3421 = vunpack.c.l.b16 %v1142
    %v3422 = vunpack.c.l.b16 %v1143
    %v3423 = vpack.c.b16 %v2400, %v2399
    %v3424 = vpack.c.b16 %v2402, %v2401
    %v3425 = vpack.c.b16 %v2404, %v2403
    %v3426 = vpack.c.b16 %v2406, %v2405
    %v3427 = vpack.c.b16 %v2408, %v2407
    %v3428 = vpack.c.b16 %v2410, %v2409
    %v3429 = vpack.c.b16 %v2412, %v2411
    %v3430 = vpack.c.b16 %v2414, %v2413
    %v3431 = vpack.c.b16 %v2416, %v2415
    %v3432 = vpack.c.b16 %v2418, %v2417
    %v3433 = vpack.c.b16 %v2420, %v2419
    %v3434 = vpack.c.b16 %v2422, %v2421
    %v3435 = vpack.c.b16 %v2424, %v2423
    %v3436 = vpack.c.b16 %v2426, %v2425
    %v3437 = vpack.c.b16 %v2428, %v2427
    %v3438 = vpack.c.b16 %v2430, %v2429
    %v3439 = vpack.c.b16 %v2432, %v2431
    %v3440 = vpack.c.b16 %v2434, %v2433
    %v3441 = vpack.c.b16 %v2436, %v2435
    %v3442 = vpack.c.b16 %v2438, %v2437
    %v3443 = vpack.c.b16 %v2440, %v2439
    %v3444 = vpack.c.b16 %v2442, %v2441
    %v3445 = vpack.c.b16 %v2444, %v2443
    %v3446 = vpack.c.b16 %v2446, %v2445
    %v3447 = vpack.c.b16 %v2448, %v2447
    %v3448 = vpack.c.b16 %v2450, %v2449
    %v3449 = vpack.c.b16 %v2452, %v2451
    %v3450 = vpack.c.b16 %v2454, %v2453
    %v3451 = vpack.c.b16 %v2456, %v2455
    %v3452 = vpack.c.b16 %v2458, %v2457
    %v3453 = vpack.c.b16 %v2460, %v2459
    %v3454 = vpack.c.b16 %v2462, %v2461
    %v3455 = vpack.c.b16 %v2464, %v2463
    %v3456 = vpack.c.b16 %v2466, %v2465
    %v3457 = vpack.c.b16 %v2468, %v2467
    %v3458 = vpack.c.b16 %v2470, %v2469
    %v3459 = vpack.c.b16 %v2472, %v2471
    %v3460 = vpack.c.b16 %v2474, %v2473
    %v3461 = vpack.c.b16 %v2476, %v2475
    %v3462 = vpack.c.b16 %v2478, %v2477
    %v3463 = vpack.c.b16 %v2480, %v2479
    %v3464 = vpack.c.b16 %v2482, %v2481
    %v3465 = vpack.c.b16 %v2484, %v2483
    %v3466 = vpack.c.b16 %v2486, %v2485
    %v3467 = vpack.c.b16 %v2488, %v2487
    %v3468 = vpack.c.b16 %v2490, %v2489
    %v3469 = vpack.c.b16 %v2492, %v2491
    %v3470 = vpack.c.b16 %v2494, %v2493
    %v3471 = vpack.c.b16 %v2496, %v2495
    %v3472 = vpack.c.b16 %v2498, %v2497
    %v3473 = vpack.c.b16 %v2500, %v2499
    %v3474 = vpack.c.b16 %v2502, %v2501
    %v3475 = vpack.c.b16 %v2504, %v2503
    %v3476 = vpack.c.b16 %v2506, %v2505
    %v3477 = vpack.c.b16 %v2508, %v2507
    %v3478 = vpack.c.b16 %v2510, %v2509
    %v3479 = vpack.c.b16 %v2512, %v2511
    %v3480 = vpack.c.b16 %v2514, %v2513
    %v3481 = vpack.c.b16 %v2516, %v2515
    %v3482 = vpack.c.b16 %v2518, %v2517
    %v3483 = vpack.c.b16 %v2520, %v2519
    %v3484 = vpack.c.b16 %v2522, %v2521
    %v3485 = vpack.c.b16 %v2524, %v2523
    %v3486 = vpack.c.b16 %v2526, %v2525
    %v3487 = vpack.c.b16 %v2528, %v2527
    %v3488 = vpack.c.b16 %v2530, %v2529
    %v3489 = vpack.c.b16 %v2532, %v2531
    %v3490 = vpack.c.b16 %v2534, %v2533
    %v3491 = vpack.c.b16 %v2536, %v2535
    %v3492 = vpack.c.b16 %v2538, %v2537
    %v3493 = vpack.c.b16 %v2540, %v2539
    %v3494 = vpack.c.b16 %v2542, %v2541
    %v3495 = vpack.c.b16 %v2544, %v2543
    %v3496 = vpack.c.b16 %v2546, %v2545
    %v3497 = vpack.c.b16 %v2548, %v2547
    %v3498 = vpack.c.b16 %v2550, %v2549
    %v3499 = vpack.c.b16 %v2552, %v2551
    %v3500 = vpack.c.b16 %v2554, %v2553
    %v3501 = vpack.c.b16 %v2556, %v2555
    %v3502 = vpack.c.b16 %v2558, %v2557
    %v3503 = vpack.c.b16 %v2560, %v2559
    %v3504 = vpack.c.b16 %v2562, %v2561
    %v3505 = vpack.c.b16 %v2564, %v2563
    %v3506 = vpack.c.b16 %v2566, %v2565
    %v3507 = vpack.c.b16 %v2568, %v2567
    %v3508 = vpack.c.b16 %v2570, %v2569
    %v3509 = vpack.c.b16 %v2572, %v2571
    %v3510 = vpack.c.b16 %v2574, %v2573
    %v3511 = vpack.c.b16 %v2576, %v2575
    %v3512 = vpack.c.b16 %v2578, %v2577
    %v3513 = vpack.c.b16 %v2580, %v2579
    %v3514 = vpack.c.b16 %v2582, %v2581
    %v3515 = vpack.c.b16 %v2584, %v2583
    %v3516 = vpack.c.b16 %v2586, %v2585
    %v3517 = vpack.c.b16 %v2588, %v2587
    %v3518 = vpack.c.b16 %v2590, %v2589
    %v3519 = vpack.c.b16 %v2592, %v2591
    %v3520 = vpack.c.b16 %v2594, %v2593
    %v3521 = vpack.c.b16 %v2596, %v2595
    %v3522 = vpack.c.b16 %v2598, %v2597
    %v3523 = vpack.c.b16 %v2600, %v2599
    %v3524 = vpack.c.b16 %v2602, %v2601
    %v3525 = vpack.c.b16 %v2604, %v2603
    %v3526 = vpack.c.b16 %v2606, %v2605
    %v3527 = vpack.c.b16 %v2608, %v2607
    %v3528 = vpack.c.b16 %v2610, %v2609
    %v3529 = vpack.c.b16 %v2612, %v2611
    %v3530 = vpack.c.b16 %v2614, %v2613
    %v3531 = vpack.c.b16 %v2616, %v2615
    %v3532 = vpack.c.b16 %v2618, %v2617
    %v3533 = vpack.c.b16 %v2620, %v2619
    %v3534 = vpack.c.b16 %v2622, %v2621
    %v3535 = vpack.c.b16 %v2624, %v2623
    %v3536 = vpack.c.b16 %v2626, %v2625
    %v3537 = vpack.c.b16 %v2628, %v2627
    %v3538 = vpack.c.b16 %v2630, %v2629
    %v3539 = vpack.c.b16 %v2632, %v2631
    %v3540 = vpack.c.b16 %v2634, %v2633
    %v3541 = vpack.c.b16 %v2636, %v2635
    %v3542 = vpack.c.b16 %v2638, %v2637
    %v3543 = vpack.c.b16 %v2640, %v2639
    %v3544 = vpack.c.b16 %v2642, %v2641
    %v3545 = vpack.c.b16 %v2644, %v2643
    %v3546 = vpack.c.b16 %v2646, %v2645
    %v3547 = vpack.c.b16 %v2648, %v2647
    %v3548 = vpack.c.b16 %v2650, %v2649
    %v3549 = vpack.c.b16 %v2652, %v2651
    %v3550 = vpack.c.b16 %v2654, %v2653
    %v3551 = vpack.c.b16 %v2656, %v2655
    %v3552 = vpack.c.b16 %v2658, %v2657
    %v3553 = vpack.c.b16 %v2660, %v2659
    %v3554 = vpack.c.b16 %v2662, %v2661
    %v3555 = vpack.c.b16 %v2664, %v2663
    %v3556 = vpack.c.b16 %v2666, %v2665
    %v3557 = vpack.c.b16 %v2668, %v2667
    %v3558 = vpack.c.b16 %v2670, %v2669
    %v3559 = vpack.c.b16 %v2672, %v2671
    %v3560 = vpack.c.b16 %v2674, %v2673
    %v3561 = vpack.c.b16 %v2676, %v2675
    %v3562 = vpack.c.b16 %v2678, %v2677
    %v3563 = vpack.c.b16 %v2680, %v2679
    %v3564 = vpack.c.b16 %v2682, %v2681
    %v3565 = vpack.c.b16 %v2684, %v2683
    %v3566 = vpack.c.b16 %v2686, %v2685
    %v3567 = vpack.c.b16 %v2688, %v2687
    %v3568 = vpack.c.b16 %v2690, %v2689
    %v3569 = vpack.c.b16 %v2692, %v2691
    %v3570 = vpack.c.b16 %v2694, %v2693
    %v3571 = vpack.c.b16 %v2696, %v2695
    %v3572 = vpack.c.b16 %v2698, %v2697
    %v3573 = vpack.c.b16 %v2700, %v2699
    %v3574 = vpack.c.b16 %v2702, %v2701
    %v3575 = vpack.c.b16 %v2704, %v2703
    %v3576 = vpack.c.b16 %v2706, %v2705
    %v3577 = vpack.c.b16 %v2708, %v2707
    %v3578 = vpack.c.b16 %v2710, %v2709
    %v3579 = vpack.c.b16 %v2712, %v2711
    %v3580 = vpack.c.b16 %v2714, %v2713
    %v3581 = vpack.c.b16 %v2716, %v2715
    %v3582 = vpack.c.b16 %v2718, %v2717
    %v3583 = vpack.c.b16 %v2720, %v2719
    %v3584 = vpack.c.b16 %v2722, %v2721
    %v3585 = vpack.c.b16 %v2724, %v2723
    %v3586 = vpack.c.b16 %v2726, %v2725
    %v3587 = vpack.c.b16 %v2728, %v2727
    %v3588 = vpack.c.b16 %v2730, %v2729
    %v3589 = vpack.c.b16 %v2732, %v2731
    %v3590 = vpack.c.b16 %v2734, %v2733
    %v3591 = vpack.c.b16 %v2736, %v2735
    %v3592 = vpack.c.b16 %v2738, %v2737
    %v3593 = vpack.c.b16 %v2740, %v2739
    %v3594 = vpack.c.b16 %v2742, %v2741
    %v3595 = vpack.c.b16 %v2744, %v2743
    %v3596 = vpack.c.b16 %v2746, %v2745
    %v3597 = vpack.c.b16 %v2748, %v2747
    %v3598 = vpack.c.b16 %v2750, %v2749
    %v3599 = vpack.c.b16 %v2752, %v2751
    %v3600 = vpack.c.b16 %v2754, %v2753
    %v3601 = vpack.c.b16 %v2756, %v2755
    %v3602 = vpack.c.b16 %v2758, %v2757
    %v3603 = vpack.c.b16 %v2760, %v2759
    %v3604 = vpack.c.b16 %v2762, %v2761
    %v3605 = vpack.c.b16 %v2764, %v2763
    %v3606 = vpack.c.b16 %v2766, %v2765
    %v3607 = vpack.c.b16 %v2768, %v2767
    %v3608 = vpack.c.b16 %v2770, %v2769
    %v3609 = vpack.c.b16 %v2772, %v2771
    %v3610 = vpack.c.b16 %v2774, %v2773
    %v3611 = vpack.c.b16 %v2776, %v2775
    %v3612 = vpack.c.b16 %v2778, %v2777
    %v3613 = vpack.c.b16 %v2780, %v2779
    %v3614 = vpack.c.b16 %v2782, %v2781
    %v3615 = vpack.c.b16 %v2784, %v2783
    %v3616 = vpack.c.b16 %v2786, %v2785
    %v3617 = vpack.c.b16 %v2788, %v2787
    %v3618 = vpack.c.b16 %v2790, %v2789
    %v3619 = vpack.c.b16 %v2792, %v2791
    %v3620 = vpack.c.b16 %v2794, %v2793
    %v3621 = vpack.c.b16 %v2796, %v2795
    %v3622 = vpack.c.b16 %v2798, %v2797
    %v3623 = vpack.c.b16 %v2800, %v2799
    %v3624 = vpack.c.b16 %v2802, %v2801
    %v3625 = vpack.c.b16 %v2804, %v2803
    %v3626 = vpack.c.b16 %v2806, %v2805
    %v3627 = vpack.c.b16 %v2808, %v2807
    %v3628 = vpack.c.b16 %v2810, %v2809
    %v3629 = vpack.c.b16 %v2812, %v2811
    %v3630 = vpack.c.b16 %v2814, %v2813
    %v3631 = vpack.c.b16 %v2816, %v2815
    %v3632 = vpack.c.b16 %v2818, %v2817
    %v3633 = vpack.c.b16 %v2820, %v2819
    %v3634 = vpack.c.b16 %v2822, %v2821
    %v3635 = vpack.c.b16 %v2824, %v2823
    %v3636 = vpack.c.b16 %v2826, %v2825
    %v3637 = vpack.c.b16 %v2828, %v2827
    %v3638 = vpack.c.b16 %v2830, %v2829
    %v3639 = vpack.c.b16 %v2832, %v2831
    %v3640 = vpack.c.b16 %v2834, %v2833
    %v3641 = vpack.c.b16 %v2836, %v2835
    %v3642 = vpack.c.b16 %v2838, %v2837
    %v3643 = vpack.c.b16 %v2840, %v2839
    %v3644 = vpack.c.b16 %v2842, %v2841
    %v3645 = vpack.c.b16 %v2844, %v2843
    %v3646 = vpack.c.b16 %v2846, %v2845
    %v3647 = vpack.c.b16 %v2848, %v2847
    %v3648 = vpack.c.b16 %v2850, %v2849
    %v3649 = vpack.c.b16 %v2852, %v2851
    %v3650 = vpack.c.b16 %v2854, %v2853
    %v3651 = vpack.c.b16 %v2856, %v2855
    %v3652 = vpack.c.b16 %v2858, %v2857
    %v3653 = vpack.c.b16 %v2860, %v2859
    %v3654 = vpack.c.b16 %v2862, %v2861
    %v3655 = vpack.c.b16 %v2864, %v2863
    %v3656 = vpack.c.b16 %v2866, %v2865
    %v3657 = vpack.c.b16 %v2868, %v2867
    %v3658 = vpack.c.b16 %v2870, %v2869
    %v3659 = vpack.c.b16 %v2872, %v2871
    %v3660 = vpack.c.b16 %v2874, %v2873
    %v3661 = vpack.c.b16 %v2876, %v2875
    %v3662 = vpack.c.b16 %v2878, %v2877
    %v3663 = vpack.c.b16 %v2880, %v2879
    %v3664 = vpack.c.b16 %v2882, %v2881
    %v3665 = vpack.c.b16 %v2884, %v2883
    %v3666 = vpack.c.b16 %v2886, %v2885
    %v3667 = vpack.c.b16 %v2888, %v2887
    %v3668 = vpack.c.b16 %v2890, %v2889
    %v3669 = vpack.c.b16 %v2892, %v2891
    %v3670 = vpack.c.b16 %v2894, %v2893
    %v3671 = vpack.c.b16 %v2896, %v2895
    %v3672 = vpack.c.b16 %v2898, %v2897
    %v3673 = vpack.c.b16 %v2900, %v2899
    %v3674 = vpack.c.b16 %v2902, %v2901
    %v3675 = vpack.c.b16 %v2904, %v2903
    %v3676 = vpack.c.b16 %v2906, %v2905
    %v3677 = vpack.c.b16 %v2908, %v2907
    %v3678 = vpack.c.b16 %v2910, %v2909
    %v3679 = vpack.c.b16 %v2912, %v2911
    %v3680 = vpack.c.b16 %v2914, %v2913
    %v3681 = vpack.c.b16 %v2916, %v2915
    %v3682 = vpack.c.b16 %v2918, %v2917
    %v3683 = vpack.c.b16 %v2920, %v2919
    %v3684 = vpack.c.b16 %v2922, %v2921
    %v3685 = vpack.c.b16 %v2924, %v2923
    %v3686 = vpack.c.b16 %v2926, %v2925
    %v3687 = vpack.c.b16 %v2928, %v2927
    %v3688 = vpack.c.b16 %v2930, %v2929
    %v3689 = vpack.c.b16 %v2932, %v2931
    %v3690 = vpack.c.b16 %v2934, %v2933
    %v3691 = vpack.c.b16 %v2936, %v2935
    %v3692 = vpack.c.b16 %v2938, %v2937
    %v3693 = vpack.c.b16 %v2940, %v2939
    %v3694 = vpack.c.b16 %v2942, %v2941
    %v3695 = vpack.c.b16 %v2944, %v2943
    %v3696 = vpack.c.b16 %v2946, %v2945
    %v3697 = vpack.c.b16 %v2948, %v2947
    %v3698 = vpack.c.b16 %v2950, %v2949
    %v3699 = vpack.c.b16 %v2952, %v2951
    %v3700 = vpack.c.b16 %v2954, %v2953
    %v3701 = vpack.c.b16 %v2956, %v2955
    %v3702 = vpack.c.b16 %v2958, %v2957
    %v3703 = vpack.c.b16 %v2960, %v2959
    %v3704 = vpack.c.b16 %v2962, %v2961
    %v3705 = vpack.c.b16 %v2964, %v2963
    %v3706 = vpack.c.b16 %v2966, %v2965
    %v3707 = vpack.c.b16 %v2968, %v2967
    %v3708 = vpack.c.b16 %v2970, %v2969
    %v3709 = vpack.c.b16 %v2972, %v2971
    %v3710 = vpack.c.b16 %v2974, %v2973
    %v3711 = vpack.c.b16 %v2976, %v2975
    %v3712 = vpack.c.b16 %v2978, %v2977
    %v3713 = vpack.c.b16 %v2980, %v2979
    %v3714 = vpack.c.b16 %v2982, %v2981
    %v3715 = vpack.c.b16 %v2984, %v2983
    %v3716 = vpack.c.b16 %v2986, %v2985
    %v3717 = vpack.c.b16 %v2988, %v2987
    %v3718 = vpack.c.b16 %v2990, %v2989
    %v3719 = vpack.c.b16 %v2992, %v2991
    %v3720 = vpack.c.b16 %v2994, %v2993
    %v3721 = vpack.c.b16 %v2996, %v2995
    %v3722 = vpack.c.b16 %v2998, %v2997
    %v3723 = vpack.c.b16 %v3000, %v2999
    %v3724 = vpack.c.b16 %v3002, %v3001
    %v3725 = vpack.c.b16 %v3004, %v3003
    %v3726 = vpack.c.b16 %v3006, %v3005
    %v3727 = vpack.c.b16 %v3008, %v3007
    %v3728 = vpack.c.b16 %v3010, %v3009
    %v3729 = vpack.c.b16 %v3012, %v3011
    %v3730 = vpack.c.b16 %v3014, %v3013
    %v3731 = vpack.c.b16 %v3016, %v3015
    %v3732 = vpack.c.b16 %v3018, %v3017
    %v3733 = vpack.c.b16 %v3020, %v3019
    %v3734 = vpack.c.b16 %v3022, %v3021
    %v3735 = vpack.c.b16 %v3024, %v3023
    %v3736 = vpack.c.b16 %v3026, %v3025
    %v3737 = vpack.c.b16 %v3028, %v3027
    %v3738 = vpack.c.b16 %v3030, %v3029
    %v3739 = vpack.c.b16 %v3032, %v3031
    %v3740 = vpack.c.b16 %v3034, %v3033
    %v3741 = vpack.c.b16 %v3036, %v3035
    %v3742 = vpack.c.b16 %v3038, %v3037
    %v3743 = vpack.c.b16 %v3040, %v3039
    %v3744 = vpack.c.b16 %v3042, %v3041
    %v3745 = vpack.c.b16 %v3044, %v3043
    %v3746 = vpack.c.b16 %v3046, %v3045
    %v3747 = vpack.c.b16 %v3048, %v3047
    %v3748 = vpack.c.b16 %v3050, %v3049
    %v3749 = vpack.c.b16 %v3052, %v3051
    %v3750 = vpack.c.b16 %v3054, %v3053
    %v3751 = vpack.c.b16 %v3056, %v3055
    %v3752 = vpack.c.b16 %v3058, %v3057
    %v3753 = vpack.c.b16 %v3060, %v3059
    %v3754 = vpack.c.b16 %v3062, %v3061
    %v3755 = vpack.c.b16 %v3064, %v3063
    %v3756 = vpack.c.b16 %v3066, %v3065
    %v3757 = vpack.c.b16 %v3068, %v3067
    %v3758 = vpack.c.b16 %v3070, %v3069
    %v3759 = vpack.c.b16 %v3072, %v3071
    %v3760 = vpack.c.b16 %v3074, %v3073
    %v3761 = vpack.c.b16 %v3076, %v3075
    %v3762 = vpack.c.b16 %v3078, %v3077
    %v3763 = vpack.c.b16 %v3080, %v3079
    %v3764 = vpack.c.b16 %v3082, %v3081
    %v3765 = vpack.c.b16 %v3084, %v3083
    %v3766 = vpack.c.b16 %v3086, %v3085
    %v3767 = vpack.c.b16 %v3088, %v3087
    %v3768 = vpack.c.b16 %v3090, %v3089
    %v3769 = vpack.c.b16 %v3092, %v3091
    %v3770 = vpack.c.b16 %v3094, %v3093
    %v3771 = vpack.c.b16 %v3096, %v3095
    %v3772 = vpack.c.b16 %v3098, %v3097
    %v3773 = vpack.c.b16 %v3100, %v3099
    %v3774 = vpack.c.b16 %v3102, %v3101
    %v3775 = vpack.c.b16 %v3104, %v3103
    %v3776 = vpack.c.b16 %v3106, %v3105
    %v3777 = vpack.c.b16 %v3108, %v3107
    %v3778 = vpack.c.b16 %v3110, %v3109
    %v3779 = vpack.c.b16 %v3112, %v3111
    %v3780 = vpack.c.b16 %v3114, %v3113
    %v3781 = vpack.c.b16 %v3116, %v3115
    %v3782 = vpack.c.b16 %v3118, %v3117
    %v3783 = vpack.c.b16 %v3120, %v3119
    %v3784 = vpack.c.b16 %v3122, %v3121
    %v3785 = vpack.c.b16 %v3124, %v3123
    %v3786 = vpack.c.b16 %v3126, %v3125
    %v3787 = vpack.c.b16 %v3128, %v3127
    %v3788 = vpack.c.b16 %v3130, %v3129
    %v3789 = vpack.c.b16 %v3132, %v3131
    %v3790 = vpack.c.b16 %v3134, %v3133
    %v3791 = vpack.c.b16 %v3136, %v3135
    %v3792 = vpack.c.b16 %v3138, %v3137
    %v3793 = vpack.c.b16 %v3140, %v3139
    %v3794 = vpack.c.b16 %v3142, %v3141
    %v3795 = vpack.c.b16 %v3144, %v3143
    %v3796 = vpack.c.b16 %v3146, %v3145
    %v3797 = vpack.c.b16 %v3148, %v3147
    %v3798 = vpack.c.b16 %v3150, %v3149
    %v3799 = vpack.c.b16 %v3152, %v3151
    %v3800 = vpack.c.b16 %v3154, %v3153
    %v3801 = vpack.c.b16 %v3156, %v3155
    %v3802 = vpack.c.b16 %v3158, %v3157
    %v3803 = vpack.c.b16 %v3160, %v3159
    %v3804 = vpack.c.b16 %v3162, %v3161
    %v3805 = vpack.c.b16 %v3164, %v3163
    %v3806 = vpack.c.b16 %v3166, %v3165
    %v3807 = vpack.c.b16 %v3168, %v3167
    %v3808 = vpack.c.b16 %v3170, %v3169
    %v3809 = vpack.c.b16 %v3172, %v3171
    %v3810 = vpack.c.b16 %v3174, %v3173
    %v3811 = vpack.c.b16 %v3176, %v3175
    %v3812 = vpack.c.b16 %v3178, %v3177
    %v3813 = vpack.c.b16 %v3180, %v3179
    %v3814 = vpack.c.b16 %v3182, %v3181
    %v3815 = vpack.c.b16 %v3184, %v3183
    %v3816 = vpack.c.b16 %v3186, %v3185
    %v3817 = vpack.c.b16 %v3188, %v3187
    %v3818 = vpack.c.b16 %v3190, %v3189
    %v3819 = vpack.c.b16 %v3192, %v3191
    %v3820 = vpack.c.b16 %v3194, %v3193
    %v3821 = vpack.c.b16 %v3196, %v3195
    %v3822 = vpack.c.b16 %v3198, %v3197
    %v3823 = vpack.c.b16 %v3200, %v3199
    %v3824 = vpack.c.b16 %v3202, %v3201
    %v3825 = vpack.c.b16 %v3204, %v3203
    %v3826 = vpack.c.b16 %v3206, %v3205
    %v3827 = vpack.c.b16 %v3208, %v3207
    %v3828 = vpack.c.b16 %v3210, %v3209
    %v3829 = vpack.c.b16 %v3212, %v3211
    %v3830 = vpack.c.b16 %v3214, %v3213
    %v3831 = vpack.c.b16 %v3216, %v3215
    %v3832 = vpack.c.b16 %v3218, %v3217
    %v3833 = vpack.c.b16 %v3220, %v3219
    %v3834 = vpack.c.b16 %v3222, %v3221
    %v3835 = vpack.c.b16 %v3224, %v3223
    %v3836 = vpack.c.b16 %v3226, %v3225
    %v3837 = vpack.c.b16 %v3228, %v3227
    %v3838 = vpack.c.b16 %v3230, %v3229
    %v3839 = vpack.c.b16 %v3232, %v3231
    %v3840 = vpack.c.b16 %v3234, %v3233
    %v3841 = vpack.c.b16 %v3236, %v3235
    %v3842 = vpack.c.b16 %v3238, %v3237
    %v3843 = vpack.c.b16 %v3240, %v3239
    %v3844 = vpack.c.b16 %v3242, %v3241
    %v3845 = vpack.c.b16 %v3244, %v3243
    %v3846 = vpack.c.b16 %v3246, %v3245
    %v3847 = vpack.c.b16 %v3248, %v3247
    %v3848 = vpack.c.b16 %v3250, %v3249
    %v3849 = vpack.c.b16 %v3252, %v3251
    %v3850 = vpack.c.b16 %v3254, %v3253
    %v3851 = vpack.c.b16 %v3256, %v3255
    %v3852 = vpack.c.b16 %v3258, %v3257
    %v3853 = vpack.c.b16 %v3260, %v3259
    %v3854 = vpack.c.b16 %v3262, %v3261
    %v3855 = vpack.c.b16 %v3264, %v3263
    %v3856 = vpack.c.b16 %v3266, %v3265
    %v3857 = vpack.c.b16 %v3268, %v3267
    %v3858 = vpack.c.b16 %v3270, %v3269
    %v3859 = vpack.c.b16 %v3272, %v3271
    %v3860 = vpack.c.b16 %v3274, %v3273
    %v3861 = vpack.c.b16 %v3276, %v3275
    %v3862 = vpack.c.b16 %v3278, %v3277
    %v3863 = vpack.c.b16 %v3280, %v3279
    %v3864 = vpack.c.b16 %v3282, %v3281
    %v3865 = vpack.c.b16 %v3284, %v3283
    %v3866 = vpack.c.b16 %v3286, %v3285
    %v3867 = vpack.c.b16 %v3288, %v3287
    %v3868 = vpack.c.b16 %v3290, %v3289
    %v3869 = vpack.c.b16 %v3292, %v3291
    %v3870 = vpack.c.b16 %v3294, %v3293
    %v3871 = vpack.c.b16 %v3296, %v3295
    %v3872 = vpack.c.b16 %v3298, %v3297
    %v3873 = vpack.c.b16 %v3300, %v3299
    %v3874 = vpack.c.b16 %v3302, %v3301
    %v3875 = vpack.c.b16 %v3304, %v3303
    %v3876 = vpack.c.b16 %v3306, %v3305
    %v3877 = vpack.c.b16 %v3308, %v3307
    %v3878 = vpack.c.b16 %v3310, %v3309
    %v3879 = vpack.c.b16 %v3312, %v3311
    %v3880 = vpack.c.b16 %v3314, %v3313
    %v3881 = vpack.c.b16 %v3316, %v3315
    %v3882 = vpack.c.b16 %v3318, %v3317
    %v3883 = vpack.c.b16 %v3320, %v3319
    %v3884 = vpack.c.b16 %v3322, %v3321
    %v3885 = vpack.c.b16 %v3324, %v3323
    %v3886 = vpack.c.b16 %v3326, %v3325
    %v3887 = vpack.c.b16 %v3328, %v3327
    %v3888 = vpack.c.b16 %v3330, %v3329
    %v3889 = vpack.c.b16 %v3332, %v3331
    %v3890 = vpack.c.b16 %v3334, %v3333
    %v3891 = vpack.c.b16 %v3336, %v3335
    %v3892 = vpack.c.b16 %v3338, %v3337
    %v3893 = vpack.c.b16 %v3340, %v3339
    %v3894 = vpack.c.b16 %v3342, %v3341
    %v3895 = vpack.c.b16 %v3344, %v3343
    %v3896 = vpack.c.b16 %v3346, %v3345
    %v3897 = vpack.c.b16 %v3348, %v3347
    %v3898 = vpack.c.b16 %v3350, %v3349
    %v3899 = vpack.c.b16 %v3352, %v3351
    %v3900 = vpack.c.b16 %v3354, %v3353
    %v3901 = vpack.c.b16 %v3356, %v3355
    %v3902 = vpack.c.b16 %v3358, %v3357
    %v3903 = vpack.c.b16 %v3360, %v3359
    %v3904 = vpack.c.b16 %v3362, %v3361
    %v3905 = vpack.c.b16 %v3364, %v3363
    %v3906 = vpack.c.b16 %v3366, %v3365
    %v3907 = vpack.c.b16 %v3368, %v3367
    %v3908 = vpack.c.b16 %v3370, %v3369
    %v3909 = vpack.c.b16 %v3372, %v3371
    %v3910 = vpack.c.b16 %v3374, %v3373
    %v3911 = vpack.c.b16 %v3376, %v3375
    %v3912 = vpack.c.b16 %v3378, %v3377
    %v3913 = vpack.c.b16 %v3380, %v3379
    %v3914 = vpack.c.b16 %v3382, %v3381
    %v3915 = vpack.c.b16 %v3384, %v3383
    %v3916 = vpack.c.b16 %v3386, %v3385
    %v3917 = vpack.c.b16 %v3388, %v3387
    %v3918 = vpack.c.b16 %v3390, %v3389
    %v3919 = vpack.c.b16 %v3392, %v3391
    %v3920 = vpack.c.b16 %v3394, %v3393
    %v3921 = vpack.c.b16 %v3396, %v3395
    %v3922 = vpack.c.b16 %v3398, %v3397
    %v3923 = vpack.c.b16 %v3400, %v3399
    %v3924 = vpack.c.b16 %v3402, %v3401
    %v3925 = vpack.c.b16 %v3404, %v3403
    %v3926 = vpack.c.b16 %v3406, %v3405
    %v3927 = vpack.c.b16 %v3408, %v3407
    %v3928 = vpack.c.b16 %v3410, %v3409
    %v3929 = vpack.c.b16 %v3412, %v3411
    %v3930 = vpack.c.b16 %v3414, %v3413
    %v3931 = vpack.c.b16 %v3416, %v3415
    %v3932 = vpack.c.b16 %v3418, %v3417
    %v3933 = vpack.c.b16 %v3420, %v3419
    %v3934 = vpack.c.b16 %v3422, %v3421
    %4447 = vmatprep.subr.bf16.mxu0 0
    %4448 = vmatpush1.bf16.msra.mxu0 %v3423
    %4449 = vmatprep.subr.bf16.mxu0 0
    %4450 = vmatpush1.bf16.msra.mxu0 %v3424
    %4451 = vmatprep.subr.bf16.mxu0 0
    %4452 = vmatpush1.bf16.msra.mxu0 %v3425
    %4453 = vmatprep.subr.bf16.mxu0 0
    %4454 = vmatpush1.bf16.msra.mxu0 %v3426
    %4455 = vmatprep.subr.bf16.mxu0 0
    %4456 = vmatpush1.bf16.msra.mxu0 %v3427
    %4457 = vmatprep.subr.bf16.mxu0 0
    %4458 = vmatpush1.bf16.msra.mxu0 %v3428
    %4459 = vmatprep.subr.bf16.mxu0 0
    %4460 = vmatpush1.bf16.msra.mxu0 %v3429
    %4461 = vmatprep.subr.bf16.mxu0 0
    %4462 = vmatpush1.bf16.msra.mxu0 %v3430
    %4463 = vmatprep.subr.bf16.mxu0 0
    %4464 = vmatpush1.bf16.msra.mxu0 %v3431
    %4465 = vmatprep.subr.bf16.mxu0 0
    %4466 = vmatpush1.bf16.msra.mxu0 %v3432
    %4467 = vmatprep.subr.bf16.mxu0 0
    %4468 = vmatpush1.bf16.msra.mxu0 %v3433
    %4469 = vmatprep.subr.bf16.mxu0 0
    %4470 = vmatpush1.bf16.msra.mxu0 %v3434
    %4471 = vmatprep.subr.bf16.mxu0 0
    %4472 = vmatpush1.bf16.msra.mxu0 %v3435
    %4473 = vmatprep.subr.bf16.mxu0 0
    %4474 = vmatpush1.bf16.msra.mxu0 %v3436
    %4475 = vmatprep.subr.bf16.mxu0 0
    %4476 = vmatpush1.bf16.msra.mxu0 %v3437
    %4477 = vmatprep.subr.bf16.mxu0 0
    %4478 = vmatpush1.bf16.msra.mxu0 %v3438
    %4479 = vmatprep.mubr.bf16.mxu0 %v1248
    %4480 = vmatmul.mubr.bf16.gmra.mrb[0].mxu0 %v1247
    %v4481 = vpop.f32.mrb[0].mxu0
    %v4482 = vadd.f32 %v1149, %v4481
    %v4483 = vpop.f32.mrb[0].mxu0
    %v4484 = vpop.f32.mrb[0].mxu0
    %v4485 = vpop.f32.mrb[0].mxu0
    %4486 = vdwg.mxu0
    %4487 = vmatprep.subr.bf16.mxu0 0
    %4488 = vmatpush1.bf16.msra.mxu0 %v3439
    %4489 = vmatprep.subr.bf16.mxu0 0
    %4490 = vmatpush1.bf16.msra.mxu0 %v3440
    %4491 = vmatprep.subr.bf16.mxu0 0
    %4492 = vmatpush1.bf16.msra.mxu0 %v3441
    %4493 = vmatprep.subr.bf16.mxu0 0
    %4494 = vmatpush1.bf16.msra.mxu0 %v3442
    %4495 = vmatprep.subr.bf16.mxu0 0
    %4496 = vmatpush1.bf16.msra.mxu0 %v3443
    %4497 = vmatprep.subr.bf16.mxu0 0
    %4498 = vmatpush1.bf16.msra.mxu0 %v3444
    %4499 = vmatprep.subr.bf16.mxu0 0
    %4500 = vmatpush1.bf16.msra.mxu0 %v3445
    %4501 = vmatprep.subr.bf16.mxu0 0
    %4502 = vmatpush1.bf16.msra.mxu0 %v3446
    %4503 = vmatprep.subr.bf16.mxu0 0
    %4504 = vmatpush1.bf16.msra.mxu0 %v3447
    %4505 = vmatprep.subr.bf16.mxu0 0
    %4506 = vmatpush1.bf16.msra.mxu0 %v3448
    %4507 = vmatprep.subr.bf16.mxu0 0
    %4508 = vmatpush1.bf16.msra.mxu0 %v3449
    %4509 = vmatprep.subr.bf16.mxu0 0
    %4510 = vmatpush1.bf16.msra.mxu0 %v3450
    %4511 = vmatprep.subr.bf16.mxu0 0
    %4512 = vmatpush1.bf16.msra.mxu0 %v3451
    %4513 = vmatprep.subr.bf16.mxu0 0
    %4514 = vmatpush1.bf16.msra.mxu0 %v3452
    %4515 = vmatprep.subr.bf16.mxu0 0
    %4516 = vmatpush1.bf16.msra.mxu0 %v3453
    %4517 = vmatprep.subr.bf16.mxu0 0
    %4518 = vmatpush1.bf16.msra.mxu0 %v3454
    %4519 = vmatprep.mubr.bf16.mxu0 %v1250
    %4520 = vmatmul.mubr.bf16.gmra.mrb[0].mxu0 %v1249
    %v4521 = vpop.f32.mrb[0].mxu0
    %v4522 = vadd.f32 %v4482, %v4521
    %v4523 = vpop.f32.mrb[0].mxu0
    %v4524 = vpop.f32.mrb[0].mxu0
    %v4525 = vpop.f32.mrb[0].mxu0
    %4526 = vdwg.mxu0
    %4527 = vmatprep.subr.bf16.mxu0 0
    %4528 = vmatpush1.bf16.msra.mxu0 %v3455
    %4529 = vmatprep.subr.bf16.mxu0 0
    %4530 = vmatpush1.bf16.msra.mxu0 %v3456
    %4531 = vmatprep.subr.bf16.mxu0 0
    %4532 = vmatpush1.bf16.msra.mxu0 %v3457
    %4533 = vmatprep.subr.bf16.mxu0 0
    %4534 = vmatpush1.bf16.msra.mxu0 %v3458
    %4535 = vmatprep.subr.bf16.mxu0 0
    %4536 = vmatpush1.bf16.msra.mxu0 %v3459
    %4537 = vmatprep.subr.bf16.mxu0 0
    %4538 = vmatpush1.bf16.msra.mxu0 %v3460
    %4539 = vmatprep.subr.bf16.mxu0 0
    %4540 = vmatpush1.bf16.msra.mxu0 %v3461
    %4541 = vmatprep.subr.bf16.mxu0 0
    %4542 = vmatpush1.bf16.msra.mxu0 %v3462
    %4543 = vmatprep.subr.bf16.mxu0 0
    %4544 = vmatpush1.bf16.msra.mxu0 %v3463
    %4545 = vmatprep.subr.bf16.mxu0 0
    %4546 = vmatpush1.bf16.msra.mxu0 %v3464
    %4547 = vmatprep.subr.bf16.mxu0 0
    %4548 = vmatpush1.bf16.msra.mxu0 %v3465
    %4549 = vmatprep.subr.bf16.mxu0 0
    %4550 = vmatpush1.bf16.msra.mxu0 %v3466
    %4551 = vmatprep.subr.bf16.mxu0 0
    %4552 = vmatpush1.bf16.msra.mxu0 %v3467
    %4553 = vmatprep.subr.bf16.mxu0 0
    %4554 = vmatpush1.bf16.msra.mxu0 %v3468
    %4555 = vmatprep.subr.bf16.mxu0 0
    %4556 = vmatpush1.bf16.msra.mxu0 %v3469
    %4557 = vmatprep.subr.bf16.mxu0 0
    %4558 = vmatpush1.bf16.msra.mxu0 %v3470
    %4559 = vmatprep.mubr.bf16.mxu0 %v1252
    %4560 = vmatmul.mubr.bf16.gmra.mrb[0].mxu0 %v1251
    %v4561 = vpop.f32.mrb[0].mxu0
    %v4562 = vadd.f32 %v4522, %v4561
    %v4563 = vpop.f32.mrb[0].mxu0
    %v4564 = vpop.f32.mrb[0].mxu0
    %v4565 = vpop.f32.mrb[0].mxu0
    %4566 = vdwg.mxu0
    %4567 = vmatprep.subr.bf16.mxu0 0
    %4568 = vmatpush1.bf16.msra.mxu0 %v3471
    %4569 = vmatprep.subr.bf16.mxu0 0
    %4570 = vmatpush1.bf16.msra.mxu0 %v3472
    %4571 = vmatprep.subr.bf16.mxu0 0
    %4572 = vmatpush1.bf16.msra.mxu0 %v3473
    %4573 = vmatprep.subr.bf16.mxu0 0
    %4574 = vmatpush1.bf16.msra.mxu0 %v3474
    %4575 = vmatprep.subr.bf16.mxu0 0
    %4576 = vmatpush1.bf16.msra.mxu0 %v3475
    %4577 = vmatprep.subr.bf16.mxu0 0
    %4578 = vmatpush1.bf16.msra.mxu0 %v3476
    %4579 = vmatprep.subr.bf16.mxu0 0
    %4580 = vmatpush1.bf16.msra.mxu0 %v3477
    %4581 = vmatprep.subr.bf16.mxu0 0
    %4582 = vmatpush1.bf16.msra.mxu0 %v3478
    %4583 = vmatprep.subr.bf16.mxu0 0
    %4584 = vmatpush1.bf16.msra.mxu0 %v3479
    %4585 = vmatprep.subr.bf16.mxu0 0
    %4586 = vmatpush1.bf16.msra.mxu0 %v3480
    %4587 = vmatprep.subr.bf16.mxu0 0
    %4588 = vmatpush1.bf16.msra.mxu0 %v3481
    %4589 = vmatprep.subr.bf16.mxu0 0
    %4590 = vmatpush1.bf16.msra.mxu0 %v3482
    %4591 = vmatprep.subr.bf16.mxu0 0
    %4592 = vmatpush1.bf16.msra.mxu0 %v3483
    %4593 = vmatprep.subr.bf16.mxu0 0
    %4594 = vmatpush1.bf16.msra.mxu0 %v3484
    %4595 = vmatprep.subr.bf16.mxu0 0
    %4596 = vmatpush1.bf16.msra.mxu0 %v3485
    %4597 = vmatprep.subr.bf16.mxu0 0
    %4598 = vmatpush1.bf16.msra.mxu0 %v3486
    %4599 = vmatprep.mubr.bf16.mxu0 %v1254
    %4600 = vmatmul.mubr.bf16.gmra.mrb[0].mxu0 %v1253
    %v4601 = vpop.f32.mrb[0].mxu0
    %v4602 = vadd.f32 %v4562, %v4601
    %v4603 = vpop.f32.mrb[0].mxu0
    %v4604 = vpop.f32.mrb[0].mxu0
    %v4605 = vpop.f32.mrb[0].mxu0
    %4606 = vdwg.mxu0
    %4607 = vmatprep.subr.bf16.mxu0 0
    %4608 = vmatpush1.bf16.msra.mxu0 %v3487
    %4609 = vmatprep.subr.bf16.mxu0 0
    %4610 = vmatpush1.bf16.msra.mxu0 %v3488
    %4611 = vmatprep.subr.bf16.mxu0 0
    %4612 = vmatpush1.bf16.msra.mxu0 %v3489
    %4613 = vmatprep.subr.bf16.mxu0 0
    %4614 = vmatpush1.bf16.msra.mxu0 %v3490
    %4615 = vmatprep.subr.bf16.mxu0 0
    %4616 = vmatpush1.bf16.msra.mxu0 %v3491
    %4617 = vmatprep.subr.bf16.mxu0 0
    %4618 = vmatpush1.bf16.msra.mxu0 %v3492
    %4619 = vmatprep.subr.bf16.mxu0 0
    %4620 = vmatpush1.bf16.msra.mxu0 %v3493
    %4621 = vmatprep.subr.bf16.mxu0 0
    %4622 = vmatpush1.bf16.msra.mxu0 %v3494
    %4623 = vmatprep.subr.bf16.mxu0 0
    %4624 = vmatpush1.bf16.msra.mxu0 %v3495
    %4625 = vmatprep.subr.bf16.mxu0 0
    %4626 = vmatpush1.bf16.msra.mxu0 %v3496
    %4627 = vmatprep.subr.bf16.mxu0 0
    %4628 = vmatpush1.bf16.msra.mxu0 %v3497
    %4629 = vmatprep.subr.bf16.mxu0 0
    %4630 = vmatpush1.bf16.msra.mxu0 %v3498
    %4631 = vmatprep.subr.bf16.mxu0 0
    %4632 = vmatpush1.bf16.msra.mxu0 %v3499
    %4633 = vmatprep.subr.bf16.mxu0 0
    %4634 = vmatpush1.bf16.msra.mxu0 %v3500
    %4635 = vmatprep.subr.bf16.mxu0 0
    %4636 = vmatpush1.bf16.msra.mxu0 %v3501
    %4637 = vmatprep.subr.bf16.mxu0 0
    %4638 = vmatpush1.bf16.msra.mxu0 %v3502
    %4639 = vmatprep.mubr.bf16.mxu0 %v1256
    %4640 = vmatmul.mubr.bf16.gmra.mrb[0].mxu0 %v1255
    %v4641 = vpop.f32.mrb[0].mxu0
    %v4642 = vadd.f32 %v4602, %v4641
    %v4643 = vpop.f32.mrb[0].mxu0
    %v4644 = vpop.f32.mrb[0].mxu0
    %v4645 = vpop.f32.mrb[0].mxu0
    %4646 = vdwg.mxu0
    %4647 = vmatprep.subr.bf16.mxu0 0
    %4648 = vmatpush1.bf16.msra.mxu0 %v3503
    %4649 = vmatprep.subr.bf16.mxu0 0
    %4650 = vmatpush1.bf16.msra.mxu0 %v3504
    %4651 = vmatprep.subr.bf16.mxu0 0
    %4652 = vmatpush1.bf16.msra.mxu0 %v3505
    %4653 = vmatprep.subr.bf16.mxu0 0
    %4654 = vmatpush1.bf16.msra.mxu0 %v3506
    %4655 = vmatprep.subr.bf16.mxu0 0
    %4656 = vmatpush1.bf16.msra.mxu0 %v3507
    %4657 = vmatprep.subr.bf16.mxu0 0
    %4658 = vmatpush1.bf16.msra.mxu0 %v3508
    %4659 = vmatprep.subr.bf16.mxu0 0
    %4660 = vmatpush1.bf16.msra.mxu0 %v3509
    %4661 = vmatprep.subr.bf16.mxu0 0
    %4662 = vmatpush1.bf16.msra.mxu0 %v3510
    %4663 = vmatprep.subr.bf16.mxu0 0
    %4664 = vmatpush1.bf16.msra.mxu0 %v3511
    %4665 = vmatprep.subr.bf16.mxu0 0
    %4666 = vmatpush1.bf16.msra.mxu0 %v3512
    %4667 = vmatprep.subr.bf16.mxu0 0
    %4668 = vmatpush1.bf16.msra.mxu0 %v3513
    %4669 = vmatprep.subr.bf16.mxu0 0
    %4670 = vmatpush1.bf16.msra.mxu0 %v3514
    %4671 = vmatprep.subr.bf16.mxu0 0
    %4672 = vmatpush1.bf16.msra.mxu0 %v3515
    %4673 = vmatprep.subr.bf16.mxu0 0
    %4674 = vmatpush1.bf16.msra.mxu0 %v3516
    %4675 = vmatprep.subr.bf16.mxu0 0
    %4676 = vmatpush1.bf16.msra.mxu0 %v3517
    %4677 = vmatprep.subr.bf16.mxu0 0
    %4678 = vmatpush1.bf16.msra.mxu0 %v3518
    %4679 = vmatprep.mubr.bf16.mxu0 %v1258
    %4680 = vmatmul.mubr.bf16.gmra.mrb[0].mxu0 %v1257
    %v4681 = vpop.f32.mrb[0].mxu0
    %v4682 = vadd.f32 %v4642, %v4681
    %v4683 = vpop.f32.mrb[0].mxu0
    %v4684 = vpop.f32.mrb[0].mxu0
    %v4685 = vpop.f32.mrb[0].mxu0
    %4686 = vdwg.mxu0
    %4687 = vmatprep.subr.bf16.mxu0 0
    %4688 = vmatpush1.bf16.msra.mxu0 %v3519
    %4689 = vmatprep.subr.bf16.mxu0 0
    %4690 = vmatpush1.bf16.msra.mxu0 %v3520
    %4691 = vmatprep.subr.bf16.mxu0 0
    %4692 = vmatpush1.bf16.msra.mxu0 %v3521
    %4693 = vmatprep.subr.bf16.mxu0 0
    %4694 = vmatpush1.bf16.msra.mxu0 %v3522
    %4695 = vmatprep.subr.bf16.mxu0 0
    %4696 = vmatpush1.bf16.msra.mxu0 %v3523
    %4697 = vmatprep.subr.bf16.mxu0 0
    %4698 = vmatpush1.bf16.msra.mxu0 %v3524
    %4699 = vmatprep.subr.bf16.mxu0 0
    %4700 = vmatpush1.bf16.msra.mxu0 %v3525
    %4701 = vmatprep.subr.bf16.mxu0 0
    %4702 = vmatpush1.bf16.msra.mxu0 %v3526
    %4703 = vmatprep.subr.bf16.mxu0 0
    %4704 = vmatpush1.bf16.msra.mxu0 %v3527
    %4705 = vmatprep.subr.bf16.mxu0 0
    %4706 = vmatpush1.bf16.msra.mxu0 %v3528
    %4707 = vmatprep.subr.bf16.mxu0 0
    %4708 = vmatpush1.bf16.msra.mxu0 %v3529
    %4709 = vmatprep.subr.bf16.mxu0 0
    %4710 = vmatpush1.bf16.msra.mxu0 %v3530
    %4711 = vmatprep.subr.bf16.mxu0 0
    %4712 = vmatpush1.bf16.msra.mxu0 %v3531
    %4713 = vmatprep.subr.bf16.mxu0 0
    %4714 = vmatpush1.bf16.msra.mxu0 %v3532
    %4715 = vmatprep.subr.bf16.mxu0 0
    %4716 = vmatpush1.bf16.msra.mxu0 %v3533
    %4717 = vmatprep.subr.bf16.mxu0 0
    %4718 = vmatpush1.bf16.msra.mxu0 %v3534
    %4719 = vmatprep.mubr.bf16.mxu0 %v1260
    %4720 = vmatmul.mubr.bf16.gmra.mrb[0].mxu0 %v1259
    %v4721 = vpop.f32.mrb[0].mxu0
    %v4722 = vadd.f32 %v4682, %v4721
    %v4723 = vpop.f32.mrb[0].mxu0
    %v4724 = vpop.f32.mrb[0].mxu0
    %v4725 = vpop.f32.mrb[0].mxu0
    %4726 = vdwg.mxu0
    %4727 = vmatprep.subr.bf16.mxu0 0
    %4728 = vmatpush1.bf16.msra.mxu0 %v3535
    %4729 = vmatprep.subr.bf16.mxu0 0
    %4730 = vmatpush1.bf16.msra.mxu0 %v3536
    %4731 = vmatprep.subr.bf16.mxu0 0
    %4732 = vmatpush1.bf16.msra.mxu0 %v3537
    %4733 = vmatprep.subr.bf16.mxu0 0
    %4734 = vmatpush1.bf16.msra.mxu0 %v3538
    %4735 = vmatprep.subr.bf16.mxu0 0
    %4736 = vmatpush1.bf16.msra.mxu0 %v3539
    %4737 = vmatprep.subr.bf16.mxu0 0
    %4738 = vmatpush1.bf16.msra.mxu0 %v3540
    %4739 = vmatprep.subr.bf16.mxu0 0
    %4740 = vmatpush1.bf16.msra.mxu0 %v3541
    %4741 = vmatprep.subr.bf16.mxu0 0
    %4742 = vmatpush1.bf16.msra.mxu0 %v3542
    %4743 = vmatprep.subr.bf16.mxu0 0
    %4744 = vmatpush1.bf16.msra.mxu0 %v3543
    %4745 = vmatprep.subr.bf16.mxu0 0
    %4746 = vmatpush1.bf16.msra.mxu0 %v3544
    %4747 = vmatprep.subr.bf16.mxu0 0
    %4748 = vmatpush1.bf16.msra.mxu0 %v3545
    %4749 = vmatprep.subr.bf16.mxu0 0
    %4750 = vmatpush1.bf16.msra.mxu0 %v3546
    %4751 = vmatprep.subr.bf16.mxu0 0
    %4752 = vmatpush1.bf16.msra.mxu0 %v3547
    %4753 = vmatprep.subr.bf16.mxu0 0
    %4754 = vmatpush1.bf16.msra.mxu0 %v3548
    %4755 = vmatprep.subr.bf16.mxu0 0
    %4756 = vmatpush1.bf16.msra.mxu0 %v3549
    %4757 = vmatprep.subr.bf16.mxu0 0
    %4758 = vmatpush1.bf16.msra.mxu0 %v3550
    %4759 = vmatprep.mubr.bf16.mxu0 %v1262
    %4760 = vmatmul.mubr.bf16.gmra.mrb[0].mxu0 %v1261
    %v4761 = vpop.f32.mrb[0].mxu0
    %v4762 = vadd.f32 %v4722, %v4761
    %v4763 = vpop.f32.mrb[0].mxu0
    %v4764 = vpop.f32.mrb[0].mxu0
    %v4765 = vpop.f32.mrb[0].mxu0
    %4766 = vdwg.mxu0
    %4767 = vmatprep.subr.bf16.mxu0 0
    %4768 = vmatpush1.bf16.msra.mxu0 %v3551
    %4769 = vmatprep.subr.bf16.mxu0 0
    %4770 = vmatpush1.bf16.msra.mxu0 %v3552
    %4771 = vmatprep.subr.bf16.mxu0 0
    %4772 = vmatpush1.bf16.msra.mxu0 %v3553
    %4773 = vmatprep.subr.bf16.mxu0 0
    %4774 = vmatpush1.bf16.msra.mxu0 %v3554
    %4775 = vmatprep.subr.bf16.mxu0 0
    %4776 = vmatpush1.bf16.msra.mxu0 %v3555
    %4777 = vmatprep.subr.bf16.mxu0 0
    %4778 = vmatpush1.bf16.msra.mxu0 %v3556
    %4779 = vmatprep.subr.bf16.mxu0 0
    %4780 = vmatpush1.bf16.msra.mxu0 %v3557
    %4781 = vmatprep.subr.bf16.mxu0 0
    %4782 = vmatpush1.bf16.msra.mxu0 %v3558
    %4783 = vmatprep.subr.bf16.mxu0 0
    %4784 = vmatpush1.bf16.msra.mxu0 %v3559
    %4785 = vmatprep.subr.bf16.mxu0 0
    %4786 = vmatpush1.bf16.msra.mxu0 %v3560
    %4787 = vmatprep.subr.bf16.mxu0 0
    %4788 = vmatpush1.bf16.msra.mxu0 %v3561
    %4789 = vmatprep.subr.bf16.mxu0 0
    %4790 = vmatpush1.bf16.msra.mxu0 %v3562
    %4791 = vmatprep.subr.bf16.mxu0 0
    %4792 = vmatpush1.bf16.msra.mxu0 %v3563
    %4793 = vmatprep.subr.bf16.mxu0 0
    %4794 = vmatpush1.bf16.msra.mxu0 %v3564
    %4795 = vmatprep.subr.bf16.mxu0 0
    %4796 = vmatpush1.bf16.msra.mxu0 %v3565
    %4797 = vmatprep.subr.bf16.mxu0 0
    %4798 = vmatpush1.bf16.msra.mxu0 %v3566
    %4799 = vmatprep.mubr.bf16.mxu0 %v1264
    %4800 = vmatmul.mubr.bf16.gmra.mrb[0].mxu0 %v1263
    %v4801 = vpop.f32.mrb[0].mxu0
    %v4802 = vadd.f32 %v4762, %v4801
    %v4803 = vpop.f32.mrb[0].mxu0
    %v4804 = vpop.f32.mrb[0].mxu0
    %v4805 = vpop.f32.mrb[0].mxu0
    %4806 = vdwg.mxu0
    %4807 = vmatprep.subr.bf16.mxu0 0
    %4808 = vmatpush1.bf16.msra.mxu0 %v3567
    %4809 = vmatprep.subr.bf16.mxu0 0
    %4810 = vmatpush1.bf16.msra.mxu0 %v3568
    %4811 = vmatprep.subr.bf16.mxu0 0
    %4812 = vmatpush1.bf16.msra.mxu0 %v3569
    %4813 = vmatprep.subr.bf16.mxu0 0
    %4814 = vmatpush1.bf16.msra.mxu0 %v3570
    %4815 = vmatprep.subr.bf16.mxu0 0
    %4816 = vmatpush1.bf16.msra.mxu0 %v3571
    %4817 = vmatprep.subr.bf16.mxu0 0
    %4818 = vmatpush1.bf16.msra.mxu0 %v3572
    %4819 = vmatprep.subr.bf16.mxu0 0
    %4820 = vmatpush1.bf16.msra.mxu0 %v3573
    %4821 = vmatprep.subr.bf16.mxu0 0
    %4822 = vmatpush1.bf16.msra.mxu0 %v3574
    %4823 = vmatprep.subr.bf16.mxu0 0
    %4824 = vmatpush1.bf16.msra.mxu0 %v3575
    %4825 = vmatprep.subr.bf16.mxu0 0
    %4826 = vmatpush1.bf16.msra.mxu0 %v3576
    %4827 = vmatprep.subr.bf16.mxu0 0
    %4828 = vmatpush1.bf16.msra.mxu0 %v3577
    %4829 = vmatprep.subr.bf16.mxu0 0
    %4830 = vmatpush1.bf16.msra.mxu0 %v3578
    %4831 = vmatprep.subr.bf16.mxu0 0
    %4832 = vmatpush1.bf16.msra.mxu0 %v3579
    %4833 = vmatprep.subr.bf16.mxu0 0
    %4834 = vmatpush1.bf16.msra.mxu0 %v3580
    %4835 = vmatprep.subr.bf16.mxu0 0
    %4836 = vmatpush1.bf16.msra.mxu0 %v3581
    %4837 = vmatprep.subr.bf16.mxu0 0
    %4838 = vmatpush1.bf16.msra.mxu0 %v3582
    %4839 = vmatprep.mubr.bf16.mxu0 %v1266
    %4840 = vmatmul.mubr.bf16.gmra.mrb[0].mxu0 %v1265
    %v4841 = vpop.f32.mrb[0].mxu0
    %v4842 = vadd.f32 %v4802, %v4841
    %v4843 = vpop.f32.mrb[0].mxu0
    %v4844 = vpop.f32.mrb[0].mxu0
    %v4845 = vpop.f32.mrb[0].mxu0
    %4846 = vdwg.mxu0
    %4847 = vmatprep.subr.bf16.mxu0 0
    %4848 = vmatpush1.bf16.msra.mxu0 %v3583
    %4849 = vmatprep.subr.bf16.mxu0 0
    %4850 = vmatpush1.bf16.msra.mxu0 %v3584
    %4851 = vmatprep.subr.bf16.mxu0 0
    %4852 = vmatpush1.bf16.msra.mxu0 %v3585
    %4853 = vmatprep.subr.bf16.mxu0 0
    %4854 = vmatpush1.bf16.msra.mxu0 %v3586
    %4855 = vmatprep.subr.bf16.mxu0 0
    %4856 = vmatpush1.bf16.msra.mxu0 %v3587
    %4857 = vmatprep.subr.bf16.mxu0 0
    %4858 = vmatpush1.bf16.msra.mxu0 %v3588
    %4859 = vmatprep.subr.bf16.mxu0 0
    %4860 = vmatpush1.bf16.msra.mxu0 %v3589
    %4861 = vmatprep.subr.bf16.mxu0 0
    %4862 = vmatpush1.bf16.msra.mxu0 %v3590
    %4863 = vmatprep.subr.bf16.mxu0 0
    %4864 = vmatpush1.bf16.msra.mxu0 %v3591
    %4865 = vmatprep.subr.bf16.mxu0 0
    %4866 = vmatpush1.bf16.msra.mxu0 %v3592
    %4867 = vmatprep.subr.bf16.mxu0 0
    %4868 = vmatpush1.bf16.msra.mxu0 %v3593
    %4869 = vmatprep.subr.bf16.mxu0 0
    %4870 = vmatpush1.bf16.msra.mxu0 %v3594
    %4871 = vmatprep.subr.bf16.mxu0 0
    %4872 = vmatpush1.bf16.msra.mxu0 %v3595
    %4873 = vmatprep.subr.bf16.mxu0 0
    %4874 = vmatpush1.bf16.msra.mxu0 %v3596
    %4875 = vmatprep.subr.bf16.mxu0 0
    %4876 = vmatpush1.bf16.msra.mxu0 %v3597
    %4877 = vmatprep.subr.bf16.mxu0 0
    %4878 = vmatpush1.bf16.msra.mxu0 %v3598
    %4879 = vmatprep.mubr.bf16.mxu0 %v1268
    %4880 = vmatmul.mubr.bf16.gmra.mrb[0].mxu0 %v1267
    %v4881 = vpop.f32.mrb[0].mxu0
    %v4882 = vadd.f32 %v4842, %v4881
    %v4883 = vpop.f32.mrb[0].mxu0
    %v4884 = vpop.f32.mrb[0].mxu0
    %v4885 = vpop.f32.mrb[0].mxu0
    %4886 = vdwg.mxu0
    %4887 = vmatprep.subr.bf16.mxu0 0
    %4888 = vmatpush1.bf16.msra.mxu0 %v3599
    %4889 = vmatprep.subr.bf16.mxu0 0
    %4890 = vmatpush1.bf16.msra.mxu0 %v3600
    %4891 = vmatprep.subr.bf16.mxu0 0
    %4892 = vmatpush1.bf16.msra.mxu0 %v3601
    %4893 = vmatprep.subr.bf16.mxu0 0
    %4894 = vmatpush1.bf16.msra.mxu0 %v3602
    %4895 = vmatprep.subr.bf16.mxu0 0
    %4896 = vmatpush1.bf16.msra.mxu0 %v3603
    %4897 = vmatprep.subr.bf16.mxu0 0
    %4898 = vmatpush1.bf16.msra.mxu0 %v3604
    %4899 = vmatprep.subr.bf16.mxu0 0
    %4900 = vmatpush1.bf16.msra.mxu0 %v3605
    %4901 = vmatprep.subr.bf16.mxu0 0
    %4902 = vmatpush1.bf16.msra.mxu0 %v3606
    %4903 = vmatprep.subr.bf16.mxu0 0
    %4904 = vmatpush1.bf16.msra.mxu0 %v3607
    %4905 = vmatprep.subr.bf16.mxu0 0
    %4906 = vmatpush1.bf16.msra.mxu0 %v3608
    %4907 = vmatprep.subr.bf16.mxu0 0
    %4908 = vmatpush1.bf16.msra.mxu0 %v3609
    %4909 = vmatprep.subr.bf16.mxu0 0
    %4910 = vmatpush1.bf16.msra.mxu0 %v3610
    %4911 = vmatprep.subr.bf16.mxu0 0
    %4912 = vmatpush1.bf16.msra.mxu0 %v3611
    %4913 = vmatprep.subr.bf16.mxu0 0
    %4914 = vmatpush1.bf16.msra.mxu0 %v3612
    %4915 = vmatprep.subr.bf16.mxu0 0
    %4916 = vmatpush1.bf16.msra.mxu0 %v3613
    %4917 = vmatprep.subr.bf16.mxu0 0
    %4918 = vmatpush1.bf16.msra.mxu0 %v3614
    %4919 = vmatprep.mubr.bf16.mxu0 %v1270
    %4920 = vmatmul.mubr.bf16.gmra.mrb[0].mxu0 %v1269
    %v4921 = vpop.f32.mrb[0].mxu0
    %v4922 = vadd.f32 %v4882, %v4921
    %v4923 = vpop.f32.mrb[0].mxu0
    %v4924 = vpop.f32.mrb[0].mxu0
    %v4925 = vpop.f32.mrb[0].mxu0
    %4926 = vdwg.mxu0
    %4927 = vmatprep.subr.bf16.mxu0 0
    %4928 = vmatpush1.bf16.msra.mxu0 %v3615
    %4929 = vmatprep.subr.bf16.mxu0 0
    %4930 = vmatpush1.bf16.msra.mxu0 %v3616
    %4931 = vmatprep.subr.bf16.mxu0 0
    %4932 = vmatpush1.bf16.msra.mxu0 %v3617
    %4933 = vmatprep.subr.bf16.mxu0 0
    %4934 = vmatpush1.bf16.msra.mxu0 %v3618
    %4935 = vmatprep.subr.bf16.mxu0 0
    %4936 = vmatpush1.bf16.msra.mxu0 %v3619
    %4937 = vmatprep.subr.bf16.mxu0 0
    %4938 = vmatpush1.bf16.msra.mxu0 %v3620
    %4939 = vmatprep.subr.bf16.mxu0 0
    %4940 = vmatpush1.bf16.msra.mxu0 %v3621
    %4941 = vmatprep.subr.bf16.mxu0 0
    %4942 = vmatpush1.bf16.msra.mxu0 %v3622
    %4943 = vmatprep.subr.bf16.mxu0 0
    %4944 = vmatpush1.bf16.msra.mxu0 %v3623
    %4945 = vmatprep.subr.bf16.mxu0 0
    %4946 = vmatpush1.bf16.msra.mxu0 %v3624
    %4947 = vmatprep.subr.bf16.mxu0 0
    %4948 = vmatpush1.bf16.msra.mxu0 %v3625
    %4949 = vmatprep.subr.bf16.mxu0 0
    %4950 = vmatpush1.bf16.msra.mxu0 %v3626
    %4951 = vmatprep.subr.bf16.mxu0 0
    %4952 = vmatpush1.bf16.msra.mxu0 %v3627
    %4953 = vmatprep.subr.bf16.mxu0 0
    %4954 = vmatpush1.bf16.msra.mxu0 %v3628
    %4955 = vmatprep.subr.bf16.mxu0 0
    %4956 = vmatpush1.bf16.msra.mxu0 %v3629
    %4957 = vmatprep.subr.bf16.mxu0 0
    %4958 = vmatpush1.bf16.msra.mxu0 %v3630
    %4959 = vmatprep.mubr.bf16.mxu0 %v1272
    %4960 = vmatmul.mubr.bf16.gmra.mrb[0].mxu0 %v1271
    %v4961 = vpop.f32.mrb[0].mxu0
    %v4962 = vadd.f32 %v4922, %v4961
    %v4963 = vpop.f32.mrb[0].mxu0
    %v4964 = vpop.f32.mrb[0].mxu0
    %v4965 = vpop.f32.mrb[0].mxu0
    %4966 = vdwg.mxu0
    %4967 = vmatprep.subr.bf16.mxu0 0
    %4968 = vmatpush1.bf16.msra.mxu0 %v3631
    %4969 = vmatprep.subr.bf16.mxu0 0
    %4970 = vmatpush1.bf16.msra.mxu0 %v3632
    %4971 = vmatprep.subr.bf16.mxu0 0
    %4972 = vmatpush1.bf16.msra.mxu0 %v3633
    %4973 = vmatprep.subr.bf16.mxu0 0
    %4974 = vmatpush1.bf16.msra.mxu0 %v3634
    %4975 = vmatprep.subr.bf16.mxu0 0
    %4976 = vmatpush1.bf16.msra.mxu0 %v3635
    %4977 = vmatprep.subr.bf16.mxu0 0
    %4978 = vmatpush1.bf16.msra.mxu0 %v3636
    %4979 = vmatprep.subr.bf16.mxu0 0
    %4980 = vmatpush1.bf16.msra.mxu0 %v3637
    %4981 = vmatprep.subr.bf16.mxu0 0
    %4982 = vmatpush1.bf16.msra.mxu0 %v3638
    %4983 = vmatprep.subr.bf16.mxu0 0
    %4984 = vmatpush1.bf16.msra.mxu0 %v3639
    %4985 = vmatprep.subr.bf16.mxu0 0
    %4986 = vmatpush1.bf16.msra.mxu0 %v3640
    %4987 = vmatprep.subr.bf16.mxu0 0
    %4988 = vmatpush1.bf16.msra.mxu0 %v3641
    %4989 = vmatprep.subr.bf16.mxu0 0
    %4990 = vmatpush1.bf16.msra.mxu0 %v3642
    %4991 = vmatprep.subr.bf16.mxu0 0
    %4992 = vmatpush1.bf16.msra.mxu0 %v3643
    %4993 = vmatprep.subr.bf16.mxu0 0
    %4994 = vmatpush1.bf16.msra.mxu0 %v3644
    %4995 = vmatprep.subr.bf16.mxu0 0
    %4996 = vmatpush1.bf16.msra.mxu0 %v3645
    %4997 = vmatprep.subr.bf16.mxu0 0
    %4998 = vmatpush1.bf16.msra.mxu0 %v3646
    %4999 = vmatprep.mubr.bf16.mxu0 %v1274
    %5000 = vmatmul.mubr.bf16.gmra.mrb[0].mxu0 %v1273
    %v5001 = vpop.f32.mrb[0].mxu0
    %v5002 = vadd.f32 %v4962, %v5001
    %v5003 = vpop.f32.mrb[0].mxu0
    %v5004 = vpop.f32.mrb[0].mxu0
    %v5005 = vpop.f32.mrb[0].mxu0
    %5006 = vdwg.mxu0
    %5007 = vmatprep.subr.bf16.mxu0 0
    %5008 = vmatpush1.bf16.msra.mxu0 %v3647
    %5009 = vmatprep.subr.bf16.mxu0 0
    %5010 = vmatpush1.bf16.msra.mxu0 %v3648
    %5011 = vmatprep.subr.bf16.mxu0 0
    %5012 = vmatpush1.bf16.msra.mxu0 %v3649
    %5013 = vmatprep.subr.bf16.mxu0 0
    %5014 = vmatpush1.bf16.msra.mxu0 %v3650
    %5015 = vmatprep.subr.bf16.mxu0 0
    %5016 = vmatpush1.bf16.msra.mxu0 %v3651
    %5017 = vmatprep.subr.bf16.mxu0 0
    %5018 = vmatpush1.bf16.msra.mxu0 %v3652
    %5019 = vmatprep.subr.bf16.mxu0 0
    %5020 = vmatpush1.bf16.msra.mxu0 %v3653
    %5021 = vmatprep.subr.bf16.mxu0 0
    %5022 = vmatpush1.bf16.msra.mxu0 %v3654
    %5023 = vmatprep.subr.bf16.mxu0 0
    %5024 = vmatpush1.bf16.msra.mxu0 %v3655
    %5025 = vmatprep.subr.bf16.mxu0 0
    %5026 = vmatpush1.bf16.msra.mxu0 %v3656
    %5027 = vmatprep.subr.bf16.mxu0 0
    %5028 = vmatpush1.bf16.msra.mxu0 %v3657
    %5029 = vmatprep.subr.bf16.mxu0 0
    %5030 = vmatpush1.bf16.msra.mxu0 %v3658
    %5031 = vmatprep.subr.bf16.mxu0 0
    %5032 = vmatpush1.bf16.msra.mxu0 %v3659
    %5033 = vmatprep.subr.bf16.mxu0 0
    %5034 = vmatpush1.bf16.msra.mxu0 %v3660
    %5035 = vmatprep.subr.bf16.mxu0 0
    %5036 = vmatpush1.bf16.msra.mxu0 %v3661
    %5037 = vmatprep.subr.bf16.mxu0 0
    %5038 = vmatpush1.bf16.msra.mxu0 %v3662
    %5039 = vmatprep.mubr.bf16.mxu0 %v1276
    %5040 = vmatmul.mubr.bf16.gmra.mrb[0].mxu0 %v1275
    %v5041 = vpop.f32.mrb[0].mxu0
    %v5042 = vadd.f32 %v5002, %v5041
    %v5043 = vpop.f32.mrb[0].mxu0
    %v5044 = vpop.f32.mrb[0].mxu0
    %v5045 = vpop.f32.mrb[0].mxu0
    %5046 = vdwg.mxu0
    %5047 = vmatprep.subr.bf16.mxu0 0
    %5048 = vmatpush1.bf16.msra.mxu0 %v3663
    %5049 = vmatprep.subr.bf16.mxu0 0
    %5050 = vmatpush1.bf16.msra.mxu0 %v3664
    %5051 = vmatprep.subr.bf16.mxu0 0
    %5052 = vmatpush1.bf16.msra.mxu0 %v3665
    %5053 = vmatprep.subr.bf16.mxu0 0
    %5054 = vmatpush1.bf16.msra.mxu0 %v3666
    %5055 = vmatprep.subr.bf16.mxu0 0
    %5056 = vmatpush1.bf16.msra.mxu0 %v3667
    %5057 = vmatprep.subr.bf16.mxu0 0
    %5058 = vmatpush1.bf16.msra.mxu0 %v3668
    %5059 = vmatprep.subr.bf16.mxu0 0
    %5060 = vmatpush1.bf16.msra.mxu0 %v3669
    %5061 = vmatprep.subr.bf16.mxu0 0
    %5062 = vmatpush1.bf16.msra.mxu0 %v3670
    %5063 = vmatprep.subr.bf16.mxu0 0
    %5064 = vmatpush1.bf16.msra.mxu0 %v3671
    %5065 = vmatprep.subr.bf16.mxu0 0
    %5066 = vmatpush1.bf16.msra.mxu0 %v3672
    %5067 = vmatprep.subr.bf16.mxu0 0
    %5068 = vmatpush1.bf16.msra.mxu0 %v3673
    %5069 = vmatprep.subr.bf16.mxu0 0
    %5070 = vmatpush1.bf16.msra.mxu0 %v3674
    %5071 = vmatprep.subr.bf16.mxu0 0
    %5072 = vmatpush1.bf16.msra.mxu0 %v3675
    %5073 = vmatprep.subr.bf16.mxu0 0
    %5074 = vmatpush1.bf16.msra.mxu0 %v3676
    %5075 = vmatprep.subr.bf16.mxu0 0
    %5076 = vmatpush1.bf16.msra.mxu0 %v3677
    %5077 = vmatprep.subr.bf16.mxu0 0
    %5078 = vmatpush1.bf16.msra.mxu0 %v3678
    %5079 = vmatprep.mubr.bf16.mxu0 %v1278
    %5080 = vmatmul.mubr.bf16.gmra.mrb[0].mxu0 %v1277
    %v5081 = vpop.f32.mrb[0].mxu0
    %v5082 = vadd.f32 %v5042, %v5081
    %v5083 = vpop.f32.mrb[0].mxu0
    %v5084 = vpop.f32.mrb[0].mxu0
    %v5085 = vpop.f32.mrb[0].mxu0
    %5086 = vdwg.mxu0
    %5087 = vmatprep.subr.bf16.mxu0 0
    %5088 = vmatpush1.bf16.msra.mxu0 %v3679
    %5089 = vmatprep.subr.bf16.mxu0 0
    %5090 = vmatpush1.bf16.msra.mxu0 %v3680
    %5091 = vmatprep.subr.bf16.mxu0 0
    %5092 = vmatpush1.bf16.msra.mxu0 %v3681
    %5093 = vmatprep.subr.bf16.mxu0 0
    %5094 = vmatpush1.bf16.msra.mxu0 %v3682
    %5095 = vmatprep.subr.bf16.mxu0 0
    %5096 = vmatpush1.bf16.msra.mxu0 %v3683
    %5097 = vmatprep.subr.bf16.mxu0 0
    %5098 = vmatpush1.bf16.msra.mxu0 %v3684
    %5099 = vmatprep.subr.bf16.mxu0 0
    %5100 = vmatpush1.bf16.msra.mxu0 %v3685
    %5101 = vmatprep.subr.bf16.mxu0 0
    %5102 = vmatpush1.bf16.msra.mxu0 %v3686
    %5103 = vmatprep.subr.bf16.mxu0 0
    %5104 = vmatpush1.bf16.msra.mxu0 %v3687
    %5105 = vmatprep.subr.bf16.mxu0 0
    %5106 = vmatpush1.bf16.msra.mxu0 %v3688
    %5107 = vmatprep.subr.bf16.mxu0 0
    %5108 = vmatpush1.bf16.msra.mxu0 %v3689
    %5109 = vmatprep.subr.bf16.mxu0 0
    %5110 = vmatpush1.bf16.msra.mxu0 %v3690
    %5111 = vmatprep.subr.bf16.mxu0 0
    %5112 = vmatpush1.bf16.msra.mxu0 %v3691
    %5113 = vmatprep.subr.bf16.mxu0 0
    %5114 = vmatpush1.bf16.msra.mxu0 %v3692
    %5115 = vmatprep.subr.bf16.mxu0 0
    %5116 = vmatpush1.bf16.msra.mxu0 %v3693
    %5117 = vmatprep.subr.bf16.mxu0 0
    %5118 = vmatpush1.bf16.msra.mxu0 %v3694
    %5119 = vmatprep.mubr.bf16.mxu0 %v1280
    %5120 = vmatmul.mubr.bf16.gmra.mrb[0].mxu0 %v1279
    %v5121 = vpop.f32.mrb[0].mxu0
    %v5122 = vadd.f32 %v5082, %v5121
    %v5123 = vpop.f32.mrb[0].mxu0
    %v5124 = vpop.f32.mrb[0].mxu0
    %v5125 = vpop.f32.mrb[0].mxu0
    %5126 = vdwg.mxu0
    %5127 = vmatprep.subr.bf16.mxu0 0
    %5128 = vmatpush1.bf16.msra.mxu0 %v3695
    %5129 = vmatprep.subr.bf16.mxu0 0
    %5130 = vmatpush1.bf16.msra.mxu0 %v3696
    %5131 = vmatprep.subr.bf16.mxu0 0
    %5132 = vmatpush1.bf16.msra.mxu0 %v3697
    %5133 = vmatprep.subr.bf16.mxu0 0
    %5134 = vmatpush1.bf16.msra.mxu0 %v3698
    %5135 = vmatprep.subr.bf16.mxu0 0
    %5136 = vmatpush1.bf16.msra.mxu0 %v3699
    %5137 = vmatprep.subr.bf16.mxu0 0
    %5138 = vmatpush1.bf16.msra.mxu0 %v3700
    %5139 = vmatprep.subr.bf16.mxu0 0
    %5140 = vmatpush1.bf16.msra.mxu0 %v3701
    %5141 = vmatprep.subr.bf16.mxu0 0
    %5142 = vmatpush1.bf16.msra.mxu0 %v3702
    %5143 = vmatprep.subr.bf16.mxu0 0
    %5144 = vmatpush1.bf16.msra.mxu0 %v3703
    %5145 = vmatprep.subr.bf16.mxu0 0
    %5146 = vmatpush1.bf16.msra.mxu0 %v3704
    %5147 = vmatprep.subr.bf16.mxu0 0
    %5148 = vmatpush1.bf16.msra.mxu0 %v3705
    %5149 = vmatprep.subr.bf16.mxu0 0
    %5150 = vmatpush1.bf16.msra.mxu0 %v3706
    %5151 = vmatprep.subr.bf16.mxu0 0
    %5152 = vmatpush1.bf16.msra.mxu0 %v3707
    %5153 = vmatprep.subr.bf16.mxu0 0
    %5154 = vmatpush1.bf16.msra.mxu0 %v3708
    %5155 = vmatprep.subr.bf16.mxu0 0
    %5156 = vmatpush1.bf16.msra.mxu0 %v3709
    %5157 = vmatprep.subr.bf16.mxu0 0
    %5158 = vmatpush1.bf16.msra.mxu0 %v3710
    %5159 = vmatprep.mubr.bf16.mxu0 %v1282
    %5160 = vmatmul.mubr.bf16.gmra.mrb[0].mxu0 %v1281
    %v5161 = vpop.f32.mrb[0].mxu0
    %v5162 = vadd.f32 %v5122, %v5161
    %v5163 = vpop.f32.mrb[0].mxu0
    %v5164 = vpop.f32.mrb[0].mxu0
    %v5165 = vpop.f32.mrb[0].mxu0
    %5166 = vdwg.mxu0
    %5167 = vmatprep.subr.bf16.mxu0 0
    %5168 = vmatpush1.bf16.msra.mxu0 %v3711
    %5169 = vmatprep.subr.bf16.mxu0 0
    %5170 = vmatpush1.bf16.msra.mxu0 %v3712
    %5171 = vmatprep.subr.bf16.mxu0 0
    %5172 = vmatpush1.bf16.msra.mxu0 %v3713
    %5173 = vmatprep.subr.bf16.mxu0 0
    %5174 = vmatpush1.bf16.msra.mxu0 %v3714
    %5175 = vmatprep.subr.bf16.mxu0 0
    %5176 = vmatpush1.bf16.msra.mxu0 %v3715
    %5177 = vmatprep.subr.bf16.mxu0 0
    %5178 = vmatpush1.bf16.msra.mxu0 %v3716
    %5179 = vmatprep.subr.bf16.mxu0 0
    %5180 = vmatpush1.bf16.msra.mxu0 %v3717
    %5181 = vmatprep.subr.bf16.mxu0 0
    %5182 = vmatpush1.bf16.msra.mxu0 %v3718
    %5183 = vmatprep.subr.bf16.mxu0 0
    %5184 = vmatpush1.bf16.msra.mxu0 %v3719
    %5185 = vmatprep.subr.bf16.mxu0 0
    %5186 = vmatpush1.bf16.msra.mxu0 %v3720
    %5187 = vmatprep.subr.bf16.mxu0 0
    %5188 = vmatpush1.bf16.msra.mxu0 %v3721
    %5189 = vmatprep.subr.bf16.mxu0 0
    %5190 = vmatpush1.bf16.msra.mxu0 %v3722
    %5191 = vmatprep.subr.bf16.mxu0 0
    %5192 = vmatpush1.bf16.msra.mxu0 %v3723
    %5193 = vmatprep.subr.bf16.mxu0 0
    %5194 = vmatpush1.bf16.msra.mxu0 %v3724
    %5195 = vmatprep.subr.bf16.mxu0 0
    %5196 = vmatpush1.bf16.msra.mxu0 %v3725
    %5197 = vmatprep.subr.bf16.mxu0 0
    %5198 = vmatpush1.bf16.msra.mxu0 %v3726
    %5199 = vmatprep.mubr.bf16.mxu0 %v1284
    %5200 = vmatmul.mubr.bf16.gmra.mrb[0].mxu0 %v1283
    %v5201 = vpop.f32.mrb[0].mxu0
    %v5202 = vadd.f32 %v5162, %v5201
    %v5203 = vpop.f32.mrb[0].mxu0
    %v5204 = vpop.f32.mrb[0].mxu0
    %v5205 = vpop.f32.mrb[0].mxu0
    %5206 = vdwg.mxu0
    %5207 = vmatprep.subr.bf16.mxu0 0
    %5208 = vmatpush1.bf16.msra.mxu0 %v3727
    %5209 = vmatprep.subr.bf16.mxu0 0
    %5210 = vmatpush1.bf16.msra.mxu0 %v3728
    %5211 = vmatprep.subr.bf16.mxu0 0
    %5212 = vmatpush1.bf16.msra.mxu0 %v3729
    %5213 = vmatprep.subr.bf16.mxu0 0
    %5214 = vmatpush1.bf16.msra.mxu0 %v3730
    %5215 = vmatprep.subr.bf16.mxu0 0
    %5216 = vmatpush1.bf16.msra.mxu0 %v3731
    %5217 = vmatprep.subr.bf16.mxu0 0
    %5218 = vmatpush1.bf16.msra.mxu0 %v3732
    %5219 = vmatprep.subr.bf16.mxu0 0
    %5220 = vmatpush1.bf16.msra.mxu0 %v3733
    %5221 = vmatprep.subr.bf16.mxu0 0
    %5222 = vmatpush1.bf16.msra.mxu0 %v3734
    %5223 = vmatprep.subr.bf16.mxu0 0
    %5224 = vmatpush1.bf16.msra.mxu0 %v3735
    %5225 = vmatprep.subr.bf16.mxu0 0
    %5226 = vmatpush1.bf16.msra.mxu0 %v3736
    %5227 = vmatprep.subr.bf16.mxu0 0
    %5228 = vmatpush1.bf16.msra.mxu0 %v3737
    %5229 = vmatprep.subr.bf16.mxu0 0
    %5230 = vmatpush1.bf16.msra.mxu0 %v3738
    %5231 = vmatprep.subr.bf16.mxu0 0
    %5232 = vmatpush1.bf16.msra.mxu0 %v3739
    %5233 = vmatprep.subr.bf16.mxu0 0
    %5234 = vmatpush1.bf16.msra.mxu0 %v3740
    %5235 = vmatprep.subr.bf16.mxu0 0
    %5236 = vmatpush1.bf16.msra.mxu0 %v3741
    %5237 = vmatprep.subr.bf16.mxu0 0
    %5238 = vmatpush1.bf16.msra.mxu0 %v3742
    %5239 = vmatprep.mubr.bf16.mxu0 %v1286
    %5240 = vmatmul.mubr.bf16.gmra.mrb[0].mxu0 %v1285
    %v5241 = vpop.f32.mrb[0].mxu0
    %v5242 = vadd.f32 %v5202, %v5241
    %v5243 = vpop.f32.mrb[0].mxu0
    %v5244 = vpop.f32.mrb[0].mxu0
    %v5245 = vpop.f32.mrb[0].mxu0
    %5246 = vdwg.mxu0
    %5247 = vmatprep.subr.bf16.mxu0 0
    %5248 = vmatpush1.bf16.msra.mxu0 %v3743
    %5249 = vmatprep.subr.bf16.mxu0 0
    %5250 = vmatpush1.bf16.msra.mxu0 %v3744
    %5251 = vmatprep.subr.bf16.mxu0 0
    %5252 = vmatpush1.bf16.msra.mxu0 %v3745
    %5253 = vmatprep.subr.bf16.mxu0 0
    %5254 = vmatpush1.bf16.msra.mxu0 %v3746
    %5255 = vmatprep.subr.bf16.mxu0 0
    %5256 = vmatpush1.bf16.msra.mxu0 %v3747
    %5257 = vmatprep.subr.bf16.mxu0 0
    %5258 = vmatpush1.bf16.msra.mxu0 %v3748
    %5259 = vmatprep.subr.bf16.mxu0 0
    %5260 = vmatpush1.bf16.msra.mxu0 %v3749
    %5261 = vmatprep.subr.bf16.mxu0 0
    %5262 = vmatpush1.bf16.msra.mxu0 %v3750
    %5263 = vmatprep.subr.bf16.mxu0 0
    %5264 = vmatpush1.bf16.msra.mxu0 %v3751
    %5265 = vmatprep.subr.bf16.mxu0 0
    %5266 = vmatpush1.bf16.msra.mxu0 %v3752
    %5267 = vmatprep.subr.bf16.mxu0 0
    %5268 = vmatpush1.bf16.msra.mxu0 %v3753
    %5269 = vmatprep.subr.bf16.mxu0 0
    %5270 = vmatpush1.bf16.msra.mxu0 %v3754
    %5271 = vmatprep.subr.bf16.mxu0 0
    %5272 = vmatpush1.bf16.msra.mxu0 %v3755
    %5273 = vmatprep.subr.bf16.mxu0 0
    %5274 = vmatpush1.bf16.msra.mxu0 %v3756
    %5275 = vmatprep.subr.bf16.mxu0 0
    %5276 = vmatpush1.bf16.msra.mxu0 %v3757
    %5277 = vmatprep.subr.bf16.mxu0 0
    %5278 = vmatpush1.bf16.msra.mxu0 %v3758
    %5279 = vmatprep.mubr.bf16.mxu0 %v1288
    %5280 = vmatmul.mubr.bf16.gmra.mrb[0].mxu0 %v1287
    %v5281 = vpop.f32.mrb[0].mxu0
    %v5282 = vadd.f32 %v5242, %v5281
    %v5283 = vpop.f32.mrb[0].mxu0
    %v5284 = vpop.f32.mrb[0].mxu0
    %v5285 = vpop.f32.mrb[0].mxu0
    %5286 = vdwg.mxu0
    %5287 = vmatprep.subr.bf16.mxu0 0
    %5288 = vmatpush1.bf16.msra.mxu0 %v3759
    %5289 = vmatprep.subr.bf16.mxu0 0
    %5290 = vmatpush1.bf16.msra.mxu0 %v3760
    %5291 = vmatprep.subr.bf16.mxu0 0
    %5292 = vmatpush1.bf16.msra.mxu0 %v3761
    %5293 = vmatprep.subr.bf16.mxu0 0
    %5294 = vmatpush1.bf16.msra.mxu0 %v3762
    %5295 = vmatprep.subr.bf16.mxu0 0
    %5296 = vmatpush1.bf16.msra.mxu0 %v3763
    %5297 = vmatprep.subr.bf16.mxu0 0
    %5298 = vmatpush1.bf16.msra.mxu0 %v3764
    %5299 = vmatprep.subr.bf16.mxu0 0
    %5300 = vmatpush1.bf16.msra.mxu0 %v3765
    %5301 = vmatprep.subr.bf16.mxu0 0
    %5302 = vmatpush1.bf16.msra.mxu0 %v3766
    %5303 = vmatprep.subr.bf16.mxu0 0
    %5304 = vmatpush1.bf16.msra.mxu0 %v3767
    %5305 = vmatprep.subr.bf16.mxu0 0
    %5306 = vmatpush1.bf16.msra.mxu0 %v3768
    %5307 = vmatprep.subr.bf16.mxu0 0
    %5308 = vmatpush1.bf16.msra.mxu0 %v3769
    %5309 = vmatprep.subr.bf16.mxu0 0
    %5310 = vmatpush1.bf16.msra.mxu0 %v3770
    %5311 = vmatprep.subr.bf16.mxu0 0
    %5312 = vmatpush1.bf16.msra.mxu0 %v3771
    %5313 = vmatprep.subr.bf16.mxu0 0
    %5314 = vmatpush1.bf16.msra.mxu0 %v3772
    %5315 = vmatprep.subr.bf16.mxu0 0
    %5316 = vmatpush1.bf16.msra.mxu0 %v3773
    %5317 = vmatprep.subr.bf16.mxu0 0
    %5318 = vmatpush1.bf16.msra.mxu0 %v3774
    %5319 = vmatprep.mubr.bf16.mxu0 %v1290
    %5320 = vmatmul.mubr.bf16.gmra.mrb[0].mxu0 %v1289
    %v5321 = vpop.f32.mrb[0].mxu0
    %v5322 = vadd.f32 %v5282, %v5321
    %v5323 = vpop.f32.mrb[0].mxu0
    %v5324 = vpop.f32.mrb[0].mxu0
    %v5325 = vpop.f32.mrb[0].mxu0
    %5326 = vdwg.mxu0
    %5327 = vmatprep.subr.bf16.mxu0 0
    %5328 = vmatpush1.bf16.msra.mxu0 %v3775
    %5329 = vmatprep.subr.bf16.mxu0 0
    %5330 = vmatpush1.bf16.msra.mxu0 %v3776
    %5331 = vmatprep.subr.bf16.mxu0 0
    %5332 = vmatpush1.bf16.msra.mxu0 %v3777
    %5333 = vmatprep.subr.bf16.mxu0 0
    %5334 = vmatpush1.bf16.msra.mxu0 %v3778
    %5335 = vmatprep.subr.bf16.mxu0 0
    %5336 = vmatpush1.bf16.msra.mxu0 %v3779
    %5337 = vmatprep.subr.bf16.mxu0 0
    %5338 = vmatpush1.bf16.msra.mxu0 %v3780
    %5339 = vmatprep.subr.bf16.mxu0 0
    %5340 = vmatpush1.bf16.msra.mxu0 %v3781
    %5341 = vmatprep.subr.bf16.mxu0 0
    %5342 = vmatpush1.bf16.msra.mxu0 %v3782
    %5343 = vmatprep.subr.bf16.mxu0 0
    %5344 = vmatpush1.bf16.msra.mxu0 %v3783
    %5345 = vmatprep.subr.bf16.mxu0 0
    %5346 = vmatpush1.bf16.msra.mxu0 %v3784
    %5347 = vmatprep.subr.bf16.mxu0 0
    %5348 = vmatpush1.bf16.msra.mxu0 %v3785
    %5349 = vmatprep.subr.bf16.mxu0 0
    %5350 = vmatpush1.bf16.msra.mxu0 %v3786
    %5351 = vmatprep.subr.bf16.mxu0 0
    %5352 = vmatpush1.bf16.msra.mxu0 %v3787
    %5353 = vmatprep.subr.bf16.mxu0 0
    %5354 = vmatpush1.bf16.msra.mxu0 %v3788
    %5355 = vmatprep.subr.bf16.mxu0 0
    %5356 = vmatpush1.bf16.msra.mxu0 %v3789
    %5357 = vmatprep.subr.bf16.mxu0 0
    %5358 = vmatpush1.bf16.msra.mxu0 %v3790
    %5359 = vmatprep.mubr.bf16.mxu0 %v1292
    %5360 = vmatmul.mubr.bf16.gmra.mrb[0].mxu0 %v1291
    %v5361 = vpop.f32.mrb[0].mxu0
    %v5362 = vadd.f32 %v5322, %v5361
    %v5363 = vpop.f32.mrb[0].mxu0
    %v5364 = vpop.f32.mrb[0].mxu0
    %v5365 = vpop.f32.mrb[0].mxu0
    %5366 = vdwg.mxu0
    %5367 = vmatprep.subr.bf16.mxu0 0
    %5368 = vmatpush1.bf16.msra.mxu0 %v3791
    %5369 = vmatprep.subr.bf16.mxu0 0
    %5370 = vmatpush1.bf16.msra.mxu0 %v3792
    %5371 = vmatprep.subr.bf16.mxu0 0
    %5372 = vmatpush1.bf16.msra.mxu0 %v3793
    %5373 = vmatprep.subr.bf16.mxu0 0
    %5374 = vmatpush1.bf16.msra.mxu0 %v3794
    %5375 = vmatprep.subr.bf16.mxu0 0
    %5376 = vmatpush1.bf16.msra.mxu0 %v3795
    %5377 = vmatprep.subr.bf16.mxu0 0
    %5378 = vmatpush1.bf16.msra.mxu0 %v3796
    %5379 = vmatprep.subr.bf16.mxu0 0
    %5380 = vmatpush1.bf16.msra.mxu0 %v3797
    %5381 = vmatprep.subr.bf16.mxu0 0
    %5382 = vmatpush1.bf16.msra.mxu0 %v3798
    %5383 = vmatprep.subr.bf16.mxu0 0
    %5384 = vmatpush1.bf16.msra.mxu0 %v3799
    %5385 = vmatprep.subr.bf16.mxu0 0
    %5386 = vmatpush1.bf16.msra.mxu0 %v3800
    %5387 = vmatprep.subr.bf16.mxu0 0
    %5388 = vmatpush1.bf16.msra.mxu0 %v3801
    %5389 = vmatprep.subr.bf16.mxu0 0
    %5390 = vmatpush1.bf16.msra.mxu0 %v3802
    %5391 = vmatprep.subr.bf16.mxu0 0
    %5392 = vmatpush1.bf16.msra.mxu0 %v3803
    %5393 = vmatprep.subr.bf16.mxu0 0
    %5394 = vmatpush1.bf16.msra.mxu0 %v3804
    %5395 = vmatprep.subr.bf16.mxu0 0
    %5396 = vmatpush1.bf16.msra.mxu0 %v3805
    %5397 = vmatprep.subr.bf16.mxu0 0
    %5398 = vmatpush1.bf16.msra.mxu0 %v3806
    %5399 = vmatprep.mubr.bf16.mxu0 %v1294
    %5400 = vmatmul.mubr.bf16.gmra.mrb[0].mxu0 %v1293
    %v5401 = vpop.f32.mrb[0].mxu0
    %v5402 = vadd.f32 %v5362, %v5401
    %v5403 = vpop.f32.mrb[0].mxu0
    %v5404 = vpop.f32.mrb[0].mxu0
    %v5405 = vpop.f32.mrb[0].mxu0
    %5406 = vdwg.mxu0
    %5407 = vmatprep.subr.bf16.mxu0 0
    %5408 = vmatpush1.bf16.msra.mxu0 %v3807
    %5409 = vmatprep.subr.bf16.mxu0 0
    %5410 = vmatpush1.bf16.msra.mxu0 %v3808
    %5411 = vmatprep.subr.bf16.mxu0 0
    %5412 = vmatpush1.bf16.msra.mxu0 %v3809
    %5413 = vmatprep.subr.bf16.mxu0 0
    %5414 = vmatpush1.bf16.msra.mxu0 %v3810
    %5415 = vmatprep.subr.bf16.mxu0 0
    %5416 = vmatpush1.bf16.msra.mxu0 %v3811
    %5417 = vmatprep.subr.bf16.mxu0 0
    %5418 = vmatpush1.bf16.msra.mxu0 %v3812
    %5419 = vmatprep.subr.bf16.mxu0 0
    %5420 = vmatpush1.bf16.msra.mxu0 %v3813
    %5421 = vmatprep.subr.bf16.mxu0 0
    %5422 = vmatpush1.bf16.msra.mxu0 %v3814
    %5423 = vmatprep.subr.bf16.mxu0 0
    %5424 = vmatpush1.bf16.msra.mxu0 %v3815
    %5425 = vmatprep.subr.bf16.mxu0 0
    %5426 = vmatpush1.bf16.msra.mxu0 %v3816
    %5427 = vmatprep.subr.bf16.mxu0 0
    %5428 = vmatpush1.bf16.msra.mxu0 %v3817
    %5429 = vmatprep.subr.bf16.mxu0 0
    %5430 = vmatpush1.bf16.msra.mxu0 %v3818
    %5431 = vmatprep.subr.bf16.mxu0 0
    %5432 = vmatpush1.bf16.msra.mxu0 %v3819
    %5433 = vmatprep.subr.bf16.mxu0 0
    %5434 = vmatpush1.bf16.msra.mxu0 %v3820
    %5435 = vmatprep.subr.bf16.mxu0 0
    %5436 = vmatpush1.bf16.msra.mxu0 %v3821
    %5437 = vmatprep.subr.bf16.mxu0 0
    %5438 = vmatpush1.bf16.msra.mxu0 %v3822
    %5439 = vmatprep.mubr.bf16.mxu0 %v1296
    %5440 = vmatmul.mubr.bf16.gmra.mrb[0].mxu0 %v1295
    %v5441 = vpop.f32.mrb[0].mxu0
    %v5442 = vadd.f32 %v5402, %v5441
    %v5443 = vpop.f32.mrb[0].mxu0
    %v5444 = vpop.f32.mrb[0].mxu0
    %v5445 = vpop.f32.mrb[0].mxu0
    %5446 = vdwg.mxu0
    %5447 = vmatprep.subr.bf16.mxu0 0
    %5448 = vmatpush1.bf16.msra.mxu0 %v3823
    %5449 = vmatprep.subr.bf16.mxu0 0
    %5450 = vmatpush1.bf16.msra.mxu0 %v3824
    %5451 = vmatprep.subr.bf16.mxu0 0
    %5452 = vmatpush1.bf16.msra.mxu0 %v3825
    %5453 = vmatprep.subr.bf16.mxu0 0
    %5454 = vmatpush1.bf16.msra.mxu0 %v3826
    %5455 = vmatprep.subr.bf16.mxu0 0
    %5456 = vmatpush1.bf16.msra.mxu0 %v3827
    %5457 = vmatprep.subr.bf16.mxu0 0
    %5458 = vmatpush1.bf16.msra.mxu0 %v3828
    %5459 = vmatprep.subr.bf16.mxu0 0
    %5460 = vmatpush1.bf16.msra.mxu0 %v3829
    %5461 = vmatprep.subr.bf16.mxu0 0
    %5462 = vmatpush1.bf16.msra.mxu0 %v3830
    %5463 = vmatprep.subr.bf16.mxu0 0
    %5464 = vmatpush1.bf16.msra.mxu0 %v3831
    %5465 = vmatprep.subr.bf16.mxu0 0
    %5466 = vmatpush1.bf16.msra.mxu0 %v3832
    %5467 = vmatprep.subr.bf16.mxu0 0
    %5468 = vmatpush1.bf16.msra.mxu0 %v3833
    %5469 = vmatprep.subr.bf16.mxu0 0
    %5470 = vmatpush1.bf16.msra.mxu0 %v3834
    %5471 = vmatprep.subr.bf16.mxu0 0
    %5472 = vmatpush1.bf16.msra.mxu0 %v3835
    %5473 = vmatprep.subr.bf16.mxu0 0
    %5474 = vmatpush1.bf16.msra.mxu0 %v3836
    %5475 = vmatprep.subr.bf16.mxu0 0
    %5476 = vmatpush1.bf16.msra.mxu0 %v3837
    %5477 = vmatprep.subr.bf16.mxu0 0
    %5478 = vmatpush1.bf16.msra.mxu0 %v3838
    %5479 = vmatprep.mubr.bf16.mxu0 %v1298
    %5480 = vmatmul.mubr.bf16.gmra.mrb[0].mxu0 %v1297
    %v5481 = vpop.f32.mrb[0].mxu0
    %v5482 = vadd.f32 %v5442, %v5481
    %v5483 = vpop.f32.mrb[0].mxu0
    %v5484 = vpop.f32.mrb[0].mxu0
    %v5485 = vpop.f32.mrb[0].mxu0
    %5486 = vdwg.mxu0
    %5487 = vmatprep.subr.bf16.mxu0 0
    %5488 = vmatpush1.bf16.msra.mxu0 %v3839
    %5489 = vmatprep.subr.bf16.mxu0 0
    %5490 = vmatpush1.bf16.msra.mxu0 %v3840
    %5491 = vmatprep.subr.bf16.mxu0 0
    %5492 = vmatpush1.bf16.msra.mxu0 %v3841
    %5493 = vmatprep.subr.bf16.mxu0 0
    %5494 = vmatpush1.bf16.msra.mxu0 %v3842
    %5495 = vmatprep.subr.bf16.mxu0 0
    %5496 = vmatpush1.bf16.msra.mxu0 %v3843
    %5497 = vmatprep.subr.bf16.mxu0 0
    %5498 = vmatpush1.bf16.msra.mxu0 %v3844
    %5499 = vmatprep.subr.bf16.mxu0 0
    %5500 = vmatpush1.bf16.msra.mxu0 %v3845
    %5501 = vmatprep.subr.bf16.mxu0 0
    %5502 = vmatpush1.bf16.msra.mxu0 %v3846
    %5503 = vmatprep.subr.bf16.mxu0 0
    %5504 = vmatpush1.bf16.msra.mxu0 %v3847
    %5505 = vmatprep.subr.bf16.mxu0 0
    %5506 = vmatpush1.bf16.msra.mxu0 %v3848
    %5507 = vmatprep.subr.bf16.mxu0 0
    %5508 = vmatpush1.bf16.msra.mxu0 %v3849
    %5509 = vmatprep.subr.bf16.mxu0 0
    %5510 = vmatpush1.bf16.msra.mxu0 %v3850
    %5511 = vmatprep.subr.bf16.mxu0 0
    %5512 = vmatpush1.bf16.msra.mxu0 %v3851
    %5513 = vmatprep.subr.bf16.mxu0 0
    %5514 = vmatpush1.bf16.msra.mxu0 %v3852
    %5515 = vmatprep.subr.bf16.mxu0 0
    %5516 = vmatpush1.bf16.msra.mxu0 %v3853
    %5517 = vmatprep.subr.bf16.mxu0 0
    %5518 = vmatpush1.bf16.msra.mxu0 %v3854
    %5519 = vmatprep.mubr.bf16.mxu0 %v1300
    %5520 = vmatmul.mubr.bf16.gmra.mrb[0].mxu0 %v1299
    %v5521 = vpop.f32.mrb[0].mxu0
    %v5522 = vadd.f32 %v5482, %v5521
    %v5523 = vpop.f32.mrb[0].mxu0
    %v5524 = vpop.f32.mrb[0].mxu0
    %v5525 = vpop.f32.mrb[0].mxu0
    %5526 = vdwg.mxu0
    %5527 = vmatprep.subr.bf16.mxu0 0
    %5528 = vmatpush1.bf16.msra.mxu0 %v3855
    %5529 = vmatprep.subr.bf16.mxu0 0
    %5530 = vmatpush1.bf16.msra.mxu0 %v3856
    %5531 = vmatprep.subr.bf16.mxu0 0
    %5532 = vmatpush1.bf16.msra.mxu0 %v3857
    %5533 = vmatprep.subr.bf16.mxu0 0
    %5534 = vmatpush1.bf16.msra.mxu0 %v3858
    %5535 = vmatprep.subr.bf16.mxu0 0
    %5536 = vmatpush1.bf16.msra.mxu0 %v3859
    %5537 = vmatprep.subr.bf16.mxu0 0
    %5538 = vmatpush1.bf16.msra.mxu0 %v3860
    %5539 = vmatprep.subr.bf16.mxu0 0
    %5540 = vmatpush1.bf16.msra.mxu0 %v3861
    %5541 = vmatprep.subr.bf16.mxu0 0
    %5542 = vmatpush1.bf16.msra.mxu0 %v3862
    %5543 = vmatprep.subr.bf16.mxu0 0
    %5544 = vmatpush1.bf16.msra.mxu0 %v3863
    %5545 = vmatprep.subr.bf16.mxu0 0
    %5546 = vmatpush1.bf16.msra.mxu0 %v3864
    %5547 = vmatprep.subr.bf16.mxu0 0
    %5548 = vmatpush1.bf16.msra.mxu0 %v3865
    %5549 = vmatprep.subr.bf16.mxu0 0
    %5550 = vmatpush1.bf16.msra.mxu0 %v3866
    %5551 = vmatprep.subr.bf16.mxu0 0
    %5552 = vmatpush1.bf16.msra.mxu0 %v3867
    %5553 = vmatprep.subr.bf16.mxu0 0
    %5554 = vmatpush1.bf16.msra.mxu0 %v3868
    %5555 = vmatprep.subr.bf16.mxu0 0
    %5556 = vmatpush1.bf16.msra.mxu0 %v3869
    %5557 = vmatprep.subr.bf16.mxu0 0
    %5558 = vmatpush1.bf16.msra.mxu0 %v3870
    %5559 = vmatprep.mubr.bf16.mxu0 %v1302
    %5560 = vmatmul.mubr.bf16.gmra.mrb[0].mxu0 %v1301
    %v5561 = vpop.f32.mrb[0].mxu0
    %v5562 = vadd.f32 %v5522, %v5561
    %v5563 = vpop.f32.mrb[0].mxu0
    %v5564 = vpop.f32.mrb[0].mxu0
    %v5565 = vpop.f32.mrb[0].mxu0
    %5566 = vdwg.mxu0
    %5567 = vmatprep.subr.bf16.mxu0 0
    %5568 = vmatpush1.bf16.msra.mxu0 %v3871
    %5569 = vmatprep.subr.bf16.mxu0 0
    %5570 = vmatpush1.bf16.msra.mxu0 %v3872
    %5571 = vmatprep.subr.bf16.mxu0 0
    %5572 = vmatpush1.bf16.msra.mxu0 %v3873
    %5573 = vmatprep.subr.bf16.mxu0 0
    %5574 = vmatpush1.bf16.msra.mxu0 %v3874
    %5575 = vmatprep.subr.bf16.mxu0 0
    %5576 = vmatpush1.bf16.msra.mxu0 %v3875
    %5577 = vmatprep.subr.bf16.mxu0 0
    %5578 = vmatpush1.bf16.msra.mxu0 %v3876
    %5579 = vmatprep.subr.bf16.mxu0 0
    %5580 = vmatpush1.bf16.msra.mxu0 %v3877
    %5581 = vmatprep.subr.bf16.mxu0 0
    %5582 = vmatpush1.bf16.msra.mxu0 %v3878
    %5583 = vmatprep.subr.bf16.mxu0 0
    %5584 = vmatpush1.bf16.msra.mxu0 %v3879
    %5585 = vmatprep.subr.bf16.mxu0 0
    %5586 = vmatpush1.bf16.msra.mxu0 %v3880
    %5587 = vmatprep.subr.bf16.mxu0 0
    %5588 = vmatpush1.bf16.msra.mxu0 %v3881
    %5589 = vmatprep.subr.bf16.mxu0 0
    %5590 = vmatpush1.bf16.msra.mxu0 %v3882
    %5591 = vmatprep.subr.bf16.mxu0 0
    %5592 = vmatpush1.bf16.msra.mxu0 %v3883
    %5593 = vmatprep.subr.bf16.mxu0 0
    %5594 = vmatpush1.bf16.msra.mxu0 %v3884
    %5595 = vmatprep.subr.bf16.mxu0 0
    %5596 = vmatpush1.bf16.msra.mxu0 %v3885
    %5597 = vmatprep.subr.bf16.mxu0 0
    %5598 = vmatpush1.bf16.msra.mxu0 %v3886
    %5599 = vmatprep.mubr.bf16.mxu0 %v1304
    %5600 = vmatmul.mubr.bf16.gmra.mrb[0].mxu0 %v1303
    %v5601 = vpop.f32.mrb[0].mxu0
    %v5602 = vadd.f32 %v5562, %v5601
    %v5603 = vpop.f32.mrb[0].mxu0
    %v5604 = vpop.f32.mrb[0].mxu0
    %v5605 = vpop.f32.mrb[0].mxu0
    %5606 = vdwg.mxu0
    %5607 = vmatprep.subr.bf16.mxu0 0
    %5608 = vmatpush1.bf16.msra.mxu0 %v3887
    %5609 = vmatprep.subr.bf16.mxu0 0
    %5610 = vmatpush1.bf16.msra.mxu0 %v3888
    %5611 = vmatprep.subr.bf16.mxu0 0
    %5612 = vmatpush1.bf16.msra.mxu0 %v3889
    %5613 = vmatprep.subr.bf16.mxu0 0
    %5614 = vmatpush1.bf16.msra.mxu0 %v3890
    %5615 = vmatprep.subr.bf16.mxu0 0
    %5616 = vmatpush1.bf16.msra.mxu0 %v3891
    %5617 = vmatprep.subr.bf16.mxu0 0
    %5618 = vmatpush1.bf16.msra.mxu0 %v3892
    %5619 = vmatprep.subr.bf16.mxu0 0
    %5620 = vmatpush1.bf16.msra.mxu0 %v3893
    %5621 = vmatprep.subr.bf16.mxu0 0
    %5622 = vmatpush1.bf16.msra.mxu0 %v3894
    %5623 = vmatprep.subr.bf16.mxu0 0
    %5624 = vmatpush1.bf16.msra.mxu0 %v3895
    %5625 = vmatprep.subr.bf16.mxu0 0
    %5626 = vmatpush1.bf16.msra.mxu0 %v3896
    %5627 = vmatprep.subr.bf16.mxu0 0
    %5628 = vmatpush1.bf16.msra.mxu0 %v3897
    %5629 = vmatprep.subr.bf16.mxu0 0
    %5630 = vmatpush1.bf16.msra.mxu0 %v3898
    %5631 = vmatprep.subr.bf16.mxu0 0
    %5632 = vmatpush1.bf16.msra.mxu0 %v3899
    %5633 = vmatprep.subr.bf16.mxu0 0
    %5634 = vmatpush1.bf16.msra.mxu0 %v3900
    %5635 = vmatprep.subr.bf16.mxu0 0
    %5636 = vmatpush1.bf16.msra.mxu0 %v3901
    %5637 = vmatprep.subr.bf16.mxu0 0
    %5638 = vmatpush1.bf16.msra.mxu0 %v3902
    %5639 = vmatprep.mubr.bf16.mxu0 %v1306
    %5640 = vmatmul.mubr.bf16.gmra.mrb[0].mxu0 %v1305
    %v5641 = vpop.f32.mrb[0].mxu0
    %v5642 = vadd.f32 %v5602, %v5641
    %v5643 = vpop.f32.mrb[0].mxu0
    %v5644 = vpop.f32.mrb[0].mxu0
    %v5645 = vpop.f32.mrb[0].mxu0
    %5646 = vdwg.mxu0
    %5647 = vmatprep.subr.bf16.mxu0 0
    %5648 = vmatpush1.bf16.msra.mxu0 %v3903
    %5649 = vmatprep.subr.bf16.mxu0 0
    %5650 = vmatpush1.bf16.msra.mxu0 %v3904
    %5651 = vmatprep.subr.bf16.mxu0 0
    %5652 = vmatpush1.bf16.msra.mxu0 %v3905
    %5653 = vmatprep.subr.bf16.mxu0 0
    %5654 = vmatpush1.bf16.msra.mxu0 %v3906
    %5655 = vmatprep.subr.bf16.mxu0 0
    %5656 = vmatpush1.bf16.msra.mxu0 %v3907
    %5657 = vmatprep.subr.bf16.mxu0 0
    %5658 = vmatpush1.bf16.msra.mxu0 %v3908
    %5659 = vmatprep.subr.bf16.mxu0 0
    %5660 = vmatpush1.bf16.msra.mxu0 %v3909
    %5661 = vmatprep.subr.bf16.mxu0 0
    %5662 = vmatpush1.bf16.msra.mxu0 %v3910
    %5663 = vmatprep.subr.bf16.mxu0 0
    %5664 = vmatpush1.bf16.msra.mxu0 %v3911
    %5665 = vmatprep.subr.bf16.mxu0 0
    %5666 = vmatpush1.bf16.msra.mxu0 %v3912
    %5667 = vmatprep.subr.bf16.mxu0 0
    %5668 = vmatpush1.bf16.msra.mxu0 %v3913
    %5669 = vmatprep.subr.bf16.mxu0 0
    %5670 = vmatpush1.bf16.msra.mxu0 %v3914
    %5671 = vmatprep.subr.bf16.mxu0 0
    %5672 = vmatpush1.bf16.msra.mxu0 %v3915
    %5673 = vmatprep.subr.bf16.mxu0 0
    %5674 = vmatpush1.bf16.msra.mxu0 %v3916
    %5675 = vmatprep.subr.bf16.mxu0 0
    %5676 = vmatpush1.bf16.msra.mxu0 %v3917
    %5677 = vmatprep.subr.bf16.mxu0 0
    %5678 = vmatpush1.bf16.msra.mxu0 %v3918
    %5679 = vmatprep.mubr.bf16.mxu0 %v1308
    %5680 = vmatmul.mubr.bf16.gmra.mrb[0].mxu0 %v1307
    %v5681 = vpop.f32.mrb[0].mxu0
    %v5682 = vadd.f32 %v5642, %v5681
    %v5683 = vpop.f32.mrb[0].mxu0
    %v5684 = vpop.f32.mrb[0].mxu0
    %v5685 = vpop.f32.mrb[0].mxu0
    %5686 = vdwg.mxu0
    %5687 = vmatprep.subr.bf16.mxu0 0
    %5688 = vmatpush1.bf16.msra.mxu0 %v3919
    %5689 = vmatprep.subr.bf16.mxu0 0
    %5690 = vmatpush1.bf16.msra.mxu0 %v3920
    %5691 = vmatprep.subr.bf16.mxu0 0
    %5692 = vmatpush1.bf16.msra.mxu0 %v3921
    %5693 = vmatprep.subr.bf16.mxu0 0
    %5694 = vmatpush1.bf16.msra.mxu0 %v3922
    %5695 = vmatprep.subr.bf16.mxu0 0
    %5696 = vmatpush1.bf16.msra.mxu0 %v3923
    %5697 = vmatprep.subr.bf16.mxu0 0
    %5698 = vmatpush1.bf16.msra.mxu0 %v3924
    %5699 = vmatprep.subr.bf16.mxu0 0
    %5700 = vmatpush1.bf16.msra.mxu0 %v3925
    %5701 = vmatprep.subr.bf16.mxu0 0
    %5702 = vmatpush1.bf16.msra.mxu0 %v3926
    %5703 = vmatprep.subr.bf16.mxu0 0
    %5704 = vmatpush1.bf16.msra.mxu0 %v3927
    %5705 = vmatprep.subr.bf16.mxu0 0
    %5706 = vmatpush1.bf16.msra.mxu0 %v3928
    %5707 = vmatprep.subr.bf16.mxu0 0
    %5708 = vmatpush1.bf16.msra.mxu0 %v3929
    %5709 = vmatprep.subr.bf16.mxu0 0
    %5710 = vmatpush1.bf16.msra.mxu0 %v3930
    %5711 = vmatprep.subr.bf16.mxu0 0
    %5712 = vmatpush1.bf16.msra.mxu0 %v3931
    %5713 = vmatprep.subr.bf16.mxu0 0
    %5714 = vmatpush1.bf16.msra.mxu0 %v3932
    %5715 = vmatprep.subr.bf16.mxu0 0
    %5716 = vmatpush1.bf16.msra.mxu0 %v3933
    %5717 = vmatprep.subr.bf16.mxu0 0
    %5718 = vmatpush1.bf16.msra.mxu0 %v3934
    %5719 = vmatprep.mubr.bf16.mxu0 %v1310
    %5720 = vmatmul.mubr.bf16.gmra.mrb[0].mxu0 %v1309
    %v5721 = vpop.f32.mrb[0].mxu0
    %v5722 = vadd.f32 %v5682, %v5721
    %v5723 = vpop.f32.mrb[0].mxu0
    %v5724 = vpop.f32.mrb[0].mxu0
    %v5725 = vpop.f32.mrb[0].mxu0
    %5726 = vdwg.mxu0
    %v5727 = vmax.f32 %v5722, 0.0
    %v5728 = vld [vmem:[%s3] sm:$0xff]
    %v5729 = vld [vmem:[%s3 + $0x8] sm:$0xff]
    %v5730 = vld [vmem:[%s3 + $0x10] sm:$0xff]
    %v5731 = vld [vmem:[%s3 + $0x18] sm:$0xff]
    %v5732 = vld [vmem:[%s3 + $0x20] sm:$0xff]
    %v5733 = vld [vmem:[%s3 + $0x28] sm:$0xff]
    %v5734 = vld [vmem:[%s3 + $0x30] sm:$0xff]
    %v5735 = vld [vmem:[%s3 + $0x38] sm:$0xff]
    %v5736 = vld [vmem:[%s3 + $0x40] sm:$0xff]
    %v5737 = vld [vmem:[%s3 + $0x48] sm:$0xff]
    %v5738 = vld [vmem:[%s3 + $0x50] sm:$0xff]
    %v5739 = vld [vmem:[%s3 + $0x58] sm:$0xff]
    %v5740 = vld [vmem:[%s3 + $0x60] sm:$0xff]
    %v5741 = vld [vmem:[%s3 + $0x68] sm:$0xff]
    %v5742 = vld [vmem:[%s3 + $0x70] sm:$0xff]
    %v5743 = vld [vmem:[%s3 + $0x78] sm:$0xff]
    %v5744 = vld [vmem:[#allocation8] sm:$0x1]
    %v5746 = vlaneseq
    %v5747 = vshrl.u32 %v5746, 7
    %v5748 = vsub.s32 0, %v5747
    %v5749 = vrot.slane %v5744, %v5748
    %5751 = vmatprep.subr.mxu0 0.0
    %5752 = vmatpush1.msra.mxu0 %v5728
    %5753 = vmatprep.subr.mxu0 0.0
    %5754 = vmatpush1.msra.mxu0 %v5729
    %5755 = vmatprep.subr.mxu0 0.0
    %5756 = vmatpush1.msra.mxu0 %v5730
    %5757 = vmatprep.subr.mxu0 0.0
    %5758 = vmatpush1.msra.mxu0 %v5731
    %5759 = vmatprep.subr.mxu0 0.0
    %5760 = vmatpush1.msra.mxu0 %v5732
    %5761 = vmatprep.subr.mxu0 0.0
    %5762 = vmatpush1.msra.mxu0 %v5733
    %5763 = vmatprep.subr.mxu0 0.0
    %5764 = vmatpush1.msra.mxu0 %v5734
    %5765 = vmatprep.subr.mxu0 0.0
    %5766 = vmatpush1.msra.mxu0 %v5735
    %5767 = vmatprep.subr.mxu0 0.0
    %5768 = vmatpush1.msra.mxu0 %v5736
    %5769 = vmatprep.subr.mxu0 0.0
    %5770 = vmatpush1.msra.mxu0 %v5737
    %5771 = vmatprep.subr.mxu0 0.0
    %5772 = vmatpush1.msra.mxu0 %v5738
    %5773 = vmatprep.subr.mxu0 0.0
    %5774 = vmatpush1.msra.mxu0 %v5739
    %5775 = vmatprep.subr.mxu0 0.0
    %5776 = vmatpush1.msra.mxu0 %v5740
    %5777 = vmatprep.subr.mxu0 0.0
    %5778 = vmatpush1.msra.mxu0 %v5741
    %5779 = vmatprep.subr.mxu0 0.0
    %5780 = vmatpush1.msra.mxu0 %v5742
    %5781 = vmatprep.subr.mxu0 0.0
    %5782 = vmatpush1.msra.mxu0 %v5743
    %5783 = vmatprep.subr.mxu0 0.0
    %5784 = vmatpush1.msra.mxu0 0.0
    %5785 = vmatprep.subr.mxu0 0.0
    %5786 = vmatpush1.msra.mxu0 0.0
    %5787 = vmatprep.subr.mxu0 0.0
    %5788 = vmatpush1.msra.mxu0 0.0
    %5789 = vmatprep.subr.mxu0 0.0
    %5790 = vmatpush1.msra.mxu0 0.0
    %5791 = vmatprep.subr.mxu0 0.0
    %5792 = vmatpush1.msra.mxu0 0.0
    %5793 = vmatprep.subr.mxu0 0.0
    %5794 = vmatpush1.msra.mxu0 0.0
    %5795 = vmatprep.subr.mxu0 0.0
    %5796 = vmatpush1.msra.mxu0 0.0
    %5797 = vmatprep.subr.mxu0 0.0
    %5798 = vmatpush1.msra.mxu0 0.0
    %5799 = vmatprep.subr.mxu0 0.0
    %5800 = vmatpush1.msra.mxu0 0.0
    %5801 = vmatprep.subr.mxu0 0.0
    %5802 = vmatpush1.msra.mxu0 0.0
    %5803 = vmatprep.subr.mxu0 0.0
    %5804 = vmatpush1.msra.mxu0 0.0
    %5805 = vmatprep.subr.mxu0 0.0
    %5806 = vmatpush1.msra.mxu0 0.0
    %5807 = vmatprep.subr.mxu0 0.0
    %5808 = vmatpush1.msra.mxu0 0.0
    %5809 = vmatprep.subr.mxu0 0.0
    %5810 = vmatpush1.msra.mxu0 0.0
    %5811 = vmatprep.subr.mxu0 0.0
    %5812 = vmatpush1.msra.mxu0 0.0
    %5813 = vmatprep.subr.mxu0 0.0
    %5814 = vmatpush1.msra.mxu0 0.0
    %5815 = vmatprep.mubr.f32.mxu0 0.0
    %5816 = vmatmul.mubr.f32.gmra.mrb[0].mxu0 %v5727
    %v5817 = vpop.f32.mrb[0].mxu0
    %v5818 = vadd.f32 %v5749, %v5817
    %v5819 = vpop.f32.mrb[0].mxu0
    %5820 = vdwg.mxu0
    %v5821 = vmax.f32 %v5818, 0.0
    %v5822 = vld [vmem:[#allocation10] sm:$0x1]
    %v5824 = vlaneseq
    %v5825 = vshrl.u32 %v5824, 7
    %v5826 = vsub.s32 0, %v5825
    %v5827 = vrot.slane %v5822, %v5826
    %v5829 = vmul.f32 %v5821, %v5827
    %vm5830 = vcmask 523264
    %v5831 = vsel %vm5830, %v5829, 0.0
    %5832 = vadd.xlane.f32.xlu0 %v5831
    %v5833 = vpop.xlane.xlu0 %5832
    %s5834 = sld [smem:[#allocation2]]
    %v5835 = vstv %s5834
    %v5836 = vadd.f32 %v5833, %v5835
    %vm5837 = vcmask 7168
    %5838 = vst.msk [vmem:[%s7] sm:$0xff] %vm5837, %v5836
    // Predicated region
    $region50: #{tpu_custom_call.1} parent=1 // pred_check
      _
    $region51: #{tpu_custom_call.1} parent=1 // pred_check_branch
      %5840 = sbr.rel (0) target = $region53
    $region52: #{tpu_custom_call.1} parent=1 // pred_region
      _
    $region53: #{tpu_custom_call.1} parent=1 // pred_fallthru
      _
    // Predicated region
    $region54: #{tpu_custom_call.1} parent=1 // pred_check
      _
    $region55: #{tpu_custom_call.1} parent=1 // pred_check_branch
      %5842 = sbr.rel (0) target = $region57
    $region56: #{tpu_custom_call.1} parent=1 // pred_region
      _
    $region57: #{tpu_custom_call.1} parent=1 // pred_fallthru
      _
    %5843 = vsyncpa [#allocation4], 1
    %5844 = vsyncpa [#allocation6], 1
    %5845 = vsyncpa [#allocation9], 1

</llo_original>
